<compile_context>
chip_gen: v7x
topology: tpu7x:2x2x1
jax: 0.10.0
libtpu: 0.0.40
codegen_flags: <defaults>
</compile_context>

<pallas_src>
import functools

import jax
import jax.numpy as jnp
from jax.experimental import pallas as pl
from jax.experimental.pallas import tpu as pltpu

VOCAB_SIZE = 65          # len(set(text)) in the original script; fixed here
N_EMBD = 32
BLOCK_SIZE = 8
N_LAYERS = 3
N_HEADS = 4
HEAD_SIZE = N_EMBD // N_HEADS
FF_DIM = 4 * N_EMBD      # 128
LN_EPS = 1e-5
V_PAD = 128              # lane-dense padded logits width (>= VOCAB_SIZE)
LANE = 128               # slab lane width
NEG_INF = -1e30          # python float: never close over jnp arrays in kernels


def _round8(n):
    return (n + 7) // 8 * 8


EMB_ROWS = _round8(VOCAB_SIZE + BLOCK_SIZE)      # 80 (73 used, 7 zero pad)


def _slab_layout():
    """Row offsets of each packed component inside the single weight slab."""
    off, cur = {}, 0

    def take(name, rows):
        nonlocal cur
        off[name] = cur
        cur += _round8(rows)

    take("emb", VOCAB_SIZE + BLOCK_SIZE)          # tok_emb | pos_emb  (80 rows)
    take("ln_g", 2 * N_LAYERS + 1)                # 7 gammas           (8 rows)
    take("ln_b", 2 * N_LAYERS + 1)                # 7 betas            (8 rows)
    for l in range(N_LAYERS):
        take(f"wqkv{l}", N_EMBD)                  # (32, 96->128)
        take(f"wo{l}", N_EMBD + 1)                # wo rows 0..31, bo row 32
        take(f"w1{l}", N_EMBD + 1)                # w1 rows 0..31, b1 row 32
        take(f"w2{l}", FF_DIM + 1)                # w2 rows 0..127, b2 row 128
    take("lm", N_EMBD + 1)                        # lm_w rows 0..31, lm_b row 32
    return off, cur


SLAB_OFF, SLAB_ROWS = _slab_layout()              # SLAB_ROWS == 880


def _layernorm(h, g, b):
    mu = jnp.mean(h, axis=-1, keepdims=True)
    var = jnp.mean(jnp.square(h - mu), axis=-1, keepdims=True)
    return (h - mu) * jax.lax.rsqrt(var + LN_EPS) * g + b


def gpt_kernel(idx_ref, slab_ref, out_ref, *, seq_len):
    """Embedding + 3 transformer blocks + final LN + lm_head, all in VMEM.

    idx_ref  : (B*T, 128) int32 — token ids broadcast across lanes (lane-dense)
    slab_ref : (880, 128) f32   — single packed weight slab (see _slab_layout)
    out_ref  : (B*T, V_PAD) f32 — lane-dense padded logits
    """
    bt = out_ref.shape[0]
    scale = float(N_EMBD) ** -0.5      # reference scales by n_embd**-0.5 (bug kept)

    # Static div/mod by seq_len; power-of-two fast path avoids vector int div.
    if seq_len & (seq_len - 1) == 0:
        shift = seq_len.bit_length() - 1
        _div = lambda v: v >> shift
        _mod = lambda v: v & (seq_len - 1)
    else:
        _div = lambda v: v // seq_len
        _mod = lambda v: v % seq_len

    # ---- fused token + positional embedding via one one-hot matmul ----------
    k_tot = EMB_ROWS
    idx = idx_ref[:, :k_tot]                                     # (BT, 80) ids
    rows = jax.lax.broadcasted_iota(jnp.int32, (bt, k_tot), 0)
    cols = jax.lax.broadcasted_iota(jnp.int32, (bt, k_tot), 1)
    sel = (cols == idx) | (cols == VOCAB_SIZE + _mod(rows))      # two ones / row
    onehot = jnp.where(sel, 1.0, 0.0)
    e0 = SLAB_OFF["emb"]
    x = jnp.dot(onehot, slab_ref[e0:e0 + k_tot, :N_EMBD],
                preferred_element_type=jnp.float32)              # (BT, C)

    # ---- block-diagonal causal additive mask, built once ---------------------
    r = jax.lax.broadcasted_iota(jnp.int32, (bt, bt), 0)
    c = jax.lax.broadcasted_iota(jnp.int32, (bt, bt), 1)
    allowed = (_div(r) == _div(c)) & (_mod(c) <= _mod(r))
    mask_add = jnp.where(allowed, 0.0, NEG_INF)

    # ---- LayerNorm params loaded once ----------------------------------------
    n_ln = 2 * N_LAYERS + 1
    g0, b0 = SLAB_OFF["ln_g"], SLAB_OFF["ln_b"]
    g_all = slab_ref[g0:g0 + n_ln, :N_EMBD]                      # (7, C)
    b_all = slab_ref[b0:b0 + n_ln, :N_EMBD]

    for l in range(N_LAYERS):
        # ---- multi-head causal self-attention (pre-LN, residual) ------------
        h = _layernorm(x, g_all[2 * l:2 * l + 1, :], b_all[2 * l:2 * l + 1, :])
        qo = SLAB_OFF[f"wqkv{l}"]
        qkv = jnp.dot(h, slab_ref[qo:qo + N_EMBD, :],            # (32, 128) padded
                      preferred_element_type=jnp.float32)        # (BT, 128) lane-dense
        heads = []
        for hd in range(N_HEADS):
            o = hd * HEAD_SIZE
            qh = qkv[:, o:o + HEAD_SIZE]
            kh = qkv[:, N_EMBD + o:N_EMBD + o + HEAD_SIZE]
            vh = qkv[:, 2 * N_EMBD + o:2 * N_EMBD + o + HEAD_SIZE]
            # contract head dim of both -> (BT, BT); no explicit kh.T
            s = jax.lax.dot_general(qh, kh, (((1,), (1,)), ((), ())),
                                    preferred_element_type=jnp.float32)
            s = s * scale + mask_add
            m = jnp.max(s, axis=-1, keepdims=True)
            e = jnp.exp(s - m)
            # approx reciprocal runs on the EUP (~2^-12 rel err, inference OK)
            p = e * pl.reciprocal(jnp.sum(e, axis=-1, keepdims=True), approx=True)
            # TODO(synk): nn.Dropout on attention weights is identity (eval).
            heads.append(jnp.dot(p, vh, preferred_element_type=jnp.float32))
        # lane-concat of head outputs replaces 4 per-head projections with 1
        cat = jnp.concatenate(heads, axis=-1)                    # (BT, C)
        wo_off = SLAB_OFF[f"wo{l}"]
        sa = jnp.dot(cat, slab_ref[wo_off:wo_off + N_EMBD, :N_EMBD],
                     preferred_element_type=jnp.float32)
        x = x + sa + slab_ref[wo_off + N_EMBD:wo_off + N_EMBD + 1, :N_EMBD]

        # ---- feed-forward (pre-LN, residual) ---------------------------------
        h = _layernorm(x, g_all[2 * l + 1:2 * l + 2, :],
                       b_all[2 * l + 1:2 * l + 2, :])
        w1_off = SLAB_OFF[f"w1{l}"]
        h = jnp.dot(h, slab_ref[w1_off:w1_off + N_EMBD, :],      # (32, 128)
                    preferred_element_type=jnp.float32) \
            + slab_ref[w1_off + N_EMBD:w1_off + N_EMBD + 1, :]
        h = jnp.maximum(h, 0.0)
        w2_off = SLAB_OFF[f"w2{l}"]
        h = jnp.dot(h, slab_ref[w2_off:w2_off + FF_DIM, :N_EMBD],
                    preferred_element_type=jnp.float32) \
            + slab_ref[w2_off + FF_DIM:w2_off + FF_DIM + 1, :N_EMBD]
        x = x + h

    # ---- final LayerNorm + lm_head (lane-dense V_PAD store) ------------------
    x = _layernorm(x, g_all[n_ln - 1:n_ln, :], b_all[n_ln - 1:n_ln, :])
    lm_off = SLAB_OFF["lm"]
    out_ref[...] = jnp.dot(x, slab_ref[lm_off:lm_off + N_EMBD, :],
                           preferred_element_type=jnp.float32) \
                   + slab_ref[lm_off + N_EMBD:lm_off + N_EMBD + 1, :]


def init_params(key):
    ks = jax.random.split(key, 16)

    def nrm(k, shape, scl):
        return scl * jax.random.normal(k, shape, dtype=jnp.float32)

    return {
        "tok_emb": nrm(ks[0], (VOCAB_SIZE, N_EMBD), 1.0),
        "pos_emb": nrm(ks[1], (BLOCK_SIZE, N_EMBD), 1.0),
        "ln1_g": jnp.ones((N_LAYERS, N_EMBD), jnp.float32),
        "ln1_b": jnp.zeros((N_LAYERS, N_EMBD), jnp.float32),
        "wq": nrm(ks[2], (N_LAYERS, N_EMBD, N_EMBD), 0.1),
        "wk": nrm(ks[3], (N_LAYERS, N_EMBD, N_EMBD), 0.1),
        "wv": nrm(ks[4], (N_LAYERS, N_EMBD, N_EMBD), 0.1),
        "wo": nrm(ks[5], (N_LAYERS, N_EMBD, N_EMBD), 0.1),
        "bo": nrm(ks[6], (N_LAYERS, N_EMBD), 0.01),
        "ln2_g": jnp.ones((N_LAYERS, N_EMBD), jnp.float32),
        "ln2_b": jnp.zeros((N_LAYERS, N_EMBD), jnp.float32),
        "w1": nrm(ks[7], (N_LAYERS, N_EMBD, FF_DIM), 0.1),
        "b1": nrm(ks[8], (N_LAYERS, FF_DIM), 0.01),
        "w2": nrm(ks[9], (N_LAYERS, FF_DIM, N_EMBD), 0.1),
        "b2": nrm(ks[10], (N_LAYERS, N_EMBD), 0.01),
        "lnf_g": jnp.ones((1, N_EMBD), jnp.float32),
        "lnf_b": jnp.zeros((1, N_EMBD), jnp.float32),
        "lm_w": nrm(ks[11], (N_EMBD, VOCAB_SIZE), 0.1),
        "lm_b": nrm(ks[12], (1, VOCAB_SIZE), 0.01),
    }


def pack_params(p):
    """Host-side packing, run ONCE per weight set: 18 tensors -> one slab."""
    slab = jnp.zeros((SLAB_ROWS, LANE), jnp.float32)

    def put(s, name, mat, row=0):
        r0 = SLAB_OFF[name] + row
        return s.at[r0:r0 + mat.shape[0], :mat.shape[1]].set(mat)

    slab = put(slab, "emb",
               jnp.concatenate([p["tok_emb"], p["pos_emb"]], axis=0))   # (73, 32)

    g_rows, b_rows = [], []
    for l in range(N_LAYERS):
        g_rows += [p["ln1_g"][l], p["ln2_g"][l]]
        b_rows += [p["ln1_b"][l], p["ln2_b"][l]]
    g_rows.append(p["lnf_g"][0])
    b_rows.append(p["lnf_b"][0])
    slab = put(slab, "ln_g", jnp.stack(g_rows))                          # (7, 32)
    slab = put(slab, "ln_b", jnp.stack(b_rows))

    for l in range(N_LAYERS):
        wqkv = jnp.concatenate([p["wq"][l], p["wk"][l], p["wv"][l]], -1)  # (32, 96)
        slab = put(slab, f"wqkv{l}", wqkv)           # lanes 96..127 stay zero
        slab = put(slab, f"wo{l}", p["wo"][l])
        slab = put(slab, f"wo{l}", p["bo"][l][None, :], row=N_EMBD)
        slab = put(slab, f"w1{l}", p["w1"][l])
        slab = put(slab, f"w1{l}", p["b1"][l][None, :], row=N_EMBD)
        slab = put(slab, f"w2{l}", p["w2"][l])
        slab = put(slab, f"w2{l}", p["b2"][l][None, :], row=FF_DIM)

    slab = put(slab, "lm", p["lm_w"])                # lanes 65..127 stay zero
    slab = put(slab, "lm", p["lm_b"], row=N_EMBD)
    return slab


def _forward_impl(slab, idx):
    """Packed-weight forward: returns (B, T, VOCAB_SIZE) logits."""
    B, T = idx.shape
    bt = B * T
    # lane-dense int32 id block: ids broadcast across all 128 lanes
    idx_rows = jnp.broadcast_to(idx.reshape(bt, 1).astype(jnp.int32), (bt, LANE))

    kernel = functools.partial(gpt_kernel, seq_len=T)
    logits_pad = pl.pallas_call(
        kernel,
        out_shape=jax.ShapeDtypeStruct((bt, V_PAD), jnp.float32),
        in_specs=[pl.BlockSpec(memory_space=pltpu.MemorySpace.VMEM),
                  pl.BlockSpec(memory_space=pltpu.MemorySpace.VMEM)],
        out_specs=pl.BlockSpec(memory_space=pltpu.MemorySpace.VMEM),
    )(idx_rows, slab)

    # slice padded lanes off BEFORE any softmax/loss so padding can't leak in
    return logits_pad[:, :VOCAB_SIZE].reshape(B, T, VOCAB_SIZE)


bigram_logits = jax.jit(_forward_impl)


def bigram_forward(slab, idx, targets=None):
    """Matches BigramLanguageModel.forward: returns (logits, loss)."""
    logits = bigram_logits(slab, idx)
    if targets is None:
        return logits, None
    B, T = idx.shape
    lf = logits.reshape(B * T, VOCAB_SIZE)
    tf = targets.reshape(B * T)
    logp = jax.nn.log_softmax(lf, axis=-1)
    loss = -jnp.take_along_axis(logp, tf[:, None], axis=-1).mean()
    return logits, loss


def ref_forward(params, idx):
    """Pure-JAX reference for correctness checking."""
    B, T = idx.shape
    x = params["tok_emb"][idx] + params["pos_emb"][:T][None]
    causal = jnp.tril(jnp.ones((T, T), bool))
    scale = N_EMBD ** -0.5
    for l in range(N_LAYERS):
        h = _layernorm(x, params["ln1_g"][l], params["ln1_b"][l])
        q, k, v = h @ params["wq"][l], h @ params["wk"][l], h @ params["wv"][l]
        heads = []
        for hd in range(N_HEADS):
            s0, s1 = hd * HEAD_SIZE, (hd + 1) * HEAD_SIZE
            wei = jnp.einsum("btd,bsd->bts", q[..., s0:s1], k[..., s0:s1]) * scale
            wei = jnp.where(causal[None], wei, -1e30)
            wei = jax.nn.softmax(wei, axis=-1)
            heads.append(jnp.einsum("bts,bsd->btd", wei, v[..., s0:s1]))
        x = x + (jnp.concatenate(heads, -1) @ params["wo"][l] + params["bo"][l])
        h = _layernorm(x, params["ln2_g"][l], params["ln2_b"][l])
        h = jnp.maximum(h @ params["w1"][l] + params["b1"][l], 0.0)
        x = x + (h @ params["w2"][l] + params["b2"][l])
    x = _layernorm(x, params["lnf_g"][0], params["lnf_b"][0])
    return x @ params["lm_w"] + params["lm_b"][0]


if __name__ == "__main__":
    key = jax.random.PRNGKey(0)
    k_params, k_idx, k_tgt = jax.random.split(key, 3)
    params = init_params(k_params)
    slab = pack_params(params)            # packed ONCE, reused across calls

    B, T = 2, BLOCK_SIZE
    idx = jax.random.randint(k_idx, (B, T), 0, VOCAB_SIZE, dtype=jnp.int32)
    targets = jax.random.randint(k_tgt, (B, T), 0, VOCAB_SIZE, dtype=jnp.int32)

    logits, loss = bigram_forward(slab, idx)        # targets=None -> loss None
    logits = jax.block_until_ready(logits)
    assert logits.shape == (B, T, VOCAB_SIZE)
    assert loss is None

    _, loss2 = bigram_forward(slab, idx, targets)   # exercise the loss path
    loss2 = jax.block_until_ready(loss2)
    assert loss2.shape == () and bool(jnp.isfinite(loss2))

    ref = ref_forward(params, idx)
    err = float(jnp.max(jnp.abs(logits - ref)))
    assert jnp.allclose(logits, ref, rtol=5e-2, atol=5e-2), f"max err {err}"

    print("KERNEL_OK")
</pallas_src>

<mosaic_0001>
module attributes {stable_mosaic.version = 11 : i64} {
  func.func @gpt_kernel(%arg0: memref<16x128xi32, #tpu.memory_space<vmem>>, %arg1: memref<880x128xf32, #tpu.memory_space<vmem>>, %arg2: memref<16x128xf32, #tpu.memory_space<vmem>>) attributes {dimension_semantics = [], scalar_prefetch = 0 : i64, scratch_operands = 0 : i64, tpu.core_type = #tpu.core_type<tc>} {
    %c0 = arith.constant 0 : index
    %c0_0 = arith.constant 0 : index
    %0 = vector.load %arg0[%c0, %c0_0] : memref<16x128xi32, #tpu.memory_space<vmem>>, vector<16x80xi32>
    %1 = tpu.iota {dimensions = array<i32: 0>} : vector<16x80xi32>
    %2 = tpu.iota {dimensions = array<i32: 1>} : vector<16x80xi32>
    %3 = arith.cmpi eq, %2, %0 : vector<16x80xi32>
    %c7_i32 = arith.constant 7 : i32
    %4 = vector.broadcast %c7_i32 : i32 to vector<16x80xi32>
    %5 = arith.andi %1, %4 : vector<16x80xi32>
    %c65_i32 = arith.constant 65 : i32
    %6 = vector.broadcast %c65_i32 : i32 to vector<16x80xi32>
    %7 = arith.addi %6, %5 : vector<16x80xi32>
    %8 = arith.cmpi eq, %2, %7 : vector<16x80xi32>
    %9 = arith.ori %3, %8 : vector<16x80xi1>
    %cst = arith.constant 1.000000e+00 : f32
    %cst_1 = arith.constant 0.000000e+00 : f32
    %10 = vector.broadcast %cst : f32 to vector<16x80xf32>
    %11 = vector.broadcast %cst_1 : f32 to vector<16x80xf32>
    %12 = arith.select %9, %10, %11 : vector<16x80xi1>, vector<16x80xf32>
    %c0_2 = arith.constant 0 : index
    %c0_3 = arith.constant 0 : index
    %13 = vector.load %arg1[%c0_2, %c0_3] : memref<880x128xf32, #tpu.memory_space<vmem>>, vector<80x32xf32>
    %cst_4 = arith.constant dense<0.000000e+00> : vector<16x32xf32>
    %14 = tpu.matmul %12, %13, %cst_4 {dimension_numbers = #tpu.dot_dimension_numbers<[1], [0], [0], [1], [0, 0, 1, 1], [], []>} : vector<16x80xf32>, vector<80x32xf32>, vector<16x32xf32> -> vector<16x32xf32>
    %15 = tpu.iota {dimensions = array<i32: 0>} : vector<16x16xi32>
    %16 = tpu.iota {dimensions = array<i32: 1>} : vector<16x16xi32>
    %c3_i32 = arith.constant 3 : i32
    %17 = vector.broadcast %c3_i32 : i32 to vector<16x16xi32>
    %18 = arith.shrsi %15, %17 : vector<16x16xi32>
    %c3_i32_5 = arith.constant 3 : i32
    %19 = vector.broadcast %c3_i32_5 : i32 to vector<16x16xi32>
    %20 = arith.shrsi %16, %19 : vector<16x16xi32>
    %21 = arith.cmpi eq, %18, %20 : vector<16x16xi32>
    %c7_i32_6 = arith.constant 7 : i32
    %22 = vector.broadcast %c7_i32_6 : i32 to vector<16x16xi32>
    %23 = arith.andi %16, %22 : vector<16x16xi32>
    %c7_i32_7 = arith.constant 7 : i32
    %24 = vector.broadcast %c7_i32_7 : i32 to vector<16x16xi32>
    %25 = arith.andi %15, %24 : vector<16x16xi32>
    %26 = arith.cmpi sle, %23, %25 : vector<16x16xi32>
    %27 = arith.andi %21, %26 : vector<16x16xi1>
    %cst_8 = arith.constant 0.000000e+00 : f32
    %cst_9 = arith.constant -1.000000e+30 : f32
    %28 = vector.broadcast %cst_8 : f32 to vector<16x16xf32>
    %29 = vector.broadcast %cst_9 : f32 to vector<16x16xf32>
    %30 = arith.select %27, %28, %29 : vector<16x16xi1>, vector<16x16xf32>
    %c80 = arith.constant 80 : index
    %c0_10 = arith.constant 0 : index
    %31 = vector.load %arg1[%c80, %c0_10] : memref<880x128xf32, #tpu.memory_space<vmem>>, vector<7x32xf32>
    %c88 = arith.constant 88 : index
    %c0_11 = arith.constant 0 : index
    %32 = vector.load %arg1[%c88, %c0_11] : memref<880x128xf32, #tpu.memory_space<vmem>>, vector<7x32xf32>
    %33 = vector.extract_strided_slice %31 {offsets = [0, 0], sizes = [1, 32], strides = [1, 1]} : vector<7x32xf32> to vector<1x32xf32>
    %34 = vector.extract_strided_slice %32 {offsets = [0, 0], sizes = [1, 32], strides = [1, 1]} : vector<7x32xf32> to vector<1x32xf32>
    %cst_12 = arith.constant dense<0.000000e+00> : vector<16xf32>
    %35 = vector.multi_reduction <add>, %14, %cst_12 [1] : vector<16x32xf32> to vector<16xf32>
    %36 = vector.shape_cast %35 : vector<16xf32> to vector<16x1xf32>
    %cst_13 = arith.constant 3.200000e+01 : f32
    %37 = vector.broadcast %cst_13 : f32 to vector<16x1xf32>
    %38 = arith.divf %36, %37 : vector<16x1xf32>
    %39 = vector.broadcast %38 : vector<16x1xf32> to vector<16x32xf32>
    %40 = arith.subf %14, %39 : vector<16x32xf32>
    %41 = arith.mulf %40, %40 : vector<16x32xf32>
    %cst_14 = arith.constant dense<0.000000e+00> : vector<16xf32>
    %42 = vector.multi_reduction <add>, %41, %cst_14 [1] : vector<16x32xf32> to vector<16xf32>
    %43 = vector.shape_cast %42 : vector<16xf32> to vector<16x1xf32>
    %cst_15 = arith.constant 3.200000e+01 : f32
    %44 = vector.broadcast %cst_15 : f32 to vector<16x1xf32>
    %45 = arith.divf %43, %44 : vector<16x1xf32>
    %46 = vector.broadcast %38 : vector<16x1xf32> to vector<16x32xf32>
    %47 = arith.subf %14, %46 : vector<16x32xf32>
    %cst_16 = arith.constant 9.99999974E-6 : f32
    %48 = vector.broadcast %cst_16 : f32 to vector<16x1xf32>
    %49 = arith.addf %45, %48 : vector<16x1xf32>
    %50 = math.rsqrt %49 : vector<16x1xf32>
    %51 = vector.broadcast %50 : vector<16x1xf32> to vector<16x32xf32>
    %52 = arith.mulf %47, %51 : vector<16x32xf32>
    %53 = vector.broadcast %33 : vector<1x32xf32> to vector<16x32xf32>
    %54 = arith.mulf %52, %53 : vector<16x32xf32>
    %55 = vector.broadcast %34 : vector<1x32xf32> to vector<16x32xf32>
    %56 = arith.addf %54, %55 : vector<16x32xf32>
    %c96 = arith.constant 96 : index
    %c0_17 = arith.constant 0 : index
    %57 = vector.load %arg1[%c96, %c0_17] : memref<880x128xf32, #tpu.memory_space<vmem>>, vector<32x128xf32>
    %cst_18 = arith.constant dense<0.000000e+00> : vector<16x128xf32>
    %58 = tpu.matmul %56, %57, %cst_18 {dimension_numbers = #tpu.dot_dimension_numbers<[1], [0], [0], [1], [0, 0, 1, 1], [], []>} : vector<16x32xf32>, vector<32x128xf32>, vector<16x128xf32> -> vector<16x128xf32>
    %59 = vector.extract_strided_slice %58 {offsets = [0, 0], sizes = [16, 8], strides = [1, 1]} : vector<16x128xf32> to vector<16x8xf32>
    %60 = vector.extract_strided_slice %58 {offsets = [0, 32], sizes = [16, 8], strides = [1, 1]} : vector<16x128xf32> to vector<16x8xf32>
    %61 = vector.extract_strided_slice %58 {offsets = [0, 64], sizes = [16, 8], strides = [1, 1]} : vector<16x128xf32> to vector<16x8xf32>
    %cst_19 = arith.constant dense<0.000000e+00> : vector<16x16xf32>
    %62 = tpu.matmul %59, %60, %cst_19 {dimension_numbers = #tpu.dot_dimension_numbers<[1], [1], [0], [0], [0, 0, 1, 0], [], []>} : vector<16x8xf32>, vector<16x8xf32>, vector<16x16xf32> -> vector<16x16xf32>
    %cst_20 = arith.constant 0.176776692 : f32
    %63 = vector.broadcast %cst_20 : f32 to vector<16x16xf32>
    %64 = arith.mulf %62, %63 : vector<16x16xf32>
    %65 = arith.addf %64, %30 : vector<16x16xf32>
    %cst_21 = arith.constant dense<0xFF800000> : vector<16xf32>
    %66 = vector.multi_reduction <maximumf>, %65, %cst_21 [1] : vector<16x16xf32> to vector<16xf32>
    %67 = vector.shape_cast %66 : vector<16xf32> to vector<16x1xf32>
    %68 = vector.broadcast %67 : vector<16x1xf32> to vector<16x16xf32>
    %69 = arith.subf %65, %68 : vector<16x16xf32>
    %70 = math.exp %69 : vector<16x16xf32>
    %cst_22 = arith.constant dense<0.000000e+00> : vector<16xf32>
    %71 = vector.multi_reduction <add>, %70, %cst_22 [1] : vector<16x16xf32> to vector<16xf32>
    %72 = vector.shape_cast %71 : vector<16xf32> to vector<16x1xf32>
    %73 = tpu.reciprocal %72 {approx = true} : vector<16x1xf32> -> vector<16x1xf32>
    %74 = vector.broadcast %73 : vector<16x1xf32> to vector<16x16xf32>
    %75 = arith.mulf %70, %74 : vector<16x16xf32>
    %cst_23 = arith.constant dense<0.000000e+00> : vector<16x8xf32>
    %76 = tpu.matmul %75, %61, %cst_23 {dimension_numbers = #tpu.dot_dimension_numbers<[1], [0], [0], [1], [0, 0, 1, 1], [], []>} : vector<16x16xf32>, vector<16x8xf32>, vector<16x8xf32> -> vector<16x8xf32>
    %77 = vector.extract_strided_slice %58 {offsets = [0, 8], sizes = [16, 8], strides = [1, 1]} : vector<16x128xf32> to vector<16x8xf32>
    %78 = vector.extract_strided_slice %58 {offsets = [0, 40], sizes = [16, 8], strides = [1, 1]} : vector<16x128xf32> to vector<16x8xf32>
    %79 = vector.extract_strided_slice %58 {offsets = [0, 72], sizes = [16, 8], strides = [1, 1]} : vector<16x128xf32> to vector<16x8xf32>
    %cst_24 = arith.constant dense<0.000000e+00> : vector<16x16xf32>
    %80 = tpu.matmul %77, %78, %cst_24 {dimension_numbers = #tpu.dot_dimension_numbers<[1], [1], [0], [0], [0, 0, 1, 0], [], []>} : vector<16x8xf32>, vector<16x8xf32>, vector<16x16xf32> -> vector<16x16xf32>
    %cst_25 = arith.constant 0.176776692 : f32
    %81 = vector.broadcast %cst_25 : f32 to vector<16x16xf32>
    %82 = arith.mulf %80, %81 : vector<16x16xf32>
    %83 = arith.addf %82, %30 : vector<16x16xf32>
    %cst_26 = arith.constant dense<0xFF800000> : vector<16xf32>
    %84 = vector.multi_reduction <maximumf>, %83, %cst_26 [1] : vector<16x16xf32> to vector<16xf32>
    %85 = vector.shape_cast %84 : vector<16xf32> to vector<16x1xf32>
    %86 = vector.broadcast %85 : vector<16x1xf32> to vector<16x16xf32>
    %87 = arith.subf %83, %86 : vector<16x16xf32>
    %88 = math.exp %87 : vector<16x16xf32>
    %cst_27 = arith.constant dense<0.000000e+00> : vector<16xf32>
    %89 = vector.multi_reduction <add>, %88, %cst_27 [1] : vector<16x16xf32> to vector<16xf32>
    %90 = vector.shape_cast %89 : vector<16xf32> to vector<16x1xf32>
    %91 = tpu.reciprocal %90 {approx = true} : vector<16x1xf32> -> vector<16x1xf32>
    %92 = vector.broadcast %91 : vector<16x1xf32> to vector<16x16xf32>
    %93 = arith.mulf %88, %92 : vector<16x16xf32>
    %cst_28 = arith.constant dense<0.000000e+00> : vector<16x8xf32>
    %94 = tpu.matmul %93, %79, %cst_28 {dimension_numbers = #tpu.dot_dimension_numbers<[1], [0], [0], [1], [0, 0, 1, 1], [], []>} : vector<16x16xf32>, vector<16x8xf32>, vector<16x8xf32> -> vector<16x8xf32>
    %95 = vector.extract_strided_slice %58 {offsets = [0, 16], sizes = [16, 8], strides = [1, 1]} : vector<16x128xf32> to vector<16x8xf32>
    %96 = vector.extract_strided_slice %58 {offsets = [0, 48], sizes = [16, 8], strides = [1, 1]} : vector<16x128xf32> to vector<16x8xf32>
    %97 = vector.extract_strided_slice %58 {offsets = [0, 80], sizes = [16, 8], strides = [1, 1]} : vector<16x128xf32> to vector<16x8xf32>
    %cst_29 = arith.constant dense<0.000000e+00> : vector<16x16xf32>
    %98 = tpu.matmul %95, %96, %cst_29 {dimension_numbers = #tpu.dot_dimension_numbers<[1], [1], [0], [0], [0, 0, 1, 0], [], []>} : vector<16x8xf32>, vector<16x8xf32>, vector<16x16xf32> -> vector<16x16xf32>
    %cst_30 = arith.constant 0.176776692 : f32
    %99 = vector.broadcast %cst_30 : f32 to vector<16x16xf32>
    %100 = arith.mulf %98, %99 : vector<16x16xf32>
    %101 = arith.addf %100, %30 : vector<16x16xf32>
    %cst_31 = arith.constant dense<0xFF800000> : vector<16xf32>
    %102 = vector.multi_reduction <maximumf>, %101, %cst_31 [1] : vector<16x16xf32> to vector<16xf32>
    %103 = vector.shape_cast %102 : vector<16xf32> to vector<16x1xf32>
    %104 = vector.broadcast %103 : vector<16x1xf32> to vector<16x16xf32>
    %105 = arith.subf %101, %104 : vector<16x16xf32>
    %106 = math.exp %105 : vector<16x16xf32>
    %cst_32 = arith.constant dense<0.000000e+00> : vector<16xf32>
    %107 = vector.multi_reduction <add>, %106, %cst_32 [1] : vector<16x16xf32> to vector<16xf32>
    %108 = vector.shape_cast %107 : vector<16xf32> to vector<16x1xf32>
    %109 = tpu.reciprocal %108 {approx = true} : vector<16x1xf32> -> vector<16x1xf32>
    %110 = vector.broadcast %109 : vector<16x1xf32> to vector<16x16xf32>
    %111 = arith.mulf %106, %110 : vector<16x16xf32>
    %cst_33 = arith.constant dense<0.000000e+00> : vector<16x8xf32>
    %112 = tpu.matmul %111, %97, %cst_33 {dimension_numbers = #tpu.dot_dimension_numbers<[1], [0], [0], [1], [0, 0, 1, 1], [], []>} : vector<16x16xf32>, vector<16x8xf32>, vector<16x8xf32> -> vector<16x8xf32>
    %113 = vector.extract_strided_slice %58 {offsets = [0, 24], sizes = [16, 8], strides = [1, 1]} : vector<16x128xf32> to vector<16x8xf32>
    %114 = vector.extract_strided_slice %58 {offsets = [0, 56], sizes = [16, 8], strides = [1, 1]} : vector<16x128xf32> to vector<16x8xf32>
    %115 = vector.extract_strided_slice %58 {offsets = [0, 88], sizes = [16, 8], strides = [1, 1]} : vector<16x128xf32> to vector<16x8xf32>
    %cst_34 = arith.constant dense<0.000000e+00> : vector<16x16xf32>
    %116 = tpu.matmul %113, %114, %cst_34 {dimension_numbers = #tpu.dot_dimension_numbers<[1], [1], [0], [0], [0, 0, 1, 0], [], []>} : vector<16x8xf32>, vector<16x8xf32>, vector<16x16xf32> -> vector<16x16xf32>
    %cst_35 = arith.constant 0.176776692 : f32
    %117 = vector.broadcast %cst_35 : f32 to vector<16x16xf32>
    %118 = arith.mulf %116, %117 : vector<16x16xf32>
    %119 = arith.addf %118, %30 : vector<16x16xf32>
    %cst_36 = arith.constant dense<0xFF800000> : vector<16xf32>
    %120 = vector.multi_reduction <maximumf>, %119, %cst_36 [1] : vector<16x16xf32> to vector<16xf32>
    %121 = vector.shape_cast %120 : vector<16xf32> to vector<16x1xf32>
    %122 = vector.broadcast %121 : vector<16x1xf32> to vector<16x16xf32>
    %123 = arith.subf %119, %122 : vector<16x16xf32>
    %124 = math.exp %123 : vector<16x16xf32>
    %cst_37 = arith.constant dense<0.000000e+00> : vector<16xf32>
    %125 = vector.multi_reduction <add>, %124, %cst_37 [1] : vector<16x16xf32> to vector<16xf32>
    %126 = vector.shape_cast %125 : vector<16xf32> to vector<16x1xf32>
    %127 = tpu.reciprocal %126 {approx = true} : vector<16x1xf32> -> vector<16x1xf32>
    %128 = vector.broadcast %127 : vector<16x1xf32> to vector<16x16xf32>
    %129 = arith.mulf %124, %128 : vector<16x16xf32>
    %cst_38 = arith.constant dense<0.000000e+00> : vector<16x8xf32>
    %130 = tpu.matmul %129, %115, %cst_38 {dimension_numbers = #tpu.dot_dimension_numbers<[1], [0], [0], [1], [0, 0, 1, 1], [], []>} : vector<16x16xf32>, vector<16x8xf32>, vector<16x8xf32> -> vector<16x8xf32>
    %131 = tpu.concatenate %76, %94, %112, %130 in 1 : vector<16x8xf32>, vector<16x8xf32>, vector<16x8xf32>, vector<16x8xf32> -> vector<16x32xf32>
    %c128 = arith.constant 128 : index
    %c0_39 = arith.constant 0 : index
    %132 = vector.load %arg1[%c128, %c0_39] : memref<880x128xf32, #tpu.memory_space<vmem>>, vector<32x32xf32>
    %cst_40 = arith.constant dense<0.000000e+00> : vector<16x32xf32>
    %133 = tpu.matmul %131, %132, %cst_40 {dimension_numbers = #tpu.dot_dimension_numbers<[1], [0], [0], [1], [0, 0, 1, 1], [], []>} : vector<16x32xf32>, vector<32x32xf32>, vector<16x32xf32> -> vector<16x32xf32>
    %134 = arith.addf %14, %133 : vector<16x32xf32>
    %c160 = arith.constant 160 : index
    %c0_41 = arith.constant 0 : index
    %135 = vector.load %arg1[%c160, %c0_41] : memref<880x128xf32, #tpu.memory_space<vmem>>, vector<1x32xf32>
    %136 = vector.broadcast %135 : vector<1x32xf32> to vector<16x32xf32>
    %137 = arith.addf %134, %136 : vector<16x32xf32>
    %138 = vector.extract_strided_slice %31 {offsets = [1, 0], sizes = [1, 32], strides = [1, 1]} : vector<7x32xf32> to vector<1x32xf32>
    %139 = vector.extract_strided_slice %32 {offsets = [1, 0], sizes = [1, 32], strides = [1, 1]} : vector<7x32xf32> to vector<1x32xf32>
    %cst_42 = arith.constant dense<0.000000e+00> : vector<16xf32>
    %140 = vector.multi_reduction <add>, %137, %cst_42 [1] : vector<16x32xf32> to vector<16xf32>
    %141 = vector.shape_cast %140 : vector<16xf32> to vector<16x1xf32>
    %cst_43 = arith.constant 3.200000e+01 : f32
    %142 = vector.broadcast %cst_43 : f32 to vector<16x1xf32>
    %143 = arith.divf %141, %142 : vector<16x1xf32>
    %144 = vector.broadcast %143 : vector<16x1xf32> to vector<16x32xf32>
    %145 = arith.subf %137, %144 : vector<16x32xf32>
    %146 = arith.mulf %145, %145 : vector<16x32xf32>
    %cst_44 = arith.constant dense<0.000000e+00> : vector<16xf32>
    %147 = vector.multi_reduction <add>, %146, %cst_44 [1] : vector<16x32xf32> to vector<16xf32>
    %148 = vector.shape_cast %147 : vector<16xf32> to vector<16x1xf32>
    %cst_45 = arith.constant 3.200000e+01 : f32
    %149 = vector.broadcast %cst_45 : f32 to vector<16x1xf32>
    %150 = arith.divf %148, %149 : vector<16x1xf32>
    %151 = vector.broadcast %143 : vector<16x1xf32> to vector<16x32xf32>
    %152 = arith.subf %137, %151 : vector<16x32xf32>
    %cst_46 = arith.constant 9.99999974E-6 : f32
    %153 = vector.broadcast %cst_46 : f32 to vector<16x1xf32>
    %154 = arith.addf %150, %153 : vector<16x1xf32>
    %155 = math.rsqrt %154 : vector<16x1xf32>
    %156 = vector.broadcast %155 : vector<16x1xf32> to vector<16x32xf32>
    %157 = arith.mulf %152, %156 : vector<16x32xf32>
    %158 = vector.broadcast %138 : vector<1x32xf32> to vector<16x32xf32>
    %159 = arith.mulf %157, %158 : vector<16x32xf32>
    %160 = vector.broadcast %139 : vector<1x32xf32> to vector<16x32xf32>
    %161 = arith.addf %159, %160 : vector<16x32xf32>
    %c168 = arith.constant 168 : index
    %c0_47 = arith.constant 0 : index
    %162 = vector.load %arg1[%c168, %c0_47] : memref<880x128xf32, #tpu.memory_space<vmem>>, vector<32x128xf32>
    %cst_48 = arith.constant dense<0.000000e+00> : vector<16x128xf32>
    %163 = tpu.matmul %161, %162, %cst_48 {dimension_numbers = #tpu.dot_dimension_numbers<[1], [0], [0], [1], [0, 0, 1, 1], [], []>} : vector<16x32xf32>, vector<32x128xf32>, vector<16x128xf32> -> vector<16x128xf32>
    %c200 = arith.constant 200 : index
    %c0_49 = arith.constant 0 : index
    %164 = vector.load %arg1[%c200, %c0_49] : memref<880x128xf32, #tpu.memory_space<vmem>>, vector<1x128xf32>
    %165 = vector.broadcast %164 : vector<1x128xf32> to vector<16x128xf32>
    %166 = arith.addf %163, %165 : vector<16x128xf32>
    %cst_50 = arith.constant 0.000000e+00 : f32
    %167 = vector.broadcast %cst_50 : f32 to vector<16x128xf32>
    %168 = arith.maximumf %166, %167 : vector<16x128xf32>
    %c208 = arith.constant 208 : index
    %c0_51 = arith.constant 0 : index
    %169 = vector.load %arg1[%c208, %c0_51] : memref<880x128xf32, #tpu.memory_space<vmem>>, vector<128x32xf32>
    %cst_52 = arith.constant dense<0.000000e+00> : vector<16x32xf32>
    %170 = tpu.matmul %168, %169, %cst_52 {dimension_numbers = #tpu.dot_dimension_numbers<[1], [0], [0], [1], [0, 0, 1, 1], [], []>} : vector<16x128xf32>, vector<128x32xf32>, vector<16x32xf32> -> vector<16x32xf32>
    %c336 = arith.constant 336 : index
    %c0_53 = arith.constant 0 : index
    %171 = vector.load %arg1[%c336, %c0_53] : memref<880x128xf32, #tpu.memory_space<vmem>>, vector<1x32xf32>
    %172 = vector.broadcast %171 : vector<1x32xf32> to vector<16x32xf32>
    %173 = arith.addf %170, %172 : vector<16x32xf32>
    %174 = arith.addf %137, %173 : vector<16x32xf32>
    %175 = vector.extract_strided_slice %31 {offsets = [2, 0], sizes = [1, 32], strides = [1, 1]} : vector<7x32xf32> to vector<1x32xf32>
    %176 = vector.extract_strided_slice %32 {offsets = [2, 0], sizes = [1, 32], strides = [1, 1]} : vector<7x32xf32> to vector<1x32xf32>
    %cst_54 = arith.constant dense<0.000000e+00> : vector<16xf32>
    %177 = vector.multi_reduction <add>, %174, %cst_54 [1] : vector<16x32xf32> to vector<16xf32>
    %178 = vector.shape_cast %177 : vector<16xf32> to vector<16x1xf32>
    %cst_55 = arith.constant 3.200000e+01 : f32
    %179 = vector.broadcast %cst_55 : f32 to vector<16x1xf32>
    %180 = arith.divf %178, %179 : vector<16x1xf32>
    %181 = vector.broadcast %180 : vector<16x1xf32> to vector<16x32xf32>
    %182 = arith.subf %174, %181 : vector<16x32xf32>
    %183 = arith.mulf %182, %182 : vector<16x32xf32>
    %cst_56 = arith.constant dense<0.000000e+00> : vector<16xf32>
    %184 = vector.multi_reduction <add>, %183, %cst_56 [1] : vector<16x32xf32> to vector<16xf32>
    %185 = vector.shape_cast %184 : vector<16xf32> to vector<16x1xf32>
    %cst_57 = arith.constant 3.200000e+01 : f32
    %186 = vector.broadcast %cst_57 : f32 to vector<16x1xf32>
    %187 = arith.divf %185, %186 : vector<16x1xf32>
    %188 = vector.broadcast %180 : vector<16x1xf32> to vector<16x32xf32>
    %189 = arith.subf %174, %188 : vector<16x32xf32>
    %cst_58 = arith.constant 9.99999974E-6 : f32
    %190 = vector.broadcast %cst_58 : f32 to vector<16x1xf32>
    %191 = arith.addf %187, %190 : vector<16x1xf32>
    %192 = math.rsqrt %191 : vector<16x1xf32>
    %193 = vector.broadcast %192 : vector<16x1xf32> to vector<16x32xf32>
    %194 = arith.mulf %189, %193 : vector<16x32xf32>
    %195 = vector.broadcast %175 : vector<1x32xf32> to vector<16x32xf32>
    %196 = arith.mulf %194, %195 : vector<16x32xf32>
    %197 = vector.broadcast %176 : vector<1x32xf32> to vector<16x32xf32>
    %198 = arith.addf %196, %197 : vector<16x32xf32>
    %c344 = arith.constant 344 : index
    %c0_59 = arith.constant 0 : index
    %199 = vector.load %arg1[%c344, %c0_59] : memref<880x128xf32, #tpu.memory_space<vmem>>, vector<32x128xf32>
    %cst_60 = arith.constant dense<0.000000e+00> : vector<16x128xf32>
    %200 = tpu.matmul %198, %199, %cst_60 {dimension_numbers = #tpu.dot_dimension_numbers<[1], [0], [0], [1], [0, 0, 1, 1], [], []>} : vector<16x32xf32>, vector<32x128xf32>, vector<16x128xf32> -> vector<16x128xf32>
    %201 = vector.extract_strided_slice %200 {offsets = [0, 0], sizes = [16, 8], strides = [1, 1]} : vector<16x128xf32> to vector<16x8xf32>
    %202 = vector.extract_strided_slice %200 {offsets = [0, 32], sizes = [16, 8], strides = [1, 1]} : vector<16x128xf32> to vector<16x8xf32>
    %203 = vector.extract_strided_slice %200 {offsets = [0, 64], sizes = [16, 8], strides = [1, 1]} : vector<16x128xf32> to vector<16x8xf32>
    %cst_61 = arith.constant dense<0.000000e+00> : vector<16x16xf32>
    %204 = tpu.matmul %201, %202, %cst_61 {dimension_numbers = #tpu.dot_dimension_numbers<[1], [1], [0], [0], [0, 0, 1, 0], [], []>} : vector<16x8xf32>, vector<16x8xf32>, vector<16x16xf32> -> vector<16x16xf32>
    %cst_62 = arith.constant 0.176776692 : f32
    %205 = vector.broadcast %cst_62 : f32 to vector<16x16xf32>
    %206 = arith.mulf %204, %205 : vector<16x16xf32>
    %207 = arith.addf %206, %30 : vector<16x16xf32>
    %cst_63 = arith.constant dense<0xFF800000> : vector<16xf32>
    %208 = vector.multi_reduction <maximumf>, %207, %cst_63 [1] : vector<16x16xf32> to vector<16xf32>
    %209 = vector.shape_cast %208 : vector<16xf32> to vector<16x1xf32>
    %210 = vector.broadcast %209 : vector<16x1xf32> to vector<16x16xf32>
    %211 = arith.subf %207, %210 : vector<16x16xf32>
    %212 = math.exp %211 : vector<16x16xf32>
    %cst_64 = arith.constant dense<0.000000e+00> : vector<16xf32>
    %213 = vector.multi_reduction <add>, %212, %cst_64 [1] : vector<16x16xf32> to vector<16xf32>
    %214 = vector.shape_cast %213 : vector<16xf32> to vector<16x1xf32>
    %215 = tpu.reciprocal %214 {approx = true} : vector<16x1xf32> -> vector<16x1xf32>
    %216 = vector.broadcast %215 : vector<16x1xf32> to vector<16x16xf32>
    %217 = arith.mulf %212, %216 : vector<16x16xf32>
    %cst_65 = arith.constant dense<0.000000e+00> : vector<16x8xf32>
    %218 = tpu.matmul %217, %203, %cst_65 {dimension_numbers = #tpu.dot_dimension_numbers<[1], [0], [0], [1], [0, 0, 1, 1], [], []>} : vector<16x16xf32>, vector<16x8xf32>, vector<16x8xf32> -> vector<16x8xf32>
    %219 = vector.extract_strided_slice %200 {offsets = [0, 8], sizes = [16, 8], strides = [1, 1]} : vector<16x128xf32> to vector<16x8xf32>
    %220 = vector.extract_strided_slice %200 {offsets = [0, 40], sizes = [16, 8], strides = [1, 1]} : vector<16x128xf32> to vector<16x8xf32>
    %221 = vector.extract_strided_slice %200 {offsets = [0, 72], sizes = [16, 8], strides = [1, 1]} : vector<16x128xf32> to vector<16x8xf32>
    %cst_66 = arith.constant dense<0.000000e+00> : vector<16x16xf32>
    %222 = tpu.matmul %219, %220, %cst_66 {dimension_numbers = #tpu.dot_dimension_numbers<[1], [1], [0], [0], [0, 0, 1, 0], [], []>} : vector<16x8xf32>, vector<16x8xf32>, vector<16x16xf32> -> vector<16x16xf32>
    %cst_67 = arith.constant 0.176776692 : f32
    %223 = vector.broadcast %cst_67 : f32 to vector<16x16xf32>
    %224 = arith.mulf %222, %223 : vector<16x16xf32>
    %225 = arith.addf %224, %30 : vector<16x16xf32>
    %cst_68 = arith.constant dense<0xFF800000> : vector<16xf32>
    %226 = vector.multi_reduction <maximumf>, %225, %cst_68 [1] : vector<16x16xf32> to vector<16xf32>
    %227 = vector.shape_cast %226 : vector<16xf32> to vector<16x1xf32>
    %228 = vector.broadcast %227 : vector<16x1xf32> to vector<16x16xf32>
    %229 = arith.subf %225, %228 : vector<16x16xf32>
    %230 = math.exp %229 : vector<16x16xf32>
    %cst_69 = arith.constant dense<0.000000e+00> : vector<16xf32>
    %231 = vector.multi_reduction <add>, %230, %cst_69 [1] : vector<16x16xf32> to vector<16xf32>
    %232 = vector.shape_cast %231 : vector<16xf32> to vector<16x1xf32>
    %233 = tpu.reciprocal %232 {approx = true} : vector<16x1xf32> -> vector<16x1xf32>
    %234 = vector.broadcast %233 : vector<16x1xf32> to vector<16x16xf32>
    %235 = arith.mulf %230, %234 : vector<16x16xf32>
    %cst_70 = arith.constant dense<0.000000e+00> : vector<16x8xf32>
    %236 = tpu.matmul %235, %221, %cst_70 {dimension_numbers = #tpu.dot_dimension_numbers<[1], [0], [0], [1], [0, 0, 1, 1], [], []>} : vector<16x16xf32>, vector<16x8xf32>, vector<16x8xf32> -> vector<16x8xf32>
    %237 = vector.extract_strided_slice %200 {offsets = [0, 16], sizes = [16, 8], strides = [1, 1]} : vector<16x128xf32> to vector<16x8xf32>
    %238 = vector.extract_strided_slice %200 {offsets = [0, 48], sizes = [16, 8], strides = [1, 1]} : vector<16x128xf32> to vector<16x8xf32>
    %239 = vector.extract_strided_slice %200 {offsets = [0, 80], sizes = [16, 8], strides = [1, 1]} : vector<16x128xf32> to vector<16x8xf32>
    %cst_71 = arith.constant dense<0.000000e+00> : vector<16x16xf32>
    %240 = tpu.matmul %237, %238, %cst_71 {dimension_numbers = #tpu.dot_dimension_numbers<[1], [1], [0], [0], [0, 0, 1, 0], [], []>} : vector<16x8xf32>, vector<16x8xf32>, vector<16x16xf32> -> vector<16x16xf32>
    %cst_72 = arith.constant 0.176776692 : f32
    %241 = vector.broadcast %cst_72 : f32 to vector<16x16xf32>
    %242 = arith.mulf %240, %241 : vector<16x16xf32>
    %243 = arith.addf %242, %30 : vector<16x16xf32>
    %cst_73 = arith.constant dense<0xFF800000> : vector<16xf32>
    %244 = vector.multi_reduction <maximumf>, %243, %cst_73 [1] : vector<16x16xf32> to vector<16xf32>
    %245 = vector.shape_cast %244 : vector<16xf32> to vector<16x1xf32>
    %246 = vector.broadcast %245 : vector<16x1xf32> to vector<16x16xf32>
    %247 = arith.subf %243, %246 : vector<16x16xf32>
    %248 = math.exp %247 : vector<16x16xf32>
    %cst_74 = arith.constant dense<0.000000e+00> : vector<16xf32>
    %249 = vector.multi_reduction <add>, %248, %cst_74 [1] : vector<16x16xf32> to vector<16xf32>
    %250 = vector.shape_cast %249 : vector<16xf32> to vector<16x1xf32>
    %251 = tpu.reciprocal %250 {approx = true} : vector<16x1xf32> -> vector<16x1xf32>
    %252 = vector.broadcast %251 : vector<16x1xf32> to vector<16x16xf32>
    %253 = arith.mulf %248, %252 : vector<16x16xf32>
    %cst_75 = arith.constant dense<0.000000e+00> : vector<16x8xf32>
    %254 = tpu.matmul %253, %239, %cst_75 {dimension_numbers = #tpu.dot_dimension_numbers<[1], [0], [0], [1], [0, 0, 1, 1], [], []>} : vector<16x16xf32>, vector<16x8xf32>, vector<16x8xf32> -> vector<16x8xf32>
    %255 = vector.extract_strided_slice %200 {offsets = [0, 24], sizes = [16, 8], strides = [1, 1]} : vector<16x128xf32> to vector<16x8xf32>
    %256 = vector.extract_strided_slice %200 {offsets = [0, 56], sizes = [16, 8], strides = [1, 1]} : vector<16x128xf32> to vector<16x8xf32>
    %257 = vector.extract_strided_slice %200 {offsets = [0, 88], sizes = [16, 8], strides = [1, 1]} : vector<16x128xf32> to vector<16x8xf32>
    %cst_76 = arith.constant dense<0.000000e+00> : vector<16x16xf32>
    %258 = tpu.matmul %255, %256, %cst_76 {dimension_numbers = #tpu.dot_dimension_numbers<[1], [1], [0], [0], [0, 0, 1, 0], [], []>} : vector<16x8xf32>, vector<16x8xf32>, vector<16x16xf32> -> vector<16x16xf32>
    %cst_77 = arith.constant 0.176776692 : f32
    %259 = vector.broadcast %cst_77 : f32 to vector<16x16xf32>
    %260 = arith.mulf %258, %259 : vector<16x16xf32>
    %261 = arith.addf %260, %30 : vector<16x16xf32>
    %cst_78 = arith.constant dense<0xFF800000> : vector<16xf32>
    %262 = vector.multi_reduction <maximumf>, %261, %cst_78 [1] : vector<16x16xf32> to vector<16xf32>
    %263 = vector.shape_cast %262 : vector<16xf32> to vector<16x1xf32>
    %264 = vector.broadcast %263 : vector<16x1xf32> to vector<16x16xf32>
    %265 = arith.subf %261, %264 : vector<16x16xf32>
    %266 = math.exp %265 : vector<16x16xf32>
    %cst_79 = arith.constant dense<0.000000e+00> : vector<16xf32>
    %267 = vector.multi_reduction <add>, %266, %cst_79 [1] : vector<16x16xf32> to vector<16xf32>
    %268 = vector.shape_cast %267 : vector<16xf32> to vector<16x1xf32>
    %269 = tpu.reciprocal %268 {approx = true} : vector<16x1xf32> -> vector<16x1xf32>
    %270 = vector.broadcast %269 : vector<16x1xf32> to vector<16x16xf32>
    %271 = arith.mulf %266, %270 : vector<16x16xf32>
    %cst_80 = arith.constant dense<0.000000e+00> : vector<16x8xf32>
    %272 = tpu.matmul %271, %257, %cst_80 {dimension_numbers = #tpu.dot_dimension_numbers<[1], [0], [0], [1], [0, 0, 1, 1], [], []>} : vector<16x16xf32>, vector<16x8xf32>, vector<16x8xf32> -> vector<16x8xf32>
    %273 = tpu.concatenate %218, %236, %254, %272 in 1 : vector<16x8xf32>, vector<16x8xf32>, vector<16x8xf32>, vector<16x8xf32> -> vector<16x32xf32>
    %c376 = arith.constant 376 : index
    %c0_81 = arith.constant 0 : index
    %274 = vector.load %arg1[%c376, %c0_81] : memref<880x128xf32, #tpu.memory_space<vmem>>, vector<32x32xf32>
    %cst_82 = arith.constant dense<0.000000e+00> : vector<16x32xf32>
    %275 = tpu.matmul %273, %274, %cst_82 {dimension_numbers = #tpu.dot_dimension_numbers<[1], [0], [0], [1], [0, 0, 1, 1], [], []>} : vector<16x32xf32>, vector<32x32xf32>, vector<16x32xf32> -> vector<16x32xf32>
    %276 = arith.addf %174, %275 : vector<16x32xf32>
    %c408 = arith.constant 408 : index
    %c0_83 = arith.constant 0 : index
    %277 = vector.load %arg1[%c408, %c0_83] : memref<880x128xf32, #tpu.memory_space<vmem>>, vector<1x32xf32>
    %278 = vector.broadcast %277 : vector<1x32xf32> to vector<16x32xf32>
    %279 = arith.addf %276, %278 : vector<16x32xf32>
    %280 = vector.extract_strided_slice %31 {offsets = [3, 0], sizes = [1, 32], strides = [1, 1]} : vector<7x32xf32> to vector<1x32xf32>
    %281 = vector.extract_strided_slice %32 {offsets = [3, 0], sizes = [1, 32], strides = [1, 1]} : vector<7x32xf32> to vector<1x32xf32>
    %cst_84 = arith.constant dense<0.000000e+00> : vector<16xf32>
    %282 = vector.multi_reduction <add>, %279, %cst_84 [1] : vector<16x32xf32> to vector<16xf32>
    %283 = vector.shape_cast %282 : vector<16xf32> to vector<16x1xf32>
    %cst_85 = arith.constant 3.200000e+01 : f32
    %284 = vector.broadcast %cst_85 : f32 to vector<16x1xf32>
    %285 = arith.divf %283, %284 : vector<16x1xf32>
    %286 = vector.broadcast %285 : vector<16x1xf32> to vector<16x32xf32>
    %287 = arith.subf %279, %286 : vector<16x32xf32>
    %288 = arith.mulf %287, %287 : vector<16x32xf32>
    %cst_86 = arith.constant dense<0.000000e+00> : vector<16xf32>
    %289 = vector.multi_reduction <add>, %288, %cst_86 [1] : vector<16x32xf32> to vector<16xf32>
    %290 = vector.shape_cast %289 : vector<16xf32> to vector<16x1xf32>
    %cst_87 = arith.constant 3.200000e+01 : f32
    %291 = vector.broadcast %cst_87 : f32 to vector<16x1xf32>
    %292 = arith.divf %290, %291 : vector<16x1xf32>
    %293 = vector.broadcast %285 : vector<16x1xf32> to vector<16x32xf32>
    %294 = arith.subf %279, %293 : vector<16x32xf32>
    %cst_88 = arith.constant 9.99999974E-6 : f32
    %295 = vector.broadcast %cst_88 : f32 to vector<16x1xf32>
    %296 = arith.addf %292, %295 : vector<16x1xf32>
    %297 = math.rsqrt %296 : vector<16x1xf32>
    %298 = vector.broadcast %297 : vector<16x1xf32> to vector<16x32xf32>
    %299 = arith.mulf %294, %298 : vector<16x32xf32>
    %300 = vector.broadcast %280 : vector<1x32xf32> to vector<16x32xf32>
    %301 = arith.mulf %299, %300 : vector<16x32xf32>
    %302 = vector.broadcast %281 : vector<1x32xf32> to vector<16x32xf32>
    %303 = arith.addf %301, %302 : vector<16x32xf32>
    %c416 = arith.constant 416 : index
    %c0_89 = arith.constant 0 : index
    %304 = vector.load %arg1[%c416, %c0_89] : memref<880x128xf32, #tpu.memory_space<vmem>>, vector<32x128xf32>
    %cst_90 = arith.constant dense<0.000000e+00> : vector<16x128xf32>
    %305 = tpu.matmul %303, %304, %cst_90 {dimension_numbers = #tpu.dot_dimension_numbers<[1], [0], [0], [1], [0, 0, 1, 1], [], []>} : vector<16x32xf32>, vector<32x128xf32>, vector<16x128xf32> -> vector<16x128xf32>
    %c448 = arith.constant 448 : index
    %c0_91 = arith.constant 0 : index
    %306 = vector.load %arg1[%c448, %c0_91] : memref<880x128xf32, #tpu.memory_space<vmem>>, vector<1x128xf32>
    %307 = vector.broadcast %306 : vector<1x128xf32> to vector<16x128xf32>
    %308 = arith.addf %305, %307 : vector<16x128xf32>
    %cst_92 = arith.constant 0.000000e+00 : f32
    %309 = vector.broadcast %cst_92 : f32 to vector<16x128xf32>
    %310 = arith.maximumf %308, %309 : vector<16x128xf32>
    %c456 = arith.constant 456 : index
    %c0_93 = arith.constant 0 : index
    %311 = vector.load %arg1[%c456, %c0_93] : memref<880x128xf32, #tpu.memory_space<vmem>>, vector<128x32xf32>
    %cst_94 = arith.constant dense<0.000000e+00> : vector<16x32xf32>
    %312 = tpu.matmul %310, %311, %cst_94 {dimension_numbers = #tpu.dot_dimension_numbers<[1], [0], [0], [1], [0, 0, 1, 1], [], []>} : vector<16x128xf32>, vector<128x32xf32>, vector<16x32xf32> -> vector<16x32xf32>
    %c584 = arith.constant 584 : index
    %c0_95 = arith.constant 0 : index
    %313 = vector.load %arg1[%c584, %c0_95] : memref<880x128xf32, #tpu.memory_space<vmem>>, vector<1x32xf32>
    %314 = vector.broadcast %313 : vector<1x32xf32> to vector<16x32xf32>
    %315 = arith.addf %312, %314 : vector<16x32xf32>
    %316 = arith.addf %279, %315 : vector<16x32xf32>
    %317 = vector.extract_strided_slice %31 {offsets = [4, 0], sizes = [1, 32], strides = [1, 1]} : vector<7x32xf32> to vector<1x32xf32>
    %318 = vector.extract_strided_slice %32 {offsets = [4, 0], sizes = [1, 32], strides = [1, 1]} : vector<7x32xf32> to vector<1x32xf32>
    %cst_96 = arith.constant dense<0.000000e+00> : vector<16xf32>
    %319 = vector.multi_reduction <add>, %316, %cst_96 [1] : vector<16x32xf32> to vector<16xf32>
    %320 = vector.shape_cast %319 : vector<16xf32> to vector<16x1xf32>
    %cst_97 = arith.constant 3.200000e+01 : f32
    %321 = vector.broadcast %cst_97 : f32 to vector<16x1xf32>
    %322 = arith.divf %320, %321 : vector<16x1xf32>
    %323 = vector.broadcast %322 : vector<16x1xf32> to vector<16x32xf32>
    %324 = arith.subf %316, %323 : vector<16x32xf32>
    %325 = arith.mulf %324, %324 : vector<16x32xf32>
    %cst_98 = arith.constant dense<0.000000e+00> : vector<16xf32>
    %326 = vector.multi_reduction <add>, %325, %cst_98 [1] : vector<16x32xf32> to vector<16xf32>
    %327 = vector.shape_cast %326 : vector<16xf32> to vector<16x1xf32>
    %cst_99 = arith.constant 3.200000e+01 : f32
    %328 = vector.broadcast %cst_99 : f32 to vector<16x1xf32>
    %329 = arith.divf %327, %328 : vector<16x1xf32>
    %330 = vector.broadcast %322 : vector<16x1xf32> to vector<16x32xf32>
    %331 = arith.subf %316, %330 : vector<16x32xf32>
    %cst_100 = arith.constant 9.99999974E-6 : f32
    %332 = vector.broadcast %cst_100 : f32 to vector<16x1xf32>
    %333 = arith.addf %329, %332 : vector<16x1xf32>
    %334 = math.rsqrt %333 : vector<16x1xf32>
    %335 = vector.broadcast %334 : vector<16x1xf32> to vector<16x32xf32>
    %336 = arith.mulf %331, %335 : vector<16x32xf32>
    %337 = vector.broadcast %317 : vector<1x32xf32> to vector<16x32xf32>
    %338 = arith.mulf %336, %337 : vector<16x32xf32>
    %339 = vector.broadcast %318 : vector<1x32xf32> to vector<16x32xf32>
    %340 = arith.addf %338, %339 : vector<16x32xf32>
    %c592 = arith.constant 592 : index
    %c0_101 = arith.constant 0 : index
    %341 = vector.load %arg1[%c592, %c0_101] : memref<880x128xf32, #tpu.memory_space<vmem>>, vector<32x128xf32>
    %cst_102 = arith.constant dense<0.000000e+00> : vector<16x128xf32>
    %342 = tpu.matmul %340, %341, %cst_102 {dimension_numbers = #tpu.dot_dimension_numbers<[1], [0], [0], [1], [0, 0, 1, 1], [], []>} : vector<16x32xf32>, vector<32x128xf32>, vector<16x128xf32> -> vector<16x128xf32>
    %343 = vector.extract_strided_slice %342 {offsets = [0, 0], sizes = [16, 8], strides = [1, 1]} : vector<16x128xf32> to vector<16x8xf32>
    %344 = vector.extract_strided_slice %342 {offsets = [0, 32], sizes = [16, 8], strides = [1, 1]} : vector<16x128xf32> to vector<16x8xf32>
    %345 = vector.extract_strided_slice %342 {offsets = [0, 64], sizes = [16, 8], strides = [1, 1]} : vector<16x128xf32> to vector<16x8xf32>
    %cst_103 = arith.constant dense<0.000000e+00> : vector<16x16xf32>
    %346 = tpu.matmul %343, %344, %cst_103 {dimension_numbers = #tpu.dot_dimension_numbers<[1], [1], [0], [0], [0, 0, 1, 0], [], []>} : vector<16x8xf32>, vector<16x8xf32>, vector<16x16xf32> -> vector<16x16xf32>
    %cst_104 = arith.constant 0.176776692 : f32
    %347 = vector.broadcast %cst_104 : f32 to vector<16x16xf32>
    %348 = arith.mulf %346, %347 : vector<16x16xf32>
    %349 = arith.addf %348, %30 : vector<16x16xf32>
    %cst_105 = arith.constant dense<0xFF800000> : vector<16xf32>
    %350 = vector.multi_reduction <maximumf>, %349, %cst_105 [1] : vector<16x16xf32> to vector<16xf32>
    %351 = vector.shape_cast %350 : vector<16xf32> to vector<16x1xf32>
    %352 = vector.broadcast %351 : vector<16x1xf32> to vector<16x16xf32>
    %353 = arith.subf %349, %352 : vector<16x16xf32>
    %354 = math.exp %353 : vector<16x16xf32>
    %cst_106 = arith.constant dense<0.000000e+00> : vector<16xf32>
    %355 = vector.multi_reduction <add>, %354, %cst_106 [1] : vector<16x16xf32> to vector<16xf32>
    %356 = vector.shape_cast %355 : vector<16xf32> to vector<16x1xf32>
    %357 = tpu.reciprocal %356 {approx = true} : vector<16x1xf32> -> vector<16x1xf32>
    %358 = vector.broadcast %357 : vector<16x1xf32> to vector<16x16xf32>
    %359 = arith.mulf %354, %358 : vector<16x16xf32>
    %cst_107 = arith.constant dense<0.000000e+00> : vector<16x8xf32>
    %360 = tpu.matmul %359, %345, %cst_107 {dimension_numbers = #tpu.dot_dimension_numbers<[1], [0], [0], [1], [0, 0, 1, 1], [], []>} : vector<16x16xf32>, vector<16x8xf32>, vector<16x8xf32> -> vector<16x8xf32>
    %361 = vector.extract_strided_slice %342 {offsets = [0, 8], sizes = [16, 8], strides = [1, 1]} : vector<16x128xf32> to vector<16x8xf32>
    %362 = vector.extract_strided_slice %342 {offsets = [0, 40], sizes = [16, 8], strides = [1, 1]} : vector<16x128xf32> to vector<16x8xf32>
    %363 = vector.extract_strided_slice %342 {offsets = [0, 72], sizes = [16, 8], strides = [1, 1]} : vector<16x128xf32> to vector<16x8xf32>
    %cst_108 = arith.constant dense<0.000000e+00> : vector<16x16xf32>
    %364 = tpu.matmul %361, %362, %cst_108 {dimension_numbers = #tpu.dot_dimension_numbers<[1], [1], [0], [0], [0, 0, 1, 0], [], []>} : vector<16x8xf32>, vector<16x8xf32>, vector<16x16xf32> -> vector<16x16xf32>
    %cst_109 = arith.constant 0.176776692 : f32
    %365 = vector.broadcast %cst_109 : f32 to vector<16x16xf32>
    %366 = arith.mulf %364, %365 : vector<16x16xf32>
    %367 = arith.addf %366, %30 : vector<16x16xf32>
    %cst_110 = arith.constant dense<0xFF800000> : vector<16xf32>
    %368 = vector.multi_reduction <maximumf>, %367, %cst_110 [1] : vector<16x16xf32> to vector<16xf32>
    %369 = vector.shape_cast %368 : vector<16xf32> to vector<16x1xf32>
    %370 = vector.broadcast %369 : vector<16x1xf32> to vector<16x16xf32>
    %371 = arith.subf %367, %370 : vector<16x16xf32>
    %372 = math.exp %371 : vector<16x16xf32>
    %cst_111 = arith.constant dense<0.000000e+00> : vector<16xf32>
    %373 = vector.multi_reduction <add>, %372, %cst_111 [1] : vector<16x16xf32> to vector<16xf32>
    %374 = vector.shape_cast %373 : vector<16xf32> to vector<16x1xf32>
    %375 = tpu.reciprocal %374 {approx = true} : vector<16x1xf32> -> vector<16x1xf32>
    %376 = vector.broadcast %375 : vector<16x1xf32> to vector<16x16xf32>
    %377 = arith.mulf %372, %376 : vector<16x16xf32>
    %cst_112 = arith.constant dense<0.000000e+00> : vector<16x8xf32>
    %378 = tpu.matmul %377, %363, %cst_112 {dimension_numbers = #tpu.dot_dimension_numbers<[1], [0], [0], [1], [0, 0, 1, 1], [], []>} : vector<16x16xf32>, vector<16x8xf32>, vector<16x8xf32> -> vector<16x8xf32>
    %379 = vector.extract_strided_slice %342 {offsets = [0, 16], sizes = [16, 8], strides = [1, 1]} : vector<16x128xf32> to vector<16x8xf32>
    %380 = vector.extract_strided_slice %342 {offsets = [0, 48], sizes = [16, 8], strides = [1, 1]} : vector<16x128xf32> to vector<16x8xf32>
    %381 = vector.extract_strided_slice %342 {offsets = [0, 80], sizes = [16, 8], strides = [1, 1]} : vector<16x128xf32> to vector<16x8xf32>
    %cst_113 = arith.constant dense<0.000000e+00> : vector<16x16xf32>
    %382 = tpu.matmul %379, %380, %cst_113 {dimension_numbers = #tpu.dot_dimension_numbers<[1], [1], [0], [0], [0, 0, 1, 0], [], []>} : vector<16x8xf32>, vector<16x8xf32>, vector<16x16xf32> -> vector<16x16xf32>
    %cst_114 = arith.constant 0.176776692 : f32
    %383 = vector.broadcast %cst_114 : f32 to vector<16x16xf32>
    %384 = arith.mulf %382, %383 : vector<16x16xf32>
    %385 = arith.addf %384, %30 : vector<16x16xf32>
    %cst_115 = arith.constant dense<0xFF800000> : vector<16xf32>
    %386 = vector.multi_reduction <maximumf>, %385, %cst_115 [1] : vector<16x16xf32> to vector<16xf32>
    %387 = vector.shape_cast %386 : vector<16xf32> to vector<16x1xf32>
    %388 = vector.broadcast %387 : vector<16x1xf32> to vector<16x16xf32>
    %389 = arith.subf %385, %388 : vector<16x16xf32>
    %390 = math.exp %389 : vector<16x16xf32>
    %cst_116 = arith.constant dense<0.000000e+00> : vector<16xf32>
    %391 = vector.multi_reduction <add>, %390, %cst_116 [1] : vector<16x16xf32> to vector<16xf32>
    %392 = vector.shape_cast %391 : vector<16xf32> to vector<16x1xf32>
    %393 = tpu.reciprocal %392 {approx = true} : vector<16x1xf32> -> vector<16x1xf32>
    %394 = vector.broadcast %393 : vector<16x1xf32> to vector<16x16xf32>
    %395 = arith.mulf %390, %394 : vector<16x16xf32>
    %cst_117 = arith.constant dense<0.000000e+00> : vector<16x8xf32>
    %396 = tpu.matmul %395, %381, %cst_117 {dimension_numbers = #tpu.dot_dimension_numbers<[1], [0], [0], [1], [0, 0, 1, 1], [], []>} : vector<16x16xf32>, vector<16x8xf32>, vector<16x8xf32> -> vector<16x8xf32>
    %397 = vector.extract_strided_slice %342 {offsets = [0, 24], sizes = [16, 8], strides = [1, 1]} : vector<16x128xf32> to vector<16x8xf32>
    %398 = vector.extract_strided_slice %342 {offsets = [0, 56], sizes = [16, 8], strides = [1, 1]} : vector<16x128xf32> to vector<16x8xf32>
    %399 = vector.extract_strided_slice %342 {offsets = [0, 88], sizes = [16, 8], strides = [1, 1]} : vector<16x128xf32> to vector<16x8xf32>
    %cst_118 = arith.constant dense<0.000000e+00> : vector<16x16xf32>
    %400 = tpu.matmul %397, %398, %cst_118 {dimension_numbers = #tpu.dot_dimension_numbers<[1], [1], [0], [0], [0, 0, 1, 0], [], []>} : vector<16x8xf32>, vector<16x8xf32>, vector<16x16xf32> -> vector<16x16xf32>
    %cst_119 = arith.constant 0.176776692 : f32
    %401 = vector.broadcast %cst_119 : f32 to vector<16x16xf32>
    %402 = arith.mulf %400, %401 : vector<16x16xf32>
    %403 = arith.addf %402, %30 : vector<16x16xf32>
    %cst_120 = arith.constant dense<0xFF800000> : vector<16xf32>
    %404 = vector.multi_reduction <maximumf>, %403, %cst_120 [1] : vector<16x16xf32> to vector<16xf32>
    %405 = vector.shape_cast %404 : vector<16xf32> to vector<16x1xf32>
    %406 = vector.broadcast %405 : vector<16x1xf32> to vector<16x16xf32>
    %407 = arith.subf %403, %406 : vector<16x16xf32>
    %408 = math.exp %407 : vector<16x16xf32>
    %cst_121 = arith.constant dense<0.000000e+00> : vector<16xf32>
    %409 = vector.multi_reduction <add>, %408, %cst_121 [1] : vector<16x16xf32> to vector<16xf32>
    %410 = vector.shape_cast %409 : vector<16xf32> to vector<16x1xf32>
    %411 = tpu.reciprocal %410 {approx = true} : vector<16x1xf32> -> vector<16x1xf32>
    %412 = vector.broadcast %411 : vector<16x1xf32> to vector<16x16xf32>
    %413 = arith.mulf %408, %412 : vector<16x16xf32>
    %cst_122 = arith.constant dense<0.000000e+00> : vector<16x8xf32>
    %414 = tpu.matmul %413, %399, %cst_122 {dimension_numbers = #tpu.dot_dimension_numbers<[1], [0], [0], [1], [0, 0, 1, 1], [], []>} : vector<16x16xf32>, vector<16x8xf32>, vector<16x8xf32> -> vector<16x8xf32>
    %415 = tpu.concatenate %360, %378, %396, %414 in 1 : vector<16x8xf32>, vector<16x8xf32>, vector<16x8xf32>, vector<16x8xf32> -> vector<16x32xf32>
    %c624 = arith.constant 624 : index
    %c0_123 = arith.constant 0 : index
    %416 = vector.load %arg1[%c624, %c0_123] : memref<880x128xf32, #tpu.memory_space<vmem>>, vector<32x32xf32>
    %cst_124 = arith.constant dense<0.000000e+00> : vector<16x32xf32>
    %417 = tpu.matmul %415, %416, %cst_124 {dimension_numbers = #tpu.dot_dimension_numbers<[1], [0], [0], [1], [0, 0, 1, 1], [], []>} : vector<16x32xf32>, vector<32x32xf32>, vector<16x32xf32> -> vector<16x32xf32>
    %418 = arith.addf %316, %417 : vector<16x32xf32>
    %c656 = arith.constant 656 : index
    %c0_125 = arith.constant 0 : index
    %419 = vector.load %arg1[%c656, %c0_125] : memref<880x128xf32, #tpu.memory_space<vmem>>, vector<1x32xf32>
    %420 = vector.broadcast %419 : vector<1x32xf32> to vector<16x32xf32>
    %421 = arith.addf %418, %420 : vector<16x32xf32>
    %422 = vector.extract_strided_slice %31 {offsets = [5, 0], sizes = [1, 32], strides = [1, 1]} : vector<7x32xf32> to vector<1x32xf32>
    %423 = vector.extract_strided_slice %32 {offsets = [5, 0], sizes = [1, 32], strides = [1, 1]} : vector<7x32xf32> to vector<1x32xf32>
    %cst_126 = arith.constant dense<0.000000e+00> : vector<16xf32>
    %424 = vector.multi_reduction <add>, %421, %cst_126 [1] : vector<16x32xf32> to vector<16xf32>
    %425 = vector.shape_cast %424 : vector<16xf32> to vector<16x1xf32>
    %cst_127 = arith.constant 3.200000e+01 : f32
    %426 = vector.broadcast %cst_127 : f32 to vector<16x1xf32>
    %427 = arith.divf %425, %426 : vector<16x1xf32>
    %428 = vector.broadcast %427 : vector<16x1xf32> to vector<16x32xf32>
    %429 = arith.subf %421, %428 : vector<16x32xf32>
    %430 = arith.mulf %429, %429 : vector<16x32xf32>
    %cst_128 = arith.constant dense<0.000000e+00> : vector<16xf32>
    %431 = vector.multi_reduction <add>, %430, %cst_128 [1] : vector<16x32xf32> to vector<16xf32>
    %432 = vector.shape_cast %431 : vector<16xf32> to vector<16x1xf32>
    %cst_129 = arith.constant 3.200000e+01 : f32
    %433 = vector.broadcast %cst_129 : f32 to vector<16x1xf32>
    %434 = arith.divf %432, %433 : vector<16x1xf32>
    %435 = vector.broadcast %427 : vector<16x1xf32> to vector<16x32xf32>
    %436 = arith.subf %421, %435 : vector<16x32xf32>
    %cst_130 = arith.constant 9.99999974E-6 : f32
    %437 = vector.broadcast %cst_130 : f32 to vector<16x1xf32>
    %438 = arith.addf %434, %437 : vector<16x1xf32>
    %439 = math.rsqrt %438 : vector<16x1xf32>
    %440 = vector.broadcast %439 : vector<16x1xf32> to vector<16x32xf32>
    %441 = arith.mulf %436, %440 : vector<16x32xf32>
    %442 = vector.broadcast %422 : vector<1x32xf32> to vector<16x32xf32>
    %443 = arith.mulf %441, %442 : vector<16x32xf32>
    %444 = vector.broadcast %423 : vector<1x32xf32> to vector<16x32xf32>
    %445 = arith.addf %443, %444 : vector<16x32xf32>
    %c664 = arith.constant 664 : index
    %c0_131 = arith.constant 0 : index
    %446 = vector.load %arg1[%c664, %c0_131] : memref<880x128xf32, #tpu.memory_space<vmem>>, vector<32x128xf32>
    %cst_132 = arith.constant dense<0.000000e+00> : vector<16x128xf32>
    %447 = tpu.matmul %445, %446, %cst_132 {dimension_numbers = #tpu.dot_dimension_numbers<[1], [0], [0], [1], [0, 0, 1, 1], [], []>} : vector<16x32xf32>, vector<32x128xf32>, vector<16x128xf32> -> vector<16x128xf32>
    %c696 = arith.constant 696 : index
    %c0_133 = arith.constant 0 : index
    %448 = vector.load %arg1[%c696, %c0_133] : memref<880x128xf32, #tpu.memory_space<vmem>>, vector<1x128xf32>
    %449 = vector.broadcast %448 : vector<1x128xf32> to vector<16x128xf32>
    %450 = arith.addf %447, %449 : vector<16x128xf32>
    %cst_134 = arith.constant 0.000000e+00 : f32
    %451 = vector.broadcast %cst_134 : f32 to vector<16x128xf32>
    %452 = arith.maximumf %450, %451 : vector<16x128xf32>
    %c704 = arith.constant 704 : index
    %c0_135 = arith.constant 0 : index
    %453 = vector.load %arg1[%c704, %c0_135] : memref<880x128xf32, #tpu.memory_space<vmem>>, vector<128x32xf32>
    %cst_136 = arith.constant dense<0.000000e+00> : vector<16x32xf32>
    %454 = tpu.matmul %452, %453, %cst_136 {dimension_numbers = #tpu.dot_dimension_numbers<[1], [0], [0], [1], [0, 0, 1, 1], [], []>} : vector<16x128xf32>, vector<128x32xf32>, vector<16x32xf32> -> vector<16x32xf32>
    %c832 = arith.constant 832 : index
    %c0_137 = arith.constant 0 : index
    %455 = vector.load %arg1[%c832, %c0_137] : memref<880x128xf32, #tpu.memory_space<vmem>>, vector<1x32xf32>
    %456 = vector.broadcast %455 : vector<1x32xf32> to vector<16x32xf32>
    %457 = arith.addf %454, %456 : vector<16x32xf32>
    %458 = arith.addf %421, %457 : vector<16x32xf32>
    %459 = vector.extract_strided_slice %31 {offsets = [6, 0], sizes = [1, 32], strides = [1, 1]} : vector<7x32xf32> to vector<1x32xf32>
    %460 = vector.extract_strided_slice %32 {offsets = [6, 0], sizes = [1, 32], strides = [1, 1]} : vector<7x32xf32> to vector<1x32xf32>
    %cst_138 = arith.constant dense<0.000000e+00> : vector<16xf32>
    %461 = vector.multi_reduction <add>, %458, %cst_138 [1] : vector<16x32xf32> to vector<16xf32>
    %462 = vector.shape_cast %461 : vector<16xf32> to vector<16x1xf32>
    %cst_139 = arith.constant 3.200000e+01 : f32
    %463 = vector.broadcast %cst_139 : f32 to vector<16x1xf32>
    %464 = arith.divf %462, %463 : vector<16x1xf32>
    %465 = vector.broadcast %464 : vector<16x1xf32> to vector<16x32xf32>
    %466 = arith.subf %458, %465 : vector<16x32xf32>
    %467 = arith.mulf %466, %466 : vector<16x32xf32>
    %cst_140 = arith.constant dense<0.000000e+00> : vector<16xf32>
    %468 = vector.multi_reduction <add>, %467, %cst_140 [1] : vector<16x32xf32> to vector<16xf32>
    %469 = vector.shape_cast %468 : vector<16xf32> to vector<16x1xf32>
    %cst_141 = arith.constant 3.200000e+01 : f32
    %470 = vector.broadcast %cst_141 : f32 to vector<16x1xf32>
    %471 = arith.divf %469, %470 : vector<16x1xf32>
    %472 = vector.broadcast %464 : vector<16x1xf32> to vector<16x32xf32>
    %473 = arith.subf %458, %472 : vector<16x32xf32>
    %cst_142 = arith.constant 9.99999974E-6 : f32
    %474 = vector.broadcast %cst_142 : f32 to vector<16x1xf32>
    %475 = arith.addf %471, %474 : vector<16x1xf32>
    %476 = math.rsqrt %475 : vector<16x1xf32>
    %477 = vector.broadcast %476 : vector<16x1xf32> to vector<16x32xf32>
    %478 = arith.mulf %473, %477 : vector<16x32xf32>
    %479 = vector.broadcast %459 : vector<1x32xf32> to vector<16x32xf32>
    %480 = arith.mulf %478, %479 : vector<16x32xf32>
    %481 = vector.broadcast %460 : vector<1x32xf32> to vector<16x32xf32>
    %482 = arith.addf %480, %481 : vector<16x32xf32>
    %c840 = arith.constant 840 : index
    %c0_143 = arith.constant 0 : index
    %483 = vector.load %arg1[%c840, %c0_143] : memref<880x128xf32, #tpu.memory_space<vmem>>, vector<32x128xf32>
    %cst_144 = arith.constant dense<0.000000e+00> : vector<16x128xf32>
    %484 = tpu.matmul %482, %483, %cst_144 {dimension_numbers = #tpu.dot_dimension_numbers<[1], [0], [0], [1], [0, 0, 1, 1], [], []>} : vector<16x32xf32>, vector<32x128xf32>, vector<16x128xf32> -> vector<16x128xf32>
    %c872 = arith.constant 872 : index
    %c0_145 = arith.constant 0 : index
    %485 = vector.load %arg1[%c872, %c0_145] : memref<880x128xf32, #tpu.memory_space<vmem>>, vector<1x128xf32>
    %486 = vector.broadcast %485 : vector<1x128xf32> to vector<16x128xf32>
    %487 = arith.addf %484, %486 : vector<16x128xf32>
    %c0_146 = arith.constant 0 : index
    %c0_147 = arith.constant 0 : index
    %488 = vector.load %arg2[%c0_146, %c0_147] : memref<16x128xf32, #tpu.memory_space<vmem>>, vector<16x128xf32>
    tpu.vector_store %arg2[%c0_146, %c0_147], %487 {strides = array<i32>} : memref<16x128xf32, #tpu.memory_space<vmem>>, vector<16x128xf32>,
    return
  }
}

</mosaic_0001>

<llo_original>
// kernel: _forward_impl.1
$region0: #{_forward_impl.1}
  #allocation0 [shape = 'u32[]', space=smem, size = 0x4, offset = 0x4, fixed_abs, tag = 'smem constant byte address 0x4 - core index']
  #allocation1 [shape = 'u32[144,128]{1,0:T(1,128)}', space=vmem, size = 0x12000, scoped, tag = 'internal scratch']
  %s0 = inlined_call_operand.vmem [shape: s32[16,128], index: 0, kind: input, shape index: {}]
  %s1 = inlined_call_operand.hbm [shape: f32[880,128], index: 1, kind: input, shape index: {}]
  %s2 = inlined_call_operand.vmem [shape: f32[16,128], index: 2, kind: output, shape index: {}]
  %s3 = sld [smem:[#allocation0]]
  $region22: #{_forward_impl.1} parent=0
    _
  %s5 = ssub.s32 1, %s3
  %s6 = scalar_select 0, %s5, %s3
  $region1: #{_forward_impl.1} parent=0
    #allocation2 [shape = 'u8[450560]{0}', space=vmem, size = 0x6e000, scoped, tag = 'input window, operand 1, single buffered']
    #allocation3 [shape = 's32[1]{0}', space=sflag, size = 0x4, scoped, tag = 'scoped memory for _forward_impl.1']
    %7 = vsyncpa [#allocation3], 0
    // Predicated region
    $region2: #{_forward_impl.1} parent=1 // pred_check
      _
    $region3: #{_forward_impl.1} parent=1 // pred_check_branch
      %9 = sbr.rel (0) target = $region5
    $region4: #{_forward_impl.1} parent=1 // pred_region
      _
    $region5: #{_forward_impl.1} parent=1 // pred_fallthru
      _
    // Predicated region
    $region6: #{_forward_impl.1} parent=1 // pred_check
      _
    $region7: #{_forward_impl.1} parent=1 // pred_check_branch
      %11 = sbr.rel (0) target = $region9
    $region8: #{_forward_impl.1} parent=1 // pred_region
      %s13 = ssub.s32 14080, 14080
      %14 = vsyncadd [#allocation3], %s13
      %s15 = sshll.u32 [#allocation2], 4
      %s16 = int_to_ptr.vmem [resolvable:$true] %s15
      %21 = dma.hbm_to_vmem [thread:$0]  %s1, 14080, %s16, [#allocation3], 128, 128, 8
    $region9: #{_forward_impl.1} parent=1 // pred_fallthru
      _
    // Predicated region
    $region10: #{_forward_impl.1} parent=1 // pred_check
      _
    $region11: #{_forward_impl.1} parent=1 // pred_check_branch
      %23 = sbr.rel (0) target = $region13
    $region12: #{_forward_impl.1} parent=1 // pred_region
      %24 = dma.done [#allocation3], 14080
    $region13: #{_forward_impl.1} parent=1 // pred_fallthru
      _
    %v25 = vld [vmem:[%s0] sm:$0xff]
    %v26 = vld [vmem:[%s0 + $0x8] sm:$0xff]
    %v27 = vlaneseq
    %v28 = vshrl.u32 %v27, 7
    %v29 = vadd.s32 %v28, 8
    %v30 = vlaneseq
    %v31 = vand.u32 %v30, 127
    %vm32 = vcmp.eq.s32.totalorder %v31, %v25
    %vm33 = vcmp.eq.s32.totalorder %v31, %v26
    %v34 = vand.u32 %v28, 7
    %v35 = vand.u32 %v29, 7
    %v36 = vadd.s32 %v34, 65
    %v37 = vadd.s32 %v35, 65
    %vm38 = vcmp.eq.s32.totalorder %v31, %v36
    %vm39 = vcmp.eq.s32.totalorder %v31, %v37
    %vm40 = vmor %vm32, %vm38
    %vm41 = vmor %vm33, %vm39
    %v42 = vsel %vm40, 1.0, 0.0
    %v43 = vsel %vm41, 1.0, 0.0
    %v44 = vld [vmem:[#allocation2] sm:$0xff]
    %v45 = vld [vmem:[#allocation2 + $0x8] sm:$0xff]
    %v46 = vld [vmem:[#allocation2 + $0x10] sm:$0xff]
    %v47 = vld [vmem:[#allocation2 + $0x18] sm:$0xff]
    %v48 = vld [vmem:[#allocation2 + $0x20] sm:$0xff]
    %v49 = vld [vmem:[#allocation2 + $0x28] sm:$0xff]
    %v50 = vld [vmem:[#allocation2 + $0x30] sm:$0xff]
    %v51 = vld [vmem:[#allocation2 + $0x38] sm:$0xff]
    %v52 = vld [vmem:[#allocation2 + $0x40] sm:$0xff]
    %v53 = vld [vmem:[#allocation2 + $0x48] sm:$0xff]
    %vm54 = vcmask 654336
    %v56 = vsel %vm54, %v42, 0
    %v59 = vsel %vm54, %v43, 0
    %61 = vmatprep.subr.mxu0 0.0
    %62 = vmatpush1.msra.mxu0 %v44
    %63 = vmatprep.subr.mxu0 0.0
    %64 = vmatpush1.msra.mxu0 %v45
    %65 = vmatprep.subr.mxu0 0.0
    %66 = vmatpush1.msra.mxu0 %v46
    %67 = vmatprep.subr.mxu0 0.0
    %68 = vmatpush1.msra.mxu0 %v47
    %69 = vmatprep.subr.mxu0 0.0
    %70 = vmatpush1.msra.mxu0 %v48
    %71 = vmatprep.subr.mxu0 0.0
    %72 = vmatpush1.msra.mxu0 %v49
    %73 = vmatprep.subr.mxu0 0.0
    %74 = vmatpush1.msra.mxu0 %v50
    %75 = vmatprep.subr.mxu0 0.0
    %76 = vmatpush1.msra.mxu0 %v51
    %77 = vmatprep.subr.mxu0 0.0
    %78 = vmatpush1.msra.mxu0 %v52
    %79 = vmatprep.subr.mxu0 0.0
    %80 = vmatpush1.msra.mxu0 %v53
    %81 = vmatprep.subr.mxu0 0.0
    %82 = vmatpush1.msra.mxu0 0.0
    %83 = vmatprep.subr.mxu0 0.0
    %84 = vmatpush1.msra.mxu0 0.0
    %85 = vmatprep.subr.mxu0 0.0
    %86 = vmatpush1.msra.mxu0 0.0
    %87 = vmatprep.subr.mxu0 0.0
    %88 = vmatpush1.msra.mxu0 0.0
    %89 = vmatprep.subr.mxu0 0.0
    %90 = vmatpush1.msra.mxu0 0.0
    %91 = vmatprep.subr.mxu0 0.0
    %92 = vmatpush1.msra.mxu0 0.0
    %93 = vmatprep.subr.mxu0 0.0
    %94 = vmatpush1.msra.mxu0 0.0
    %95 = vmatprep.subr.mxu0 0.0
    %96 = vmatpush1.msra.mxu0 0.0
    %97 = vmatprep.subr.mxu0 0.0
    %98 = vmatpush1.msra.mxu0 0.0
    %99 = vmatprep.subr.mxu0 0.0
    %100 = vmatpush1.msra.mxu0 0.0
    %101 = vmatprep.subr.mxu0 0.0
    %102 = vmatpush1.msra.mxu0 0.0
    %103 = vmatprep.subr.mxu0 0.0
    %104 = vmatpush1.msra.mxu0 0.0
    %105 = vmatprep.subr.mxu0 0.0
    %106 = vmatpush1.msra.mxu0 0.0
    %107 = vmatprep.subr.mxu0 0.0
    %108 = vmatpush1.msra.mxu0 0.0
    %109 = vmatprep.subr.mxu0 0.0
    %110 = vmatpush1.msra.mxu0 0.0
    %111 = vmatprep.subr.mxu0 0.0
    %112 = vmatpush1.msra.mxu0 0.0
    %113 = vmatprep.subr.mxu0 0.0
    %114 = vmatpush1.msra.mxu0 0.0
    %115 = vmatprep.subr.mxu0 0.0
    %116 = vmatpush1.msra.mxu0 0.0
    %117 = vmatprep.subr.mxu0 0.0
    %118 = vmatpush1.msra.mxu0 0.0
    %119 = vmatprep.subr.mxu0 0.0
    %120 = vmatpush1.msra.mxu0 0.0
    %121 = vmatprep.subr.mxu0 0.0
    %122 = vmatpush1.msra.mxu0 0.0
    %123 = vmatprep.subr.mxu0 0.0
    %124 = vmatpush1.msra.mxu0 0.0
    %125 = vmatprep.mubr.f32.mxu0 0.0
    %126 = vmatmul.mubr.f32.gmra.mrb[0].mxu0 %v56
    %v127 = vpop.f32.mrb[0].mxu0
    %v128 = vadd.f32 0.0, %v127
    %v129 = vpop.f32.mrb[0].mxu0
    %130 = vmatprep.mubr.f32.mxu0 0.0
    %131 = vmatmul.mubr.f32.gmra.mrb[0].mxu0 %v59
    %v132 = vpop.f32.mrb[0].mxu0
    %v133 = vadd.f32 0.0, %v132
    %v134 = vpop.f32.mrb[0].mxu0
    %135 = vdwg.mxu0
    %v136 = vshra.s32 %v28, 3
    %v137 = vshra.s32 %v29, 3
    %v138 = vshra.s32 %v31, 3
    %vm139 = vcmp.eq.s32.totalorder %v136, %v138
    %vm140 = vcmp.eq.s32.totalorder %v137, %v138
    %v141 = vand.u32 %v31, 7
    %vm142 = vcmp.le.s32.totalorder %v141, %v34
    %vm143 = vcmp.le.s32.totalorder %v141, %v35
    %vm144 = vmand %vm139, %vm142
    %vm145 = vmand %vm140, %vm143
    %v146 = vsel %vm144, 0.0, -1e+30
    %v147 = vsel %vm145, 0.0, -1e+30
    %v148 = vld [vmem:[#allocation2 + $0x50] sm:$0x7f]
    %v149 = vld [vmem:[#allocation2 + $0x58] sm:$0x7f]
    %vm150 = vcmask 261120
    %v151 = vsel %vm150, %v128, 0.0
    %152 = vadd.xlane.f32.xlu0 %v151
    %v153 = vpop.xlane.xlu0 %152
    %v154 = vsel %vm150, %v133, 0.0
    %155 = vadd.xlane.f32.xlu0 %v154
    %v156 = vpop.xlane.xlu0 %155
    %v157 = vrcp.pop 32.0
    %v158 = vmul.f32 %v153, %v157
    %v159 = vmul.f32 %v156, %v157
    %v160 = vsub.f32 %v128, %v158
    %v161 = vsub.f32 %v133, %v159
    %v162 = vmul.f32 %v160, %v160
    %v163 = vmul.f32 %v161, %v161
    %v164 = vsel %vm150, %v162, 0.0
    %165 = vadd.xlane.f32.xlu0 %v164
    %v166 = vpop.xlane.xlu0 %165
    %v167 = vsel %vm150, %v163, 0.0
    %168 = vadd.xlane.f32.xlu0 %v167
    %v169 = vpop.xlane.xlu0 %168
    %v170 = vmul.f32 %v166, %v157
    %v171 = vmul.f32 %v169, %v157
    %v172 = vadd.f32 %v170, 1e-05
    %v173 = vadd.f32 %v171, 1e-05
    %v174 = vrsqrt.pop %v172
    %v175 = vrsqrt.pop %v173
    %v176 = vmul.f32 %v160, %v174
    %v177 = vmul.f32 %v161, %v175
    %v178 = vlaneseq
    %v179 = vshrl.u32 %v178, 7
    %v180 = vsub.s32 0, %v179
    %v181 = vrot.slane %v148, %v180
    %v182 = vmul.f32 %v176, %v181
    %v183 = vmul.f32 %v177, %v181
    %v184 = vlaneseq
    %v185 = vshrl.u32 %v184, 7
    %v186 = vsub.s32 0, %v185
    %v187 = vrot.slane %v149, %v186
    %v188 = vadd.f32 %v182, %v187
    %v189 = vadd.f32 %v183, %v187
    %v190 = vld [vmem:[#allocation2 + $0x60] sm:$0xff]
    %v191 = vld [vmem:[#allocation2 + $0x68] sm:$0xff]
    %v192 = vld [vmem:[#allocation2 + $0x70] sm:$0xff]
    %v193 = vld [vmem:[#allocation2 + $0x78] sm:$0xff]
    %v195 = vsel %vm150, %v188, 0
    %v198 = vsel %vm150, %v189, 0
    %200 = vmatprep.subr.mxu0 0.0
    %201 = vmatpush1.msra.mxu0 %v190
    %202 = vmatprep.subr.mxu0 0.0
    %203 = vmatpush1.msra.mxu0 %v191
    %204 = vmatprep.subr.mxu0 0.0
    %205 = vmatpush1.msra.mxu0 %v192
    %206 = vmatprep.subr.mxu0 0.0
    %207 = vmatpush1.msra.mxu0 %v193
    %208 = vmatprep.subr.mxu0 0.0
    %209 = vmatpush1.msra.mxu0 0.0
    %210 = vmatprep.subr.mxu0 0.0
    %211 = vmatpush1.msra.mxu0 0.0
    %212 = vmatprep.subr.mxu0 0.0
    %213 = vmatpush1.msra.mxu0 0.0
    %214 = vmatprep.subr.mxu0 0.0
    %215 = vmatpush1.msra.mxu0 0.0
    %216 = vmatprep.subr.mxu0 0.0
    %217 = vmatpush1.msra.mxu0 0.0
    %218 = vmatprep.subr.mxu0 0.0
    %219 = vmatpush1.msra.mxu0 0.0
    %220 = vmatprep.subr.mxu0 0.0
    %221 = vmatpush1.msra.mxu0 0.0
    %222 = vmatprep.subr.mxu0 0.0
    %223 = vmatpush1.msra.mxu0 0.0
    %224 = vmatprep.subr.mxu0 0.0
    %225 = vmatpush1.msra.mxu0 0.0
    %226 = vmatprep.subr.mxu0 0.0
    %227 = vmatpush1.msra.mxu0 0.0
    %228 = vmatprep.subr.mxu0 0.0
    %229 = vmatpush1.msra.mxu0 0.0
    %230 = vmatprep.subr.mxu0 0.0
    %231 = vmatpush1.msra.mxu0 0.0
    %232 = vmatprep.subr.mxu0 0.0
    %233 = vmatpush1.msra.mxu0 0.0
    %234 = vmatprep.subr.mxu0 0.0
    %235 = vmatpush1.msra.mxu0 0.0
    %236 = vmatprep.subr.mxu0 0.0
    %237 = vmatpush1.msra.mxu0 0.0
    %238 = vmatprep.subr.mxu0 0.0
    %239 = vmatpush1.msra.mxu0 0.0
    %240 = vmatprep.subr.mxu0 0.0
    %241 = vmatpush1.msra.mxu0 0.0
    %242 = vmatprep.subr.mxu0 0.0
    %243 = vmatpush1.msra.mxu0 0.0
    %244 = vmatprep.subr.mxu0 0.0
    %245 = vmatpush1.msra.mxu0 0.0
    %246 = vmatprep.subr.mxu0 0.0
    %247 = vmatpush1.msra.mxu0 0.0
    %248 = vmatprep.subr.mxu0 0.0
    %249 = vmatpush1.msra.mxu0 0.0
    %250 = vmatprep.subr.mxu0 0.0
    %251 = vmatpush1.msra.mxu0 0.0
    %252 = vmatprep.subr.mxu0 0.0
    %253 = vmatpush1.msra.mxu0 0.0
    %254 = vmatprep.subr.mxu0 0.0
    %255 = vmatpush1.msra.mxu0 0.0
    %256 = vmatprep.subr.mxu0 0.0
    %257 = vmatpush1.msra.mxu0 0.0
    %258 = vmatprep.subr.mxu0 0.0
    %259 = vmatpush1.msra.mxu0 0.0
    %260 = vmatprep.subr.mxu0 0.0
    %261 = vmatpush1.msra.mxu0 0.0
    %262 = vmatprep.subr.mxu0 0.0
    %263 = vmatpush1.msra.mxu0 0.0
    %264 = vmatprep.mubr.f32.mxu0 0.0
    %265 = vmatmul.mubr.f32.gmra.mrb[0].mxu0 %v195
    %v266 = vpop.f32.mrb[0].mxu0
    %v267 = vadd.f32 0.0, %v266
    %v268 = vpop.f32.mrb[0].mxu0
    %269 = vmatprep.mubr.f32.mxu0 0.0
    %270 = vmatmul.mubr.f32.gmra.mrb[0].mxu0 %v198
    %v271 = vpop.f32.mrb[0].mxu0
    %v272 = vadd.f32 0.0, %v271
    %v273 = vpop.f32.mrb[0].mxu0
    %274 = vdwg.mxu0
    %277 = vrot.lane.b32.xlu0 %v267, 96
    %v278 = vpop.permute.xlu0 %277
    %279 = vrot.lane.b32.xlu0 %v272, 96
    %v280 = vpop.permute.xlu0 %279
    %vm281 = vcmask 64512
    %v282 = vsel %vm281, %v267, 0
    %v284 = vsel %vm281, %v272, 0
    %v286 = vsel %vm281, %v278, 0
    %v288 = vsel %vm281, %v280, 0
    %290 = vmatprep.subr.mxu0 0.0
    %291 = vmatpush1.xpose.msra.mxu0 %v286
    %292 = vmatprep.subr.mxu0 0.0
    %293 = vmatpush1.xpose.msra.mxu0 %v288
    %294 = vmatprep.subr.mxu0 0.0
    %295 = vmatpush1.xpose.msra.mxu0 0.0
    %296 = vmatprep.subr.mxu0 0.0
    %297 = vmatpush1.xpose.msra.mxu0 0.0
    %298 = vmatprep.subr.mxu0 0.0
    %299 = vmatpush1.xpose.msra.mxu0 0.0
    %300 = vmatprep.subr.mxu0 0.0
    %301 = vmatpush1.xpose.msra.mxu0 0.0
    %302 = vmatprep.subr.mxu0 0.0
    %303 = vmatpush1.xpose.msra.mxu0 0.0
    %304 = vmatprep.subr.mxu0 0.0
    %305 = vmatpush1.xpose.msra.mxu0 0.0
    %306 = vmatprep.subr.mxu0 0.0
    %307 = vmatpush1.xpose.msra.mxu0 0.0
    %308 = vmatprep.subr.mxu0 0.0
    %309 = vmatpush1.xpose.msra.mxu0 0.0
    %310 = vmatprep.subr.mxu0 0.0
    %311 = vmatpush1.xpose.msra.mxu0 0.0
    %312 = vmatprep.subr.mxu0 0.0
    %313 = vmatpush1.xpose.msra.mxu0 0.0
    %314 = vmatprep.subr.mxu0 0.0
    %315 = vmatpush1.xpose.msra.mxu0 0.0
    %316 = vmatprep.subr.mxu0 0.0
    %317 = vmatpush1.xpose.msra.mxu0 0.0
    %318 = vmatprep.subr.mxu0 0.0
    %319 = vmatpush1.xpose.msra.mxu0 0.0
    %320 = vmatprep.subr.mxu0 0.0
    %321 = vmatpush1.xpose.msra.mxu0 0.0
    %322 = vmatprep.subr.mxu0 0.0
    %323 = vmatpush1.xpose.msra.mxu0 0.0
    %324 = vmatprep.subr.mxu0 0.0
    %325 = vmatpush1.xpose.msra.mxu0 0.0
    %326 = vmatprep.subr.mxu0 0.0
    %327 = vmatpush1.xpose.msra.mxu0 0.0
    %328 = vmatprep.subr.mxu0 0.0
    %329 = vmatpush1.xpose.msra.mxu0 0.0
    %330 = vmatprep.subr.mxu0 0.0
    %331 = vmatpush1.xpose.msra.mxu0 0.0
    %332 = vmatprep.subr.mxu0 0.0
    %333 = vmatpush1.xpose.msra.mxu0 0.0
    %334 = vmatprep.subr.mxu0 0.0
    %335 = vmatpush1.xpose.msra.mxu0 0.0
    %336 = vmatprep.subr.mxu0 0.0
    %337 = vmatpush1.xpose.msra.mxu0 0.0
    %338 = vmatprep.subr.mxu0 0.0
    %339 = vmatpush1.xpose.msra.mxu0 0.0
    %340 = vmatprep.subr.mxu0 0.0
    %341 = vmatpush1.xpose.msra.mxu0 0.0
    %342 = vmatprep.subr.mxu0 0.0
    %343 = vmatpush1.xpose.msra.mxu0 0.0
    %344 = vmatprep.subr.mxu0 0.0
    %345 = vmatpush1.xpose.msra.mxu0 0.0
    %346 = vmatprep.subr.mxu0 0.0
    %347 = vmatpush1.xpose.msra.mxu0 0.0
    %348 = vmatprep.subr.mxu0 0.0
    %349 = vmatpush1.xpose.msra.mxu0 0.0
    %350 = vmatprep.subr.mxu0 0.0
    %351 = vmatpush1.xpose.msra.mxu0 0.0
    %352 = vmatprep.subr.mxu0 0.0
    %353 = vmatpush1.xpose.msra.mxu0 0.0
    %354 = vmatprep.mubr.f32.mxu0 0.0
    %355 = vmatmul.mubr.f32.gmra.mrb[0].mxu0 %v282
    %v356 = vpop.f32.mrb[0].mxu0
    %v357 = vadd.f32 0.0, %v356
    %v358 = vpop.f32.mrb[0].mxu0
    %359 = vmatprep.mubr.f32.mxu0 0.0
    %360 = vmatmul.mubr.f32.gmra.mrb[0].mxu0 %v284
    %v361 = vpop.f32.mrb[0].mxu0
    %v362 = vadd.f32 0.0, %v361
    %v363 = vpop.f32.mrb[0].mxu0
    %364 = vdwg.mxu0
    %v365 = vmul.f32 %v357, 0.17677669
    %v366 = vmul.f32 %v362, 0.17677669
    %v367 = vadd.f32 %v365, %v146
    %v368 = vadd.f32 %v366, %v147
    %vm369 = vcmask 130048
    %v370 = vsel %vm369, %v367, -inf
    %371 = vmax.xlane.f32.xlu0 %v370
    %v372 = vpop.xlane.xlu0 %371
    %v373 = vsel %vm369, %v368, -inf
    %374 = vmax.xlane.f32.xlu0 %v373
    %v375 = vpop.xlane.xlu0 %374
    %v376 = vsub.f32 %v367, %v372
    %v377 = vsub.f32 %v368, %v375
    %v378 = vmul.f32 %v376, 1.442695
    %v379 = vpow.pop %v378
    %v380 = vmul.f32 %v377, 1.442695
    %v381 = vpow.pop %v380
    %v382 = vsel %vm369, %v379, 0.0
    %383 = vadd.xlane.f32.xlu0 %v382
    %v384 = vpop.xlane.xlu0 %383
    %v385 = vsel %vm369, %v381, 0.0
    %386 = vadd.xlane.f32.xlu0 %v385
    %v387 = vpop.xlane.xlu0 %386
    %v388 = vrcp.pop %v384
    %v389 = vrcp.pop %v387
    %v390 = vmul.f32 %v379, %v388
    %v391 = vmul.f32 %v381, %v389
    %392 = vrot.lane.b32.xlu0 %v267, 64
    %v393 = vpop.permute.xlu0 %392
    %394 = vrot.lane.b32.xlu0 %v272, 64
    %v395 = vpop.permute.xlu0 %394
    %v399 = vsel %vm369, %v390, 0
    %v402 = vsel %vm369, %v391, 0
    %404 = vmatprep.subr.mxu0 0.0
    %405 = vmatpush1.msra.mxu0 %v393
    %406 = vmatprep.subr.mxu0 0.0
    %407 = vmatpush1.msra.mxu0 %v395
    %408 = vmatprep.subr.mxu0 0.0
    %409 = vmatpush1.msra.mxu0 0.0
    %410 = vmatprep.subr.mxu0 0.0
    %411 = vmatpush1.msra.mxu0 0.0
    %412 = vmatprep.subr.mxu0 0.0
    %413 = vmatpush1.msra.mxu0 0.0
    %414 = vmatprep.subr.mxu0 0.0
    %415 = vmatpush1.msra.mxu0 0.0
    %416 = vmatprep.subr.mxu0 0.0
    %417 = vmatpush1.msra.mxu0 0.0
    %418 = vmatprep.subr.mxu0 0.0
    %419 = vmatpush1.msra.mxu0 0.0
    %420 = vmatprep.subr.mxu0 0.0
    %421 = vmatpush1.msra.mxu0 0.0
    %422 = vmatprep.subr.mxu0 0.0
    %423 = vmatpush1.msra.mxu0 0.0
    %424 = vmatprep.subr.mxu0 0.0
    %425 = vmatpush1.msra.mxu0 0.0
    %426 = vmatprep.subr.mxu0 0.0
    %427 = vmatpush1.msra.mxu0 0.0
    %428 = vmatprep.subr.mxu0 0.0
    %429 = vmatpush1.msra.mxu0 0.0
    %430 = vmatprep.subr.mxu0 0.0
    %431 = vmatpush1.msra.mxu0 0.0
    %432 = vmatprep.subr.mxu0 0.0
    %433 = vmatpush1.msra.mxu0 0.0
    %434 = vmatprep.subr.mxu0 0.0
    %435 = vmatpush1.msra.mxu0 0.0
    %436 = vmatprep.subr.mxu0 0.0
    %437 = vmatpush1.msra.mxu0 0.0
    %438 = vmatprep.subr.mxu0 0.0
    %439 = vmatpush1.msra.mxu0 0.0
    %440 = vmatprep.subr.mxu0 0.0
    %441 = vmatpush1.msra.mxu0 0.0
    %442 = vmatprep.subr.mxu0 0.0
    %443 = vmatpush1.msra.mxu0 0.0
    %444 = vmatprep.subr.mxu0 0.0
    %445 = vmatpush1.msra.mxu0 0.0
    %446 = vmatprep.subr.mxu0 0.0
    %447 = vmatpush1.msra.mxu0 0.0
    %448 = vmatprep.subr.mxu0 0.0
    %449 = vmatpush1.msra.mxu0 0.0
    %450 = vmatprep.subr.mxu0 0.0
    %451 = vmatpush1.msra.mxu0 0.0
    %452 = vmatprep.subr.mxu0 0.0
    %453 = vmatpush1.msra.mxu0 0.0
    %454 = vmatprep.subr.mxu0 0.0
    %455 = vmatpush1.msra.mxu0 0.0
    %456 = vmatprep.subr.mxu0 0.0
    %457 = vmatpush1.msra.mxu0 0.0
    %458 = vmatprep.subr.mxu0 0.0
    %459 = vmatpush1.msra.mxu0 0.0
    %460 = vmatprep.subr.mxu0 0.0
    %461 = vmatpush1.msra.mxu0 0.0
    %462 = vmatprep.subr.mxu0 0.0
    %463 = vmatpush1.msra.mxu0 0.0
    %464 = vmatprep.subr.mxu0 0.0
    %465 = vmatpush1.msra.mxu0 0.0
    %466 = vmatprep.subr.mxu0 0.0
    %467 = vmatpush1.msra.mxu0 0.0
    %468 = vmatprep.mubr.f32.mxu0 0.0
    %469 = vmatmul.mubr.f32.gmra.mrb[0].mxu0 %v399
    %v470 = vpop.f32.mrb[0].mxu0
    %v471 = vadd.f32 0.0, %v470
    %v472 = vpop.f32.mrb[0].mxu0
    %473 = vmatprep.mubr.f32.mxu0 0.0
    %474 = vmatmul.mubr.f32.gmra.mrb[0].mxu0 %v402
    %v475 = vpop.f32.mrb[0].mxu0
    %v476 = vadd.f32 0.0, %v475
    %v477 = vpop.f32.mrb[0].mxu0
    %478 = vdwg.mxu0
    %479 = vrot.lane.b32.xlu0 %v267, 120
    %v480 = vpop.permute.xlu0 %479
    %481 = vrot.lane.b32.xlu0 %v272, 120
    %v482 = vpop.permute.xlu0 %481
    %483 = vrot.lane.b32.xlu0 %v267, 88
    %v484 = vpop.permute.xlu0 %483
    %485 = vrot.lane.b32.xlu0 %v272, 88
    %v486 = vpop.permute.xlu0 %485
    %v487 = vsel %vm281, %v480, 0
    %v489 = vsel %vm281, %v482, 0
    %v491 = vsel %vm281, %v484, 0
    %v493 = vsel %vm281, %v486, 0
    %495 = vmatprep.subr.mxu0 0.0
    %496 = vmatpush1.xpose.msra.mxu0 %v491
    %497 = vmatprep.subr.mxu0 0.0
    %498 = vmatpush1.xpose.msra.mxu0 %v493
    %499 = vmatprep.subr.mxu0 0.0
    %500 = vmatpush1.xpose.msra.mxu0 0.0
    %501 = vmatprep.subr.mxu0 0.0
    %502 = vmatpush1.xpose.msra.mxu0 0.0
    %503 = vmatprep.subr.mxu0 0.0
    %504 = vmatpush1.xpose.msra.mxu0 0.0
    %505 = vmatprep.subr.mxu0 0.0
    %506 = vmatpush1.xpose.msra.mxu0 0.0
    %507 = vmatprep.subr.mxu0 0.0
    %508 = vmatpush1.xpose.msra.mxu0 0.0
    %509 = vmatprep.subr.mxu0 0.0
    %510 = vmatpush1.xpose.msra.mxu0 0.0
    %511 = vmatprep.subr.mxu0 0.0
    %512 = vmatpush1.xpose.msra.mxu0 0.0
    %513 = vmatprep.subr.mxu0 0.0
    %514 = vmatpush1.xpose.msra.mxu0 0.0
    %515 = vmatprep.subr.mxu0 0.0
    %516 = vmatpush1.xpose.msra.mxu0 0.0
    %517 = vmatprep.subr.mxu0 0.0
    %518 = vmatpush1.xpose.msra.mxu0 0.0
    %519 = vmatprep.subr.mxu0 0.0
    %520 = vmatpush1.xpose.msra.mxu0 0.0
    %521 = vmatprep.subr.mxu0 0.0
    %522 = vmatpush1.xpose.msra.mxu0 0.0
    %523 = vmatprep.subr.mxu0 0.0
    %524 = vmatpush1.xpose.msra.mxu0 0.0
    %525 = vmatprep.subr.mxu0 0.0
    %526 = vmatpush1.xpose.msra.mxu0 0.0
    %527 = vmatprep.subr.mxu0 0.0
    %528 = vmatpush1.xpose.msra.mxu0 0.0
    %529 = vmatprep.subr.mxu0 0.0
    %530 = vmatpush1.xpose.msra.mxu0 0.0
    %531 = vmatprep.subr.mxu0 0.0
    %532 = vmatpush1.xpose.msra.mxu0 0.0
    %533 = vmatprep.subr.mxu0 0.0
    %534 = vmatpush1.xpose.msra.mxu0 0.0
    %535 = vmatprep.subr.mxu0 0.0
    %536 = vmatpush1.xpose.msra.mxu0 0.0
    %537 = vmatprep.subr.mxu0 0.0
    %538 = vmatpush1.xpose.msra.mxu0 0.0
    %539 = vmatprep.subr.mxu0 0.0
    %540 = vmatpush1.xpose.msra.mxu0 0.0
    %541 = vmatprep.subr.mxu0 0.0
    %542 = vmatpush1.xpose.msra.mxu0 0.0
    %543 = vmatprep.subr.mxu0 0.0
    %544 = vmatpush1.xpose.msra.mxu0 0.0
    %545 = vmatprep.subr.mxu0 0.0
    %546 = vmatpush1.xpose.msra.mxu0 0.0
    %547 = vmatprep.subr.mxu0 0.0
    %548 = vmatpush1.xpose.msra.mxu0 0.0
    %549 = vmatprep.subr.mxu0 0.0
    %550 = vmatpush1.xpose.msra.mxu0 0.0
    %551 = vmatprep.subr.mxu0 0.0
    %552 = vmatpush1.xpose.msra.mxu0 0.0
    %553 = vmatprep.subr.mxu0 0.0
    %554 = vmatpush1.xpose.msra.mxu0 0.0
    %555 = vmatprep.subr.mxu0 0.0
    %556 = vmatpush1.xpose.msra.mxu0 0.0
    %557 = vmatprep.subr.mxu0 0.0
    %558 = vmatpush1.xpose.msra.mxu0 0.0
    %559 = vmatprep.mubr.f32.mxu0 0.0
    %560 = vmatmul.mubr.f32.gmra.mrb[0].mxu0 %v487
    %v561 = vpop.f32.mrb[0].mxu0
    %v562 = vadd.f32 0.0, %v561
    %v563 = vpop.f32.mrb[0].mxu0
    %564 = vmatprep.mubr.f32.mxu0 0.0
    %565 = vmatmul.mubr.f32.gmra.mrb[0].mxu0 %v489
    %v566 = vpop.f32.mrb[0].mxu0
    %v567 = vadd.f32 0.0, %v566
    %v568 = vpop.f32.mrb[0].mxu0
    %569 = vdwg.mxu0
    %v570 = vmul.f32 %v562, 0.17677669
    %v571 = vmul.f32 %v567, 0.17677669
    %v572 = vadd.f32 %v570, %v146
    %v573 = vadd.f32 %v571, %v147
    %v574 = vsel %vm369, %v572, -inf
    %575 = vmax.xlane.f32.xlu0 %v574
    %v576 = vpop.xlane.xlu0 %575
    %v577 = vsel %vm369, %v573, -inf
    %578 = vmax.xlane.f32.xlu0 %v577
    %v579 = vpop.xlane.xlu0 %578
    %v580 = vsub.f32 %v572, %v576
    %v581 = vsub.f32 %v573, %v579
    %v582 = vmul.f32 %v580, 1.442695
    %v583 = vpow.pop %v582
    %v584 = vmul.f32 %v581, 1.442695
    %v585 = vpow.pop %v584
    %v586 = vsel %vm369, %v583, 0.0
    %587 = vadd.xlane.f32.xlu0 %v586
    %v588 = vpop.xlane.xlu0 %587
    %v589 = vsel %vm369, %v585, 0.0
    %590 = vadd.xlane.f32.xlu0 %v589
    %v591 = vpop.xlane.xlu0 %590
    %v592 = vrcp.pop %v588
    %v593 = vrcp.pop %v591
    %v594 = vmul.f32 %v583, %v592
    %v595 = vmul.f32 %v585, %v593
    %596 = vrot.lane.b32.xlu0 %v267, 56
    %v597 = vpop.permute.xlu0 %596
    %598 = vrot.lane.b32.xlu0 %v272, 56
    %v599 = vpop.permute.xlu0 %598
    %v603 = vsel %vm369, %v594, 0
    %v606 = vsel %vm369, %v595, 0
    %608 = vmatprep.subr.mxu0 0.0
    %609 = vmatpush1.msra.mxu0 %v597
    %610 = vmatprep.subr.mxu0 0.0
    %611 = vmatpush1.msra.mxu0 %v599
    %612 = vmatprep.subr.mxu0 0.0
    %613 = vmatpush1.msra.mxu0 0.0
    %614 = vmatprep.subr.mxu0 0.0
    %615 = vmatpush1.msra.mxu0 0.0
    %616 = vmatprep.subr.mxu0 0.0
    %617 = vmatpush1.msra.mxu0 0.0
    %618 = vmatprep.subr.mxu0 0.0
    %619 = vmatpush1.msra.mxu0 0.0
    %620 = vmatprep.subr.mxu0 0.0
    %621 = vmatpush1.msra.mxu0 0.0
    %622 = vmatprep.subr.mxu0 0.0
    %623 = vmatpush1.msra.mxu0 0.0
    %624 = vmatprep.subr.mxu0 0.0
    %625 = vmatpush1.msra.mxu0 0.0
    %626 = vmatprep.subr.mxu0 0.0
    %627 = vmatpush1.msra.mxu0 0.0
    %628 = vmatprep.subr.mxu0 0.0
    %629 = vmatpush1.msra.mxu0 0.0
    %630 = vmatprep.subr.mxu0 0.0
    %631 = vmatpush1.msra.mxu0 0.0
    %632 = vmatprep.subr.mxu0 0.0
    %633 = vmatpush1.msra.mxu0 0.0
    %634 = vmatprep.subr.mxu0 0.0
    %635 = vmatpush1.msra.mxu0 0.0
    %636 = vmatprep.subr.mxu0 0.0
    %637 = vmatpush1.msra.mxu0 0.0
    %638 = vmatprep.subr.mxu0 0.0
    %639 = vmatpush1.msra.mxu0 0.0
    %640 = vmatprep.subr.mxu0 0.0
    %641 = vmatpush1.msra.mxu0 0.0
    %642 = vmatprep.subr.mxu0 0.0
    %643 = vmatpush1.msra.mxu0 0.0
    %644 = vmatprep.subr.mxu0 0.0
    %645 = vmatpush1.msra.mxu0 0.0
    %646 = vmatprep.subr.mxu0 0.0
    %647 = vmatpush1.msra.mxu0 0.0
    %648 = vmatprep.subr.mxu0 0.0
    %649 = vmatpush1.msra.mxu0 0.0
    %650 = vmatprep.subr.mxu0 0.0
    %651 = vmatpush1.msra.mxu0 0.0
    %652 = vmatprep.subr.mxu0 0.0
    %653 = vmatpush1.msra.mxu0 0.0
    %654 = vmatprep.subr.mxu0 0.0
    %655 = vmatpush1.msra.mxu0 0.0
    %656 = vmatprep.subr.mxu0 0.0
    %657 = vmatpush1.msra.mxu0 0.0
    %658 = vmatprep.subr.mxu0 0.0
    %659 = vmatpush1.msra.mxu0 0.0
    %660 = vmatprep.subr.mxu0 0.0
    %661 = vmatpush1.msra.mxu0 0.0
    %662 = vmatprep.subr.mxu0 0.0
    %663 = vmatpush1.msra.mxu0 0.0
    %664 = vmatprep.subr.mxu0 0.0
    %665 = vmatpush1.msra.mxu0 0.0
    %666 = vmatprep.subr.mxu0 0.0
    %667 = vmatpush1.msra.mxu0 0.0
    %668 = vmatprep.subr.mxu0 0.0
    %669 = vmatpush1.msra.mxu0 0.0
    %670 = vmatprep.subr.mxu0 0.0
    %671 = vmatpush1.msra.mxu0 0.0
    %672 = vmatprep.mubr.f32.mxu0 0.0
    %673 = vmatmul.mubr.f32.gmra.mrb[0].mxu0 %v603
    %v674 = vpop.f32.mrb[0].mxu0
    %v675 = vadd.f32 0.0, %v674
    %v676 = vpop.f32.mrb[0].mxu0
    %677 = vmatprep.mubr.f32.mxu0 0.0
    %678 = vmatmul.mubr.f32.gmra.mrb[0].mxu0 %v606
    %v679 = vpop.f32.mrb[0].mxu0
    %v680 = vadd.f32 0.0, %v679
    %v681 = vpop.f32.mrb[0].mxu0
    %682 = vdwg.mxu0
    %683 = vrot.lane.b32.xlu0 %v267, 112
    %v684 = vpop.permute.xlu0 %683
    %685 = vrot.lane.b32.xlu0 %v272, 112
    %v686 = vpop.permute.xlu0 %685
    %687 = vrot.lane.b32.xlu0 %v267, 80
    %v688 = vpop.permute.xlu0 %687
    %689 = vrot.lane.b32.xlu0 %v272, 80
    %v690 = vpop.permute.xlu0 %689
    %v691 = vsel %vm281, %v684, 0
    %v693 = vsel %vm281, %v686, 0
    %v695 = vsel %vm281, %v688, 0
    %v697 = vsel %vm281, %v690, 0
    %699 = vmatprep.subr.mxu0 0.0
    %700 = vmatpush1.xpose.msra.mxu0 %v695
    %701 = vmatprep.subr.mxu0 0.0
    %702 = vmatpush1.xpose.msra.mxu0 %v697
    %703 = vmatprep.subr.mxu0 0.0
    %704 = vmatpush1.xpose.msra.mxu0 0.0
    %705 = vmatprep.subr.mxu0 0.0
    %706 = vmatpush1.xpose.msra.mxu0 0.0
    %707 = vmatprep.subr.mxu0 0.0
    %708 = vmatpush1.xpose.msra.mxu0 0.0
    %709 = vmatprep.subr.mxu0 0.0
    %710 = vmatpush1.xpose.msra.mxu0 0.0
    %711 = vmatprep.subr.mxu0 0.0
    %712 = vmatpush1.xpose.msra.mxu0 0.0
    %713 = vmatprep.subr.mxu0 0.0
    %714 = vmatpush1.xpose.msra.mxu0 0.0
    %715 = vmatprep.subr.mxu0 0.0
    %716 = vmatpush1.xpose.msra.mxu0 0.0
    %717 = vmatprep.subr.mxu0 0.0
    %718 = vmatpush1.xpose.msra.mxu0 0.0
    %719 = vmatprep.subr.mxu0 0.0
    %720 = vmatpush1.xpose.msra.mxu0 0.0
    %721 = vmatprep.subr.mxu0 0.0
    %722 = vmatpush1.xpose.msra.mxu0 0.0
    %723 = vmatprep.subr.mxu0 0.0
    %724 = vmatpush1.xpose.msra.mxu0 0.0
    %725 = vmatprep.subr.mxu0 0.0
    %726 = vmatpush1.xpose.msra.mxu0 0.0
    %727 = vmatprep.subr.mxu0 0.0
    %728 = vmatpush1.xpose.msra.mxu0 0.0
    %729 = vmatprep.subr.mxu0 0.0
    %730 = vmatpush1.xpose.msra.mxu0 0.0
    %731 = vmatprep.subr.mxu0 0.0
    %732 = vmatpush1.xpose.msra.mxu0 0.0
    %733 = vmatprep.subr.mxu0 0.0
    %734 = vmatpush1.xpose.msra.mxu0 0.0
    %735 = vmatprep.subr.mxu0 0.0
    %736 = vmatpush1.xpose.msra.mxu0 0.0
    %737 = vmatprep.subr.mxu0 0.0
    %738 = vmatpush1.xpose.msra.mxu0 0.0
    %739 = vmatprep.subr.mxu0 0.0
    %740 = vmatpush1.xpose.msra.mxu0 0.0
    %741 = vmatprep.subr.mxu0 0.0
    %742 = vmatpush1.xpose.msra.mxu0 0.0
    %743 = vmatprep.subr.mxu0 0.0
    %744 = vmatpush1.xpose.msra.mxu0 0.0
    %745 = vmatprep.subr.mxu0 0.0
    %746 = vmatpush1.xpose.msra.mxu0 0.0
    %747 = vmatprep.subr.mxu0 0.0
    %748 = vmatpush1.xpose.msra.mxu0 0.0
    %749 = vmatprep.subr.mxu0 0.0
    %750 = vmatpush1.xpose.msra.mxu0 0.0
    %751 = vmatprep.subr.mxu0 0.0
    %752 = vmatpush1.xpose.msra.mxu0 0.0
    %753 = vmatprep.subr.mxu0 0.0
    %754 = vmatpush1.xpose.msra.mxu0 0.0
    %755 = vmatprep.subr.mxu0 0.0
    %756 = vmatpush1.xpose.msra.mxu0 0.0
    %757 = vmatprep.subr.mxu0 0.0
    %758 = vmatpush1.xpose.msra.mxu0 0.0
    %759 = vmatprep.subr.mxu0 0.0
    %760 = vmatpush1.xpose.msra.mxu0 0.0
    %761 = vmatprep.subr.mxu0 0.0
    %762 = vmatpush1.xpose.msra.mxu0 0.0
    %763 = vmatprep.mubr.f32.mxu0 0.0
    %764 = vmatmul.mubr.f32.gmra.mrb[0].mxu0 %v691
    %v765 = vpop.f32.mrb[0].mxu0
    %v766 = vadd.f32 0.0, %v765
    %v767 = vpop.f32.mrb[0].mxu0
    %768 = vmatprep.mubr.f32.mxu0 0.0
    %769 = vmatmul.mubr.f32.gmra.mrb[0].mxu0 %v693
    %v770 = vpop.f32.mrb[0].mxu0
    %v771 = vadd.f32 0.0, %v770
    %v772 = vpop.f32.mrb[0].mxu0
    %773 = vdwg.mxu0
    %v774 = vmul.f32 %v766, 0.17677669
    %v775 = vmul.f32 %v771, 0.17677669
    %v776 = vadd.f32 %v774, %v146
    %v777 = vadd.f32 %v775, %v147
    %v778 = vsel %vm369, %v776, -inf
    %779 = vmax.xlane.f32.xlu0 %v778
    %v780 = vpop.xlane.xlu0 %779
    %v781 = vsel %vm369, %v777, -inf
    %782 = vmax.xlane.f32.xlu0 %v781
    %v783 = vpop.xlane.xlu0 %782
    %v784 = vsub.f32 %v776, %v780
    %v785 = vsub.f32 %v777, %v783
    %v786 = vmul.f32 %v784, 1.442695
    %v787 = vpow.pop %v786
    %v788 = vmul.f32 %v785, 1.442695
    %v789 = vpow.pop %v788
    %v790 = vsel %vm369, %v787, 0.0
    %791 = vadd.xlane.f32.xlu0 %v790
    %v792 = vpop.xlane.xlu0 %791
    %v793 = vsel %vm369, %v789, 0.0
    %794 = vadd.xlane.f32.xlu0 %v793
    %v795 = vpop.xlane.xlu0 %794
    %v796 = vrcp.pop %v792
    %v797 = vrcp.pop %v795
    %v798 = vmul.f32 %v787, %v796
    %v799 = vmul.f32 %v789, %v797
    %800 = vrot.lane.b32.xlu0 %v267, 48
    %v801 = vpop.permute.xlu0 %800
    %802 = vrot.lane.b32.xlu0 %v272, 48
    %v803 = vpop.permute.xlu0 %802
    %v807 = vsel %vm369, %v798, 0
    %v810 = vsel %vm369, %v799, 0
    %812 = vmatprep.subr.mxu0 0.0
    %813 = vmatpush1.msra.mxu0 %v801
    %814 = vmatprep.subr.mxu0 0.0
    %815 = vmatpush1.msra.mxu0 %v803
    %816 = vmatprep.subr.mxu0 0.0
    %817 = vmatpush1.msra.mxu0 0.0
    %818 = vmatprep.subr.mxu0 0.0
    %819 = vmatpush1.msra.mxu0 0.0
    %820 = vmatprep.subr.mxu0 0.0
    %821 = vmatpush1.msra.mxu0 0.0
    %822 = vmatprep.subr.mxu0 0.0
    %823 = vmatpush1.msra.mxu0 0.0
    %824 = vmatprep.subr.mxu0 0.0
    %825 = vmatpush1.msra.mxu0 0.0
    %826 = vmatprep.subr.mxu0 0.0
    %827 = vmatpush1.msra.mxu0 0.0
    %828 = vmatprep.subr.mxu0 0.0
    %829 = vmatpush1.msra.mxu0 0.0
    %830 = vmatprep.subr.mxu0 0.0
    %831 = vmatpush1.msra.mxu0 0.0
    %832 = vmatprep.subr.mxu0 0.0
    %833 = vmatpush1.msra.mxu0 0.0
    %834 = vmatprep.subr.mxu0 0.0
    %835 = vmatpush1.msra.mxu0 0.0
    %836 = vmatprep.subr.mxu0 0.0
    %837 = vmatpush1.msra.mxu0 0.0
    %838 = vmatprep.subr.mxu0 0.0
    %839 = vmatpush1.msra.mxu0 0.0
    %840 = vmatprep.subr.mxu0 0.0
    %841 = vmatpush1.msra.mxu0 0.0
    %842 = vmatprep.subr.mxu0 0.0
    %843 = vmatpush1.msra.mxu0 0.0
    %844 = vmatprep.subr.mxu0 0.0
    %845 = vmatpush1.msra.mxu0 0.0
    %846 = vmatprep.subr.mxu0 0.0
    %847 = vmatpush1.msra.mxu0 0.0
    %848 = vmatprep.subr.mxu0 0.0
    %849 = vmatpush1.msra.mxu0 0.0
    %850 = vmatprep.subr.mxu0 0.0
    %851 = vmatpush1.msra.mxu0 0.0
    %852 = vmatprep.subr.mxu0 0.0
    %853 = vmatpush1.msra.mxu0 0.0
    %854 = vmatprep.subr.mxu0 0.0
    %855 = vmatpush1.msra.mxu0 0.0
    %856 = vmatprep.subr.mxu0 0.0
    %857 = vmatpush1.msra.mxu0 0.0
    %858 = vmatprep.subr.mxu0 0.0
    %859 = vmatpush1.msra.mxu0 0.0
    %860 = vmatprep.subr.mxu0 0.0
    %861 = vmatpush1.msra.mxu0 0.0
    %862 = vmatprep.subr.mxu0 0.0
    %863 = vmatpush1.msra.mxu0 0.0
    %864 = vmatprep.subr.mxu0 0.0
    %865 = vmatpush1.msra.mxu0 0.0
    %866 = vmatprep.subr.mxu0 0.0
    %867 = vmatpush1.msra.mxu0 0.0
    %868 = vmatprep.subr.mxu0 0.0
    %869 = vmatpush1.msra.mxu0 0.0
    %870 = vmatprep.subr.mxu0 0.0
    %871 = vmatpush1.msra.mxu0 0.0
    %872 = vmatprep.subr.mxu0 0.0
    %873 = vmatpush1.msra.mxu0 0.0
    %874 = vmatprep.subr.mxu0 0.0
    %875 = vmatpush1.msra.mxu0 0.0
    %876 = vmatprep.mubr.f32.mxu0 0.0
    %877 = vmatmul.mubr.f32.gmra.mrb[0].mxu0 %v807
    %v878 = vpop.f32.mrb[0].mxu0
    %v879 = vadd.f32 0.0, %v878
    %v880 = vpop.f32.mrb[0].mxu0
    %881 = vmatprep.mubr.f32.mxu0 0.0
    %882 = vmatmul.mubr.f32.gmra.mrb[0].mxu0 %v810
    %v883 = vpop.f32.mrb[0].mxu0
    %v884 = vadd.f32 0.0, %v883
    %v885 = vpop.f32.mrb[0].mxu0
    %886 = vdwg.mxu0
    %887 = vrot.lane.b32.xlu0 %v267, 104
    %v888 = vpop.permute.xlu0 %887
    %889 = vrot.lane.b32.xlu0 %v272, 104
    %v890 = vpop.permute.xlu0 %889
    %891 = vrot.lane.b32.xlu0 %v267, 72
    %v892 = vpop.permute.xlu0 %891
    %893 = vrot.lane.b32.xlu0 %v272, 72
    %v894 = vpop.permute.xlu0 %893
    %v895 = vsel %vm281, %v888, 0
    %v897 = vsel %vm281, %v890, 0
    %v899 = vsel %vm281, %v892, 0
    %v901 = vsel %vm281, %v894, 0
    %903 = vmatprep.subr.mxu0 0.0
    %904 = vmatpush1.xpose.msra.mxu0 %v899
    %905 = vmatprep.subr.mxu0 0.0
    %906 = vmatpush1.xpose.msra.mxu0 %v901
    %907 = vmatprep.subr.mxu0 0.0
    %908 = vmatpush1.xpose.msra.mxu0 0.0
    %909 = vmatprep.subr.mxu0 0.0
    %910 = vmatpush1.xpose.msra.mxu0 0.0
    %911 = vmatprep.subr.mxu0 0.0
    %912 = vmatpush1.xpose.msra.mxu0 0.0
    %913 = vmatprep.subr.mxu0 0.0
    %914 = vmatpush1.xpose.msra.mxu0 0.0
    %915 = vmatprep.subr.mxu0 0.0
    %916 = vmatpush1.xpose.msra.mxu0 0.0
    %917 = vmatprep.subr.mxu0 0.0
    %918 = vmatpush1.xpose.msra.mxu0 0.0
    %919 = vmatprep.subr.mxu0 0.0
    %920 = vmatpush1.xpose.msra.mxu0 0.0
    %921 = vmatprep.subr.mxu0 0.0
    %922 = vmatpush1.xpose.msra.mxu0 0.0
    %923 = vmatprep.subr.mxu0 0.0
    %924 = vmatpush1.xpose.msra.mxu0 0.0
    %925 = vmatprep.subr.mxu0 0.0
    %926 = vmatpush1.xpose.msra.mxu0 0.0
    %927 = vmatprep.subr.mxu0 0.0
    %928 = vmatpush1.xpose.msra.mxu0 0.0
    %929 = vmatprep.subr.mxu0 0.0
    %930 = vmatpush1.xpose.msra.mxu0 0.0
    %931 = vmatprep.subr.mxu0 0.0
    %932 = vmatpush1.xpose.msra.mxu0 0.0
    %933 = vmatprep.subr.mxu0 0.0
    %934 = vmatpush1.xpose.msra.mxu0 0.0
    %935 = vmatprep.subr.mxu0 0.0
    %936 = vmatpush1.xpose.msra.mxu0 0.0
    %937 = vmatprep.subr.mxu0 0.0
    %938 = vmatpush1.xpose.msra.mxu0 0.0
    %939 = vmatprep.subr.mxu0 0.0
    %940 = vmatpush1.xpose.msra.mxu0 0.0
    %941 = vmatprep.subr.mxu0 0.0
    %942 = vmatpush1.xpose.msra.mxu0 0.0
    %943 = vmatprep.subr.mxu0 0.0
    %944 = vmatpush1.xpose.msra.mxu0 0.0
    %945 = vmatprep.subr.mxu0 0.0
    %946 = vmatpush1.xpose.msra.mxu0 0.0
    %947 = vmatprep.subr.mxu0 0.0
    %948 = vmatpush1.xpose.msra.mxu0 0.0
    %949 = vmatprep.subr.mxu0 0.0
    %950 = vmatpush1.xpose.msra.mxu0 0.0
    %951 = vmatprep.subr.mxu0 0.0
    %952 = vmatpush1.xpose.msra.mxu0 0.0
    %953 = vmatprep.subr.mxu0 0.0
    %954 = vmatpush1.xpose.msra.mxu0 0.0
    %955 = vmatprep.subr.mxu0 0.0
    %956 = vmatpush1.xpose.msra.mxu0 0.0
    %957 = vmatprep.subr.mxu0 0.0
    %958 = vmatpush1.xpose.msra.mxu0 0.0
    %959 = vmatprep.subr.mxu0 0.0
    %960 = vmatpush1.xpose.msra.mxu0 0.0
    %961 = vmatprep.subr.mxu0 0.0
    %962 = vmatpush1.xpose.msra.mxu0 0.0
    %963 = vmatprep.subr.mxu0 0.0
    %964 = vmatpush1.xpose.msra.mxu0 0.0
    %965 = vmatprep.subr.mxu0 0.0
    %966 = vmatpush1.xpose.msra.mxu0 0.0
    %967 = vmatprep.mubr.f32.mxu0 0.0
    %968 = vmatmul.mubr.f32.gmra.mrb[0].mxu0 %v895
    %v969 = vpop.f32.mrb[0].mxu0
    %v970 = vadd.f32 0.0, %v969
    %v971 = vpop.f32.mrb[0].mxu0
    %972 = vmatprep.mubr.f32.mxu0 0.0
    %973 = vmatmul.mubr.f32.gmra.mrb[0].mxu0 %v897
    %v974 = vpop.f32.mrb[0].mxu0
    %v975 = vadd.f32 0.0, %v974
    %v976 = vpop.f32.mrb[0].mxu0
    %977 = vdwg.mxu0
    %v978 = vmul.f32 %v970, 0.17677669
    %v979 = vmul.f32 %v975, 0.17677669
    %v980 = vadd.f32 %v978, %v146
    %v981 = vadd.f32 %v979, %v147
    %v982 = vsel %vm369, %v980, -inf
    %983 = vmax.xlane.f32.xlu0 %v982
    %v984 = vpop.xlane.xlu0 %983
    %v985 = vsel %vm369, %v981, -inf
    %986 = vmax.xlane.f32.xlu0 %v985
    %v987 = vpop.xlane.xlu0 %986
    %v988 = vsub.f32 %v980, %v984
    %v989 = vsub.f32 %v981, %v987
    %v990 = vmul.f32 %v988, 1.442695
    %v991 = vpow.pop %v990
    %v992 = vmul.f32 %v989, 1.442695
    %v993 = vpow.pop %v992
    %v994 = vsel %vm369, %v991, 0.0
    %995 = vadd.xlane.f32.xlu0 %v994
    %v996 = vpop.xlane.xlu0 %995
    %v997 = vsel %vm369, %v993, 0.0
    %998 = vadd.xlane.f32.xlu0 %v997
    %v999 = vpop.xlane.xlu0 %998
    %v1000 = vrcp.pop %v996
    %v1001 = vrcp.pop %v999
    %v1002 = vmul.f32 %v991, %v1000
    %v1003 = vmul.f32 %v993, %v1001
    %1004 = vrot.lane.b32.xlu0 %v267, 40
    %v1005 = vpop.permute.xlu0 %1004
    %1006 = vrot.lane.b32.xlu0 %v272, 40
    %v1007 = vpop.permute.xlu0 %1006
    %v1011 = vsel %vm369, %v1002, 0
    %v1014 = vsel %vm369, %v1003, 0
    %1016 = vmatprep.subr.mxu0 0.0
    %1017 = vmatpush1.msra.mxu0 %v1005
    %1018 = vmatprep.subr.mxu0 0.0
    %1019 = vmatpush1.msra.mxu0 %v1007
    %1020 = vmatprep.subr.mxu0 0.0
    %1021 = vmatpush1.msra.mxu0 0.0
    %1022 = vmatprep.subr.mxu0 0.0
    %1023 = vmatpush1.msra.mxu0 0.0
    %1024 = vmatprep.subr.mxu0 0.0
    %1025 = vmatpush1.msra.mxu0 0.0
    %1026 = vmatprep.subr.mxu0 0.0
    %1027 = vmatpush1.msra.mxu0 0.0
    %1028 = vmatprep.subr.mxu0 0.0
    %1029 = vmatpush1.msra.mxu0 0.0
    %1030 = vmatprep.subr.mxu0 0.0
    %1031 = vmatpush1.msra.mxu0 0.0
    %1032 = vmatprep.subr.mxu0 0.0
    %1033 = vmatpush1.msra.mxu0 0.0
    %1034 = vmatprep.subr.mxu0 0.0
    %1035 = vmatpush1.msra.mxu0 0.0
    %1036 = vmatprep.subr.mxu0 0.0
    %1037 = vmatpush1.msra.mxu0 0.0
    %1038 = vmatprep.subr.mxu0 0.0
    %1039 = vmatpush1.msra.mxu0 0.0
    %1040 = vmatprep.subr.mxu0 0.0
    %1041 = vmatpush1.msra.mxu0 0.0
    %1042 = vmatprep.subr.mxu0 0.0
    %1043 = vmatpush1.msra.mxu0 0.0
    %1044 = vmatprep.subr.mxu0 0.0
    %1045 = vmatpush1.msra.mxu0 0.0
    %1046 = vmatprep.subr.mxu0 0.0
    %1047 = vmatpush1.msra.mxu0 0.0
    %1048 = vmatprep.subr.mxu0 0.0
    %1049 = vmatpush1.msra.mxu0 0.0
    %1050 = vmatprep.subr.mxu0 0.0
    %1051 = vmatpush1.msra.mxu0 0.0
    %1052 = vmatprep.subr.mxu0 0.0
    %1053 = vmatpush1.msra.mxu0 0.0
    %1054 = vmatprep.subr.mxu0 0.0
    %1055 = vmatpush1.msra.mxu0 0.0
    %1056 = vmatprep.subr.mxu0 0.0
    %1057 = vmatpush1.msra.mxu0 0.0
    %1058 = vmatprep.subr.mxu0 0.0
    %1059 = vmatpush1.msra.mxu0 0.0
    %1060 = vmatprep.subr.mxu0 0.0
    %1061 = vmatpush1.msra.mxu0 0.0
    %1062 = vmatprep.subr.mxu0 0.0
    %1063 = vmatpush1.msra.mxu0 0.0
    %1064 = vmatprep.subr.mxu0 0.0
    %1065 = vmatpush1.msra.mxu0 0.0
    %1066 = vmatprep.subr.mxu0 0.0
    %1067 = vmatpush1.msra.mxu0 0.0
    %1068 = vmatprep.subr.mxu0 0.0
    %1069 = vmatpush1.msra.mxu0 0.0
    %1070 = vmatprep.subr.mxu0 0.0
    %1071 = vmatpush1.msra.mxu0 0.0
    %1072 = vmatprep.subr.mxu0 0.0
    %1073 = vmatpush1.msra.mxu0 0.0
    %1074 = vmatprep.subr.mxu0 0.0
    %1075 = vmatpush1.msra.mxu0 0.0
    %1076 = vmatprep.subr.mxu0 0.0
    %1077 = vmatpush1.msra.mxu0 0.0
    %1078 = vmatprep.subr.mxu0 0.0
    %1079 = vmatpush1.msra.mxu0 0.0
    %1080 = vmatprep.mubr.f32.mxu0 0.0
    %1081 = vmatmul.mubr.f32.gmra.mrb[0].mxu0 %v1011
    %v1082 = vpop.f32.mrb[0].mxu0
    %v1083 = vadd.f32 0.0, %v1082
    %v1084 = vpop.f32.mrb[0].mxu0
    %1085 = vmatprep.mubr.f32.mxu0 0.0
    %1086 = vmatmul.mubr.f32.gmra.mrb[0].mxu0 %v1014
    %v1087 = vpop.f32.mrb[0].mxu0
    %v1088 = vadd.f32 0.0, %v1087
    %v1089 = vpop.f32.mrb[0].mxu0
    %1090 = vdwg.mxu0
    %1093 = vrot.lane.b32.xlu0 %v675, 8
    %v1094 = vpop.permute.xlu0 %1093
    %1095 = vrot.lane.b32.xlu0 %v680, 8
    %v1096 = vpop.permute.xlu0 %1095
    %1101 = vrot.lane.b32.xlu0 %v879, 16
    %v1102 = vpop.permute.xlu0 %1101
    %1103 = vrot.lane.b32.xlu0 %v884, 16
    %v1104 = vpop.permute.xlu0 %1103
    %1109 = vrot.lane.b32.xlu0 %v1083, 24
    %v1110 = vpop.permute.xlu0 %1109
    %1111 = vrot.lane.b32.xlu0 %v1088, 24
    %v1112 = vpop.permute.xlu0 %1111
    %v1115 = vsel %vm281, %v471, %v1094
    %v1116 = vsel %vm281, %v476, %v1096
    %v1117 = vsel %vm369, %v1115, %v1102
    %v1118 = vsel %vm369, %v1116, %v1104
    %vm1119 = vcmask 195584
    %v1120 = vsel %vm1119, %v1117, %v1110
    %v1121 = vsel %vm1119, %v1118, %v1112
    %v1122 = vld [vmem:[#allocation2 + $0x80] sm:$0xff]
    %v1123 = vld [vmem:[#allocation2 + $0x88] sm:$0xff]
    %v1124 = vld [vmem:[#allocation2 + $0x90] sm:$0xff]
    %v1125 = vld [vmem:[#allocation2 + $0x98] sm:$0xff]
    %v1127 = vsel %vm150, %v1120, 0
    %v1130 = vsel %vm150, %v1121, 0
    %1132 = vmatprep.subr.mxu0 0.0
    %1133 = vmatpush1.msra.mxu0 %v1122
    %1134 = vmatprep.subr.mxu0 0.0
    %1135 = vmatpush1.msra.mxu0 %v1123
    %1136 = vmatprep.subr.mxu0 0.0
    %1137 = vmatpush1.msra.mxu0 %v1124
    %1138 = vmatprep.subr.mxu0 0.0
    %1139 = vmatpush1.msra.mxu0 %v1125
    %1140 = vmatprep.subr.mxu0 0.0
    %1141 = vmatpush1.msra.mxu0 0.0
    %1142 = vmatprep.subr.mxu0 0.0
    %1143 = vmatpush1.msra.mxu0 0.0
    %1144 = vmatprep.subr.mxu0 0.0
    %1145 = vmatpush1.msra.mxu0 0.0
    %1146 = vmatprep.subr.mxu0 0.0
    %1147 = vmatpush1.msra.mxu0 0.0
    %1148 = vmatprep.subr.mxu0 0.0
    %1149 = vmatpush1.msra.mxu0 0.0
    %1150 = vmatprep.subr.mxu0 0.0
    %1151 = vmatpush1.msra.mxu0 0.0
    %1152 = vmatprep.subr.mxu0 0.0
    %1153 = vmatpush1.msra.mxu0 0.0
    %1154 = vmatprep.subr.mxu0 0.0
    %1155 = vmatpush1.msra.mxu0 0.0
    %1156 = vmatprep.subr.mxu0 0.0
    %1157 = vmatpush1.msra.mxu0 0.0
    %1158 = vmatprep.subr.mxu0 0.0
    %1159 = vmatpush1.msra.mxu0 0.0
    %1160 = vmatprep.subr.mxu0 0.0
    %1161 = vmatpush1.msra.mxu0 0.0
    %1162 = vmatprep.subr.mxu0 0.0
    %1163 = vmatpush1.msra.mxu0 0.0
    %1164 = vmatprep.subr.mxu0 0.0
    %1165 = vmatpush1.msra.mxu0 0.0
    %1166 = vmatprep.subr.mxu0 0.0
    %1167 = vmatpush1.msra.mxu0 0.0
    %1168 = vmatprep.subr.mxu0 0.0
    %1169 = vmatpush1.msra.mxu0 0.0
    %1170 = vmatprep.subr.mxu0 0.0
    %1171 = vmatpush1.msra.mxu0 0.0
    %1172 = vmatprep.subr.mxu0 0.0
    %1173 = vmatpush1.msra.mxu0 0.0
    %1174 = vmatprep.subr.mxu0 0.0
    %1175 = vmatpush1.msra.mxu0 0.0
    %1176 = vmatprep.subr.mxu0 0.0
    %1177 = vmatpush1.msra.mxu0 0.0
    %1178 = vmatprep.subr.mxu0 0.0
    %1179 = vmatpush1.msra.mxu0 0.0
    %1180 = vmatprep.subr.mxu0 0.0
    %1181 = vmatpush1.msra.mxu0 0.0
    %1182 = vmatprep.subr.mxu0 0.0
    %1183 = vmatpush1.msra.mxu0 0.0
    %1184 = vmatprep.subr.mxu0 0.0
    %1185 = vmatpush1.msra.mxu0 0.0
    %1186 = vmatprep.subr.mxu0 0.0
    %1187 = vmatpush1.msra.mxu0 0.0
    %1188 = vmatprep.subr.mxu0 0.0
    %1189 = vmatpush1.msra.mxu0 0.0
    %1190 = vmatprep.subr.mxu0 0.0
    %1191 = vmatpush1.msra.mxu0 0.0
    %1192 = vmatprep.subr.mxu0 0.0
    %1193 = vmatpush1.msra.mxu0 0.0
    %1194 = vmatprep.subr.mxu0 0.0
    %1195 = vmatpush1.msra.mxu0 0.0
    %1196 = vmatprep.mubr.f32.mxu0 0.0
    %1197 = vmatmul.mubr.f32.gmra.mrb[0].mxu0 %v1127
    %v1198 = vpop.f32.mrb[0].mxu0
    %v1199 = vadd.f32 0.0, %v1198
    %v1200 = vpop.f32.mrb[0].mxu0
    %1201 = vmatprep.mubr.f32.mxu0 0.0
    %1202 = vmatmul.mubr.f32.gmra.mrb[0].mxu0 %v1130
    %v1203 = vpop.f32.mrb[0].mxu0
    %v1204 = vadd.f32 0.0, %v1203
    %v1205 = vpop.f32.mrb[0].mxu0
    %1206 = vdwg.mxu0
    %v1207 = vadd.f32 %v128, %v1199
    %v1208 = vadd.f32 %v133, %v1204
    %v1209 = vld [vmem:[#allocation2 + $0xa0] sm:$0x1]
    %v1210 = vlaneseq
    %v1211 = vshrl.u32 %v1210, 7
    %v1212 = vsub.s32 0, %v1211
    %v1213 = vrot.slane %v1209, %v1212
    %v1214 = vadd.f32 %v1207, %v1213
    %v1215 = vadd.f32 %v1208, %v1213
    %v1216 = vsel %vm150, %v1214, 0.0
    %1217 = vadd.xlane.f32.xlu0 %v1216
    %v1218 = vpop.xlane.xlu0 %1217
    %v1219 = vsel %vm150, %v1215, 0.0
    %1220 = vadd.xlane.f32.xlu0 %v1219
    %v1221 = vpop.xlane.xlu0 %1220
    %v1222 = vmul.f32 %v1218, %v157
    %v1223 = vmul.f32 %v1221, %v157
    %v1224 = vsub.f32 %v1214, %v1222
    %v1225 = vsub.f32 %v1215, %v1223
    %v1226 = vmul.f32 %v1224, %v1224
    %v1227 = vmul.f32 %v1225, %v1225
    %v1228 = vsel %vm150, %v1226, 0.0
    %1229 = vadd.xlane.f32.xlu0 %v1228
    %v1230 = vpop.xlane.xlu0 %1229
    %v1231 = vsel %vm150, %v1227, 0.0
    %1232 = vadd.xlane.f32.xlu0 %v1231
    %v1233 = vpop.xlane.xlu0 %1232
    %v1234 = vmul.f32 %v1230, %v157
    %v1235 = vmul.f32 %v1233, %v157
    %v1236 = vadd.f32 %v1234, 1e-05
    %v1237 = vadd.f32 %v1235, 1e-05
    %v1238 = vrsqrt.pop %v1236
    %v1239 = vrsqrt.pop %v1237
    %v1240 = vmul.f32 %v1224, %v1238
    %v1241 = vmul.f32 %v1225, %v1239
    %v1242 = vlaneseq
    %v1243 = vshrl.u32 %v1242, 7
    %v1244 = vsub.s32 1, %v1243
    %v1245 = vrot.slane %v148, %v1244
    %v1246 = vmul.f32 %v1240, %v1245
    %v1247 = vmul.f32 %v1241, %v1245
    %v1248 = vlaneseq
    %v1249 = vshrl.u32 %v1248, 7
    %v1250 = vsub.s32 1, %v1249
    %v1251 = vrot.slane %v149, %v1250
    %v1252 = vadd.f32 %v1246, %v1251
    %v1253 = vadd.f32 %v1247, %v1251
    %v1254 = vld [vmem:[#allocation2 + $0xa8] sm:$0xff]
    %v1255 = vld [vmem:[#allocation2 + $0xb0] sm:$0xff]
    %v1256 = vld [vmem:[#allocation2 + $0xb8] sm:$0xff]
    %v1257 = vld [vmem:[#allocation2 + $0xc0] sm:$0xff]
    %v1258 = vld [vmem:[#allocation2 + $0xc8] sm:$0x1]
    %v1259 = vlaneseq
    %v1260 = vshrl.u32 %v1259, 7
    %v1261 = vsub.s32 0, %v1260
    %v1262 = vrot.slane %v1258, %v1261
    %v1264 = vsel %vm150, %v1252, 0
    %v1267 = vsel %vm150, %v1253, 0
    %1269 = vmatprep.subr.mxu0 0.0
    %1270 = vmatpush1.msra.mxu0 %v1254
    %1271 = vmatprep.subr.mxu0 0.0
    %1272 = vmatpush1.msra.mxu0 %v1255
    %1273 = vmatprep.subr.mxu0 0.0
    %1274 = vmatpush1.msra.mxu0 %v1256
    %1275 = vmatprep.subr.mxu0 0.0
    %1276 = vmatpush1.msra.mxu0 %v1257
    %1277 = vmatprep.subr.mxu0 0.0
    %1278 = vmatpush1.msra.mxu0 0.0
    %1279 = vmatprep.subr.mxu0 0.0
    %1280 = vmatpush1.msra.mxu0 0.0
    %1281 = vmatprep.subr.mxu0 0.0
    %1282 = vmatpush1.msra.mxu0 0.0
    %1283 = vmatprep.subr.mxu0 0.0
    %1284 = vmatpush1.msra.mxu0 0.0
    %1285 = vmatprep.subr.mxu0 0.0
    %1286 = vmatpush1.msra.mxu0 0.0
    %1287 = vmatprep.subr.mxu0 0.0
    %1288 = vmatpush1.msra.mxu0 0.0
    %1289 = vmatprep.subr.mxu0 0.0
    %1290 = vmatpush1.msra.mxu0 0.0
    %1291 = vmatprep.subr.mxu0 0.0
    %1292 = vmatpush1.msra.mxu0 0.0
    %1293 = vmatprep.subr.mxu0 0.0
    %1294 = vmatpush1.msra.mxu0 0.0
    %1295 = vmatprep.subr.mxu0 0.0
    %1296 = vmatpush1.msra.mxu0 0.0
    %1297 = vmatprep.subr.mxu0 0.0
    %1298 = vmatpush1.msra.mxu0 0.0
    %1299 = vmatprep.subr.mxu0 0.0
    %1300 = vmatpush1.msra.mxu0 0.0
    %1301 = vmatprep.subr.mxu0 0.0
    %1302 = vmatpush1.msra.mxu0 0.0
    %1303 = vmatprep.subr.mxu0 0.0
    %1304 = vmatpush1.msra.mxu0 0.0
    %1305 = vmatprep.subr.mxu0 0.0
    %1306 = vmatpush1.msra.mxu0 0.0
    %1307 = vmatprep.subr.mxu0 0.0
    %1308 = vmatpush1.msra.mxu0 0.0
    %1309 = vmatprep.subr.mxu0 0.0
    %1310 = vmatpush1.msra.mxu0 0.0
    %1311 = vmatprep.subr.mxu0 0.0
    %1312 = vmatpush1.msra.mxu0 0.0
    %1313 = vmatprep.subr.mxu0 0.0
    %1314 = vmatpush1.msra.mxu0 0.0
    %1315 = vmatprep.subr.mxu0 0.0
    %1316 = vmatpush1.msra.mxu0 0.0
    %1317 = vmatprep.subr.mxu0 0.0
    %1318 = vmatpush1.msra.mxu0 0.0
    %1319 = vmatprep.subr.mxu0 0.0
    %1320 = vmatpush1.msra.mxu0 0.0
    %1321 = vmatprep.subr.mxu0 0.0
    %1322 = vmatpush1.msra.mxu0 0.0
    %1323 = vmatprep.subr.mxu0 0.0
    %1324 = vmatpush1.msra.mxu0 0.0
    %1325 = vmatprep.subr.mxu0 0.0
    %1326 = vmatpush1.msra.mxu0 0.0
    %1327 = vmatprep.subr.mxu0 0.0
    %1328 = vmatpush1.msra.mxu0 0.0
    %1329 = vmatprep.subr.mxu0 0.0
    %1330 = vmatpush1.msra.mxu0 0.0
    %1331 = vmatprep.subr.mxu0 0.0
    %1332 = vmatpush1.msra.mxu0 0.0
    %1333 = vmatprep.mubr.f32.mxu0 0.0
    %1334 = vmatmul.mubr.f32.gmra.mrb[0].mxu0 %v1264
    %v1335 = vpop.f32.mrb[0].mxu0
    %v1336 = vadd.f32 %v1262, %v1335
    %v1337 = vpop.f32.mrb[0].mxu0
    %1338 = vmatprep.mubr.f32.mxu0 0.0
    %1339 = vmatmul.mubr.f32.gmra.mrb[0].mxu0 %v1267
    %v1340 = vpop.f32.mrb[0].mxu0
    %v1341 = vadd.f32 %v1262, %v1340
    %v1342 = vpop.f32.mrb[0].mxu0
    %1343 = vdwg.mxu0
    %v1344 = vmax.f32 %v1336, 0.0
    %v1345 = vmax.f32 %v1341, 0.0
    %v1346 = vld [vmem:[#allocation2 + $0xd0] sm:$0xff]
    %v1347 = vld [vmem:[#allocation2 + $0xd8] sm:$0xff]
    %v1348 = vld [vmem:[#allocation2 + $0xe0] sm:$0xff]
    %v1349 = vld [vmem:[#allocation2 + $0xe8] sm:$0xff]
    %v1350 = vld [vmem:[#allocation2 + $0xf0] sm:$0xff]
    %v1351 = vld [vmem:[#allocation2 + $0xf8] sm:$0xff]
    %v1352 = vld [vmem:[#allocation2 + $0x100] sm:$0xff]
    %v1353 = vld [vmem:[#allocation2 + $0x108] sm:$0xff]
    %v1354 = vld [vmem:[#allocation2 + $0x110] sm:$0xff]
    %v1355 = vld [vmem:[#allocation2 + $0x118] sm:$0xff]
    %v1356 = vld [vmem:[#allocation2 + $0x120] sm:$0xff]
    %v1357 = vld [vmem:[#allocation2 + $0x128] sm:$0xff]
    %v1358 = vld [vmem:[#allocation2 + $0x130] sm:$0xff]
    %v1359 = vld [vmem:[#allocation2 + $0x138] sm:$0xff]
    %v1360 = vld [vmem:[#allocation2 + $0x140] sm:$0xff]
    %v1361 = vld [vmem:[#allocation2 + $0x148] sm:$0xff]
    %v1362 = vld [vmem:[#allocation2 + $0x150] sm:$0x1]
    %v1363 = vlaneseq
    %v1364 = vshrl.u32 %v1363, 7
    %v1365 = vsub.s32 0, %v1364
    %v1366 = vrot.slane %v1362, %v1365
    %1367 = vmatprep.subr.mxu0 0.0
    %1368 = vmatpush1.msra.mxu0 %v1346
    %1369 = vmatprep.subr.mxu0 0.0
    %1370 = vmatpush1.msra.mxu0 %v1347
    %1371 = vmatprep.subr.mxu0 0.0
    %1372 = vmatpush1.msra.mxu0 %v1348
    %1373 = vmatprep.subr.mxu0 0.0
    %1374 = vmatpush1.msra.mxu0 %v1349
    %1375 = vmatprep.subr.mxu0 0.0
    %1376 = vmatpush1.msra.mxu0 %v1350
    %1377 = vmatprep.subr.mxu0 0.0
    %1378 = vmatpush1.msra.mxu0 %v1351
    %1379 = vmatprep.subr.mxu0 0.0
    %1380 = vmatpush1.msra.mxu0 %v1352
    %1381 = vmatprep.subr.mxu0 0.0
    %1382 = vmatpush1.msra.mxu0 %v1353
    %1383 = vmatprep.subr.mxu0 0.0
    %1384 = vmatpush1.msra.mxu0 %v1354
    %1385 = vmatprep.subr.mxu0 0.0
    %1386 = vmatpush1.msra.mxu0 %v1355
    %1387 = vmatprep.subr.mxu0 0.0
    %1388 = vmatpush1.msra.mxu0 %v1356
    %1389 = vmatprep.subr.mxu0 0.0
    %1390 = vmatpush1.msra.mxu0 %v1357
    %1391 = vmatprep.subr.mxu0 0.0
    %1392 = vmatpush1.msra.mxu0 %v1358
    %1393 = vmatprep.subr.mxu0 0.0
    %1394 = vmatpush1.msra.mxu0 %v1359
    %1395 = vmatprep.subr.mxu0 0.0
    %1396 = vmatpush1.msra.mxu0 %v1360
    %1397 = vmatprep.subr.mxu0 0.0
    %1398 = vmatpush1.msra.mxu0 %v1361
    %1399 = vmatprep.subr.mxu0 0.0
    %1400 = vmatpush1.msra.mxu0 0.0
    %1401 = vmatprep.subr.mxu0 0.0
    %1402 = vmatpush1.msra.mxu0 0.0
    %1403 = vmatprep.subr.mxu0 0.0
    %1404 = vmatpush1.msra.mxu0 0.0
    %1405 = vmatprep.subr.mxu0 0.0
    %1406 = vmatpush1.msra.mxu0 0.0
    %1407 = vmatprep.subr.mxu0 0.0
    %1408 = vmatpush1.msra.mxu0 0.0
    %1409 = vmatprep.subr.mxu0 0.0
    %1410 = vmatpush1.msra.mxu0 0.0
    %1411 = vmatprep.subr.mxu0 0.0
    %1412 = vmatpush1.msra.mxu0 0.0
    %1413 = vmatprep.subr.mxu0 0.0
    %1414 = vmatpush1.msra.mxu0 0.0
    %1415 = vmatprep.subr.mxu0 0.0
    %1416 = vmatpush1.msra.mxu0 0.0
    %1417 = vmatprep.subr.mxu0 0.0
    %1418 = vmatpush1.msra.mxu0 0.0
    %1419 = vmatprep.subr.mxu0 0.0
    %1420 = vmatpush1.msra.mxu0 0.0
    %1421 = vmatprep.subr.mxu0 0.0
    %1422 = vmatpush1.msra.mxu0 0.0
    %1423 = vmatprep.subr.mxu0 0.0
    %1424 = vmatpush1.msra.mxu0 0.0
    %1425 = vmatprep.subr.mxu0 0.0
    %1426 = vmatpush1.msra.mxu0 0.0
    %1427 = vmatprep.subr.mxu0 0.0
    %1428 = vmatpush1.msra.mxu0 0.0
    %1429 = vmatprep.subr.mxu0 0.0
    %1430 = vmatpush1.msra.mxu0 0.0
    %1431 = vmatprep.mubr.f32.mxu0 0.0
    %1432 = vmatmul.mubr.f32.gmra.mrb[0].mxu0 %v1344
    %v1433 = vpop.f32.mrb[0].mxu0
    %v1434 = vadd.f32 %v1366, %v1433
    %v1435 = vpop.f32.mrb[0].mxu0
    %1436 = vmatprep.mubr.f32.mxu0 0.0
    %1437 = vmatmul.mubr.f32.gmra.mrb[0].mxu0 %v1345
    %v1438 = vpop.f32.mrb[0].mxu0
    %v1439 = vadd.f32 %v1366, %v1438
    %v1440 = vpop.f32.mrb[0].mxu0
    %1441 = vdwg.mxu0
    %v1442 = vadd.f32 %v1214, %v1434
    %v1443 = vadd.f32 %v1215, %v1439
    %v1444 = vsel %vm150, %v1442, 0.0
    %1445 = vadd.xlane.f32.xlu0 %v1444
    %v1446 = vpop.xlane.xlu0 %1445
    %v1447 = vsel %vm150, %v1443, 0.0
    %1448 = vadd.xlane.f32.xlu0 %v1447
    %v1449 = vpop.xlane.xlu0 %1448
    %v1450 = vmul.f32 %v1446, %v157
    %v1451 = vmul.f32 %v1449, %v157
    %v1452 = vsub.f32 %v1442, %v1450
    %v1453 = vsub.f32 %v1443, %v1451
    %v1454 = vmul.f32 %v1452, %v1452
    %v1455 = vmul.f32 %v1453, %v1453
    %v1456 = vsel %vm150, %v1454, 0.0
    %1457 = vadd.xlane.f32.xlu0 %v1456
    %v1458 = vpop.xlane.xlu0 %1457
    %v1459 = vsel %vm150, %v1455, 0.0
    %1460 = vadd.xlane.f32.xlu0 %v1459
    %v1461 = vpop.xlane.xlu0 %1460
    %v1462 = vmul.f32 %v1458, %v157
    %v1463 = vmul.f32 %v1461, %v157
    %v1464 = vadd.f32 %v1462, 1e-05
    %v1465 = vadd.f32 %v1463, 1e-05
    %v1466 = vrsqrt.pop %v1464
    %v1467 = vrsqrt.pop %v1465
    %v1468 = vmul.f32 %v1452, %v1466
    %v1469 = vmul.f32 %v1453, %v1467
    %v1470 = vlaneseq
    %v1471 = vshrl.u32 %v1470, 7
    %v1472 = vsub.s32 2, %v1471
    %v1473 = vrot.slane %v148, %v1472
    %v1474 = vmul.f32 %v1468, %v1473
    %v1475 = vmul.f32 %v1469, %v1473
    %v1476 = vlaneseq
    %v1477 = vshrl.u32 %v1476, 7
    %v1478 = vsub.s32 2, %v1477
    %v1479 = vrot.slane %v149, %v1478
    %v1480 = vadd.f32 %v1474, %v1479
    %v1481 = vadd.f32 %v1475, %v1479
    %v1482 = vld [vmem:[#allocation2 + $0x158] sm:$0xff]
    %v1483 = vld [vmem:[#allocation2 + $0x160] sm:$0xff]
    %v1484 = vld [vmem:[#allocation2 + $0x168] sm:$0xff]
    %v1485 = vld [vmem:[#allocation2 + $0x170] sm:$0xff]
    %v1487 = vsel %vm150, %v1480, 0
    %v1490 = vsel %vm150, %v1481, 0
    %1492 = vmatprep.subr.mxu0 0.0
    %1493 = vmatpush1.msra.mxu0 %v1482
    %1494 = vmatprep.subr.mxu0 0.0
    %1495 = vmatpush1.msra.mxu0 %v1483
    %1496 = vmatprep.subr.mxu0 0.0
    %1497 = vmatpush1.msra.mxu0 %v1484
    %1498 = vmatprep.subr.mxu0 0.0
    %1499 = vmatpush1.msra.mxu0 %v1485
    %1500 = vmatprep.subr.mxu0 0.0
    %1501 = vmatpush1.msra.mxu0 0.0
    %1502 = vmatprep.subr.mxu0 0.0
    %1503 = vmatpush1.msra.mxu0 0.0
    %1504 = vmatprep.subr.mxu0 0.0
    %1505 = vmatpush1.msra.mxu0 0.0
    %1506 = vmatprep.subr.mxu0 0.0
    %1507 = vmatpush1.msra.mxu0 0.0
    %1508 = vmatprep.subr.mxu0 0.0
    %1509 = vmatpush1.msra.mxu0 0.0
    %1510 = vmatprep.subr.mxu0 0.0
    %1511 = vmatpush1.msra.mxu0 0.0
    %1512 = vmatprep.subr.mxu0 0.0
    %1513 = vmatpush1.msra.mxu0 0.0
    %1514 = vmatprep.subr.mxu0 0.0
    %1515 = vmatpush1.msra.mxu0 0.0
    %1516 = vmatprep.subr.mxu0 0.0
    %1517 = vmatpush1.msra.mxu0 0.0
    %1518 = vmatprep.subr.mxu0 0.0
    %1519 = vmatpush1.msra.mxu0 0.0
    %1520 = vmatprep.subr.mxu0 0.0
    %1521 = vmatpush1.msra.mxu0 0.0
    %1522 = vmatprep.subr.mxu0 0.0
    %1523 = vmatpush1.msra.mxu0 0.0
    %1524 = vmatprep.subr.mxu0 0.0
    %1525 = vmatpush1.msra.mxu0 0.0
    %1526 = vmatprep.subr.mxu0 0.0
    %1527 = vmatpush1.msra.mxu0 0.0
    %1528 = vmatprep.subr.mxu0 0.0
    %1529 = vmatpush1.msra.mxu0 0.0
    %1530 = vmatprep.subr.mxu0 0.0
    %1531 = vmatpush1.msra.mxu0 0.0
    %1532 = vmatprep.subr.mxu0 0.0
    %1533 = vmatpush1.msra.mxu0 0.0
    %1534 = vmatprep.subr.mxu0 0.0
    %1535 = vmatpush1.msra.mxu0 0.0
    %1536 = vmatprep.subr.mxu0 0.0
    %1537 = vmatpush1.msra.mxu0 0.0
    %1538 = vmatprep.subr.mxu0 0.0
    %1539 = vmatpush1.msra.mxu0 0.0
    %1540 = vmatprep.subr.mxu0 0.0
    %1541 = vmatpush1.msra.mxu0 0.0
    %1542 = vmatprep.subr.mxu0 0.0
    %1543 = vmatpush1.msra.mxu0 0.0
    %1544 = vmatprep.subr.mxu0 0.0
    %1545 = vmatpush1.msra.mxu0 0.0
    %1546 = vmatprep.subr.mxu0 0.0
    %1547 = vmatpush1.msra.mxu0 0.0
    %1548 = vmatprep.subr.mxu0 0.0
    %1549 = vmatpush1.msra.mxu0 0.0
    %1550 = vmatprep.subr.mxu0 0.0
    %1551 = vmatpush1.msra.mxu0 0.0
    %1552 = vmatprep.subr.mxu0 0.0
    %1553 = vmatpush1.msra.mxu0 0.0
    %1554 = vmatprep.subr.mxu0 0.0
    %1555 = vmatpush1.msra.mxu0 0.0
    %1556 = vmatprep.mubr.f32.mxu0 0.0
    %1557 = vmatmul.mubr.f32.gmra.mrb[0].mxu0 %v1487
    %v1558 = vpop.f32.mrb[0].mxu0
    %v1559 = vadd.f32 0.0, %v1558
    %v1560 = vpop.f32.mrb[0].mxu0
    %1561 = vmatprep.mubr.f32.mxu0 0.0
    %1562 = vmatmul.mubr.f32.gmra.mrb[0].mxu0 %v1490
    %v1563 = vpop.f32.mrb[0].mxu0
    %v1564 = vadd.f32 0.0, %v1563
    %v1565 = vpop.f32.mrb[0].mxu0
    %1566 = vdwg.mxu0
    %1569 = vrot.lane.b32.xlu0 %v1559, 96
    %v1570 = vpop.permute.xlu0 %1569
    %1571 = vrot.lane.b32.xlu0 %v1564, 96
    %v1572 = vpop.permute.xlu0 %1571
    %v1573 = vsel %vm281, %v1559, 0
    %v1575 = vsel %vm281, %v1564, 0
    %v1577 = vsel %vm281, %v1570, 0
    %v1579 = vsel %vm281, %v1572, 0
    %1581 = vmatprep.subr.mxu0 0.0
    %1582 = vmatpush1.xpose.msra.mxu0 %v1577
    %1583 = vmatprep.subr.mxu0 0.0
    %1584 = vmatpush1.xpose.msra.mxu0 %v1579
    %1585 = vmatprep.subr.mxu0 0.0
    %1586 = vmatpush1.xpose.msra.mxu0 0.0
    %1587 = vmatprep.subr.mxu0 0.0
    %1588 = vmatpush1.xpose.msra.mxu0 0.0
    %1589 = vmatprep.subr.mxu0 0.0
    %1590 = vmatpush1.xpose.msra.mxu0 0.0
    %1591 = vmatprep.subr.mxu0 0.0
    %1592 = vmatpush1.xpose.msra.mxu0 0.0
    %1593 = vmatprep.subr.mxu0 0.0
    %1594 = vmatpush1.xpose.msra.mxu0 0.0
    %1595 = vmatprep.subr.mxu0 0.0
    %1596 = vmatpush1.xpose.msra.mxu0 0.0
    %1597 = vmatprep.subr.mxu0 0.0
    %1598 = vmatpush1.xpose.msra.mxu0 0.0
    %1599 = vmatprep.subr.mxu0 0.0
    %1600 = vmatpush1.xpose.msra.mxu0 0.0
    %1601 = vmatprep.subr.mxu0 0.0
    %1602 = vmatpush1.xpose.msra.mxu0 0.0
    %1603 = vmatprep.subr.mxu0 0.0
    %1604 = vmatpush1.xpose.msra.mxu0 0.0
    %1605 = vmatprep.subr.mxu0 0.0
    %1606 = vmatpush1.xpose.msra.mxu0 0.0
    %1607 = vmatprep.subr.mxu0 0.0
    %1608 = vmatpush1.xpose.msra.mxu0 0.0
    %1609 = vmatprep.subr.mxu0 0.0
    %1610 = vmatpush1.xpose.msra.mxu0 0.0
    %1611 = vmatprep.subr.mxu0 0.0
    %1612 = vmatpush1.xpose.msra.mxu0 0.0
    %1613 = vmatprep.subr.mxu0 0.0
    %1614 = vmatpush1.xpose.msra.mxu0 0.0
    %1615 = vmatprep.subr.mxu0 0.0
    %1616 = vmatpush1.xpose.msra.mxu0 0.0
    %1617 = vmatprep.subr.mxu0 0.0
    %1618 = vmatpush1.xpose.msra.mxu0 0.0
    %1619 = vmatprep.subr.mxu0 0.0
    %1620 = vmatpush1.xpose.msra.mxu0 0.0
    %1621 = vmatprep.subr.mxu0 0.0
    %1622 = vmatpush1.xpose.msra.mxu0 0.0
    %1623 = vmatprep.subr.mxu0 0.0
    %1624 = vmatpush1.xpose.msra.mxu0 0.0
    %1625 = vmatprep.subr.mxu0 0.0
    %1626 = vmatpush1.xpose.msra.mxu0 0.0
    %1627 = vmatprep.subr.mxu0 0.0
    %1628 = vmatpush1.xpose.msra.mxu0 0.0
    %1629 = vmatprep.subr.mxu0 0.0
    %1630 = vmatpush1.xpose.msra.mxu0 0.0
    %1631 = vmatprep.subr.mxu0 0.0
    %1632 = vmatpush1.xpose.msra.mxu0 0.0
    %1633 = vmatprep.subr.mxu0 0.0
    %1634 = vmatpush1.xpose.msra.mxu0 0.0
    %1635 = vmatprep.subr.mxu0 0.0
    %1636 = vmatpush1.xpose.msra.mxu0 0.0
    %1637 = vmatprep.subr.mxu0 0.0
    %1638 = vmatpush1.xpose.msra.mxu0 0.0
    %1639 = vmatprep.subr.mxu0 0.0
    %1640 = vmatpush1.xpose.msra.mxu0 0.0
    %1641 = vmatprep.subr.mxu0 0.0
    %1642 = vmatpush1.xpose.msra.mxu0 0.0
    %1643 = vmatprep.subr.mxu0 0.0
    %1644 = vmatpush1.xpose.msra.mxu0 0.0
    %1645 = vmatprep.mubr.f32.mxu0 0.0
    %1646 = vmatmul.mubr.f32.gmra.mrb[0].mxu0 %v1573
    %v1647 = vpop.f32.mrb[0].mxu0
    %v1648 = vadd.f32 0.0, %v1647
    %v1649 = vpop.f32.mrb[0].mxu0
    %1650 = vmatprep.mubr.f32.mxu0 0.0
    %1651 = vmatmul.mubr.f32.gmra.mrb[0].mxu0 %v1575
    %v1652 = vpop.f32.mrb[0].mxu0
    %v1653 = vadd.f32 0.0, %v1652
    %v1654 = vpop.f32.mrb[0].mxu0
    %1655 = vdwg.mxu0
    %v1656 = vmul.f32 %v1648, 0.17677669
    %v1657 = vmul.f32 %v1653, 0.17677669
    %v1658 = vadd.f32 %v1656, %v146
    %v1659 = vadd.f32 %v1657, %v147
    %v1660 = vsel %vm369, %v1658, -inf
    %1661 = vmax.xlane.f32.xlu0 %v1660
    %v1662 = vpop.xlane.xlu0 %1661
    %v1663 = vsel %vm369, %v1659, -inf
    %1664 = vmax.xlane.f32.xlu0 %v1663
    %v1665 = vpop.xlane.xlu0 %1664
    %v1666 = vsub.f32 %v1658, %v1662
    %v1667 = vsub.f32 %v1659, %v1665
    %v1668 = vmul.f32 %v1666, 1.442695
    %v1669 = vpow.pop %v1668
    %v1670 = vmul.f32 %v1667, 1.442695
    %v1671 = vpow.pop %v1670
    %v1672 = vsel %vm369, %v1669, 0.0
    %1673 = vadd.xlane.f32.xlu0 %v1672
    %v1674 = vpop.xlane.xlu0 %1673
    %v1675 = vsel %vm369, %v1671, 0.0
    %1676 = vadd.xlane.f32.xlu0 %v1675
    %v1677 = vpop.xlane.xlu0 %1676
    %v1678 = vrcp.pop %v1674
    %v1679 = vrcp.pop %v1677
    %v1680 = vmul.f32 %v1669, %v1678
    %v1681 = vmul.f32 %v1671, %v1679
    %1682 = vrot.lane.b32.xlu0 %v1559, 64
    %v1683 = vpop.permute.xlu0 %1682
    %1684 = vrot.lane.b32.xlu0 %v1564, 64
    %v1685 = vpop.permute.xlu0 %1684
    %v1689 = vsel %vm369, %v1680, 0
    %v1692 = vsel %vm369, %v1681, 0
    %1694 = vmatprep.subr.mxu0 0.0
    %1695 = vmatpush1.msra.mxu0 %v1683
    %1696 = vmatprep.subr.mxu0 0.0
    %1697 = vmatpush1.msra.mxu0 %v1685
    %1698 = vmatprep.subr.mxu0 0.0
    %1699 = vmatpush1.msra.mxu0 0.0
    %1700 = vmatprep.subr.mxu0 0.0
    %1701 = vmatpush1.msra.mxu0 0.0
    %1702 = vmatprep.subr.mxu0 0.0
    %1703 = vmatpush1.msra.mxu0 0.0
    %1704 = vmatprep.subr.mxu0 0.0
    %1705 = vmatpush1.msra.mxu0 0.0
    %1706 = vmatprep.subr.mxu0 0.0
    %1707 = vmatpush1.msra.mxu0 0.0
    %1708 = vmatprep.subr.mxu0 0.0
    %1709 = vmatpush1.msra.mxu0 0.0
    %1710 = vmatprep.subr.mxu0 0.0
    %1711 = vmatpush1.msra.mxu0 0.0
    %1712 = vmatprep.subr.mxu0 0.0
    %1713 = vmatpush1.msra.mxu0 0.0
    %1714 = vmatprep.subr.mxu0 0.0
    %1715 = vmatpush1.msra.mxu0 0.0
    %1716 = vmatprep.subr.mxu0 0.0
    %1717 = vmatpush1.msra.mxu0 0.0
    %1718 = vmatprep.subr.mxu0 0.0
    %1719 = vmatpush1.msra.mxu0 0.0
    %1720 = vmatprep.subr.mxu0 0.0
    %1721 = vmatpush1.msra.mxu0 0.0
    %1722 = vmatprep.subr.mxu0 0.0
    %1723 = vmatpush1.msra.mxu0 0.0
    %1724 = vmatprep.subr.mxu0 0.0
    %1725 = vmatpush1.msra.mxu0 0.0
    %1726 = vmatprep.subr.mxu0 0.0
    %1727 = vmatpush1.msra.mxu0 0.0
    %1728 = vmatprep.subr.mxu0 0.0
    %1729 = vmatpush1.msra.mxu0 0.0
    %1730 = vmatprep.subr.mxu0 0.0
    %1731 = vmatpush1.msra.mxu0 0.0
    %1732 = vmatprep.subr.mxu0 0.0
    %1733 = vmatpush1.msra.mxu0 0.0
    %1734 = vmatprep.subr.mxu0 0.0
    %1735 = vmatpush1.msra.mxu0 0.0
    %1736 = vmatprep.subr.mxu0 0.0
    %1737 = vmatpush1.msra.mxu0 0.0
    %1738 = vmatprep.subr.mxu0 0.0
    %1739 = vmatpush1.msra.mxu0 0.0
    %1740 = vmatprep.subr.mxu0 0.0
    %1741 = vmatpush1.msra.mxu0 0.0
    %1742 = vmatprep.subr.mxu0 0.0
    %1743 = vmatpush1.msra.mxu0 0.0
    %1744 = vmatprep.subr.mxu0 0.0
    %1745 = vmatpush1.msra.mxu0 0.0
    %1746 = vmatprep.subr.mxu0 0.0
    %1747 = vmatpush1.msra.mxu0 0.0
    %1748 = vmatprep.subr.mxu0 0.0
    %1749 = vmatpush1.msra.mxu0 0.0
    %1750 = vmatprep.subr.mxu0 0.0
    %1751 = vmatpush1.msra.mxu0 0.0
    %1752 = vmatprep.subr.mxu0 0.0
    %1753 = vmatpush1.msra.mxu0 0.0
    %1754 = vmatprep.subr.mxu0 0.0
    %1755 = vmatpush1.msra.mxu0 0.0
    %1756 = vmatprep.subr.mxu0 0.0
    %1757 = vmatpush1.msra.mxu0 0.0
    %1758 = vmatprep.mubr.f32.mxu0 0.0
    %1759 = vmatmul.mubr.f32.gmra.mrb[0].mxu0 %v1689
    %v1760 = vpop.f32.mrb[0].mxu0
    %v1761 = vadd.f32 0.0, %v1760
    %v1762 = vpop.f32.mrb[0].mxu0
    %1763 = vmatprep.mubr.f32.mxu0 0.0
    %1764 = vmatmul.mubr.f32.gmra.mrb[0].mxu0 %v1692
    %v1765 = vpop.f32.mrb[0].mxu0
    %v1766 = vadd.f32 0.0, %v1765
    %v1767 = vpop.f32.mrb[0].mxu0
    %1768 = vdwg.mxu0
    %1769 = vrot.lane.b32.xlu0 %v1559, 120
    %v1770 = vpop.permute.xlu0 %1769
    %1771 = vrot.lane.b32.xlu0 %v1564, 120
    %v1772 = vpop.permute.xlu0 %1771
    %1773 = vrot.lane.b32.xlu0 %v1559, 88
    %v1774 = vpop.permute.xlu0 %1773
    %1775 = vrot.lane.b32.xlu0 %v1564, 88
    %v1776 = vpop.permute.xlu0 %1775
    %v1777 = vsel %vm281, %v1770, 0
    %v1779 = vsel %vm281, %v1772, 0
    %v1781 = vsel %vm281, %v1774, 0
    %v1783 = vsel %vm281, %v1776, 0
    %1785 = vmatprep.subr.mxu0 0.0
    %1786 = vmatpush1.xpose.msra.mxu0 %v1781
    %1787 = vmatprep.subr.mxu0 0.0
    %1788 = vmatpush1.xpose.msra.mxu0 %v1783
    %1789 = vmatprep.subr.mxu0 0.0
    %1790 = vmatpush1.xpose.msra.mxu0 0.0
    %1791 = vmatprep.subr.mxu0 0.0
    %1792 = vmatpush1.xpose.msra.mxu0 0.0
    %1793 = vmatprep.subr.mxu0 0.0
    %1794 = vmatpush1.xpose.msra.mxu0 0.0
    %1795 = vmatprep.subr.mxu0 0.0
    %1796 = vmatpush1.xpose.msra.mxu0 0.0
    %1797 = vmatprep.subr.mxu0 0.0
    %1798 = vmatpush1.xpose.msra.mxu0 0.0
    %1799 = vmatprep.subr.mxu0 0.0
    %1800 = vmatpush1.xpose.msra.mxu0 0.0
    %1801 = vmatprep.subr.mxu0 0.0
    %1802 = vmatpush1.xpose.msra.mxu0 0.0
    %1803 = vmatprep.subr.mxu0 0.0
    %1804 = vmatpush1.xpose.msra.mxu0 0.0
    %1805 = vmatprep.subr.mxu0 0.0
    %1806 = vmatpush1.xpose.msra.mxu0 0.0
    %1807 = vmatprep.subr.mxu0 0.0
    %1808 = vmatpush1.xpose.msra.mxu0 0.0
    %1809 = vmatprep.subr.mxu0 0.0
    %1810 = vmatpush1.xpose.msra.mxu0 0.0
    %1811 = vmatprep.subr.mxu0 0.0
    %1812 = vmatpush1.xpose.msra.mxu0 0.0
    %1813 = vmatprep.subr.mxu0 0.0
    %1814 = vmatpush1.xpose.msra.mxu0 0.0
    %1815 = vmatprep.subr.mxu0 0.0
    %1816 = vmatpush1.xpose.msra.mxu0 0.0
    %1817 = vmatprep.subr.mxu0 0.0
    %1818 = vmatpush1.xpose.msra.mxu0 0.0
    %1819 = vmatprep.subr.mxu0 0.0
    %1820 = vmatpush1.xpose.msra.mxu0 0.0
    %1821 = vmatprep.subr.mxu0 0.0
    %1822 = vmatpush1.xpose.msra.mxu0 0.0
    %1823 = vmatprep.subr.mxu0 0.0
    %1824 = vmatpush1.xpose.msra.mxu0 0.0
    %1825 = vmatprep.subr.mxu0 0.0
    %1826 = vmatpush1.xpose.msra.mxu0 0.0
    %1827 = vmatprep.subr.mxu0 0.0
    %1828 = vmatpush1.xpose.msra.mxu0 0.0
    %1829 = vmatprep.subr.mxu0 0.0
    %1830 = vmatpush1.xpose.msra.mxu0 0.0
    %1831 = vmatprep.subr.mxu0 0.0
    %1832 = vmatpush1.xpose.msra.mxu0 0.0
    %1833 = vmatprep.subr.mxu0 0.0
    %1834 = vmatpush1.xpose.msra.mxu0 0.0
    %1835 = vmatprep.subr.mxu0 0.0
    %1836 = vmatpush1.xpose.msra.mxu0 0.0
    %1837 = vmatprep.subr.mxu0 0.0
    %1838 = vmatpush1.xpose.msra.mxu0 0.0
    %1839 = vmatprep.subr.mxu0 0.0
    %1840 = vmatpush1.xpose.msra.mxu0 0.0
    %1841 = vmatprep.subr.mxu0 0.0
    %1842 = vmatpush1.xpose.msra.mxu0 0.0
    %1843 = vmatprep.subr.mxu0 0.0
    %1844 = vmatpush1.xpose.msra.mxu0 0.0
    %1845 = vmatprep.subr.mxu0 0.0
    %1846 = vmatpush1.xpose.msra.mxu0 0.0
    %1847 = vmatprep.subr.mxu0 0.0
    %1848 = vmatpush1.xpose.msra.mxu0 0.0
    %1849 = vmatprep.mubr.f32.mxu0 0.0
    %1850 = vmatmul.mubr.f32.gmra.mrb[0].mxu0 %v1777
    %v1851 = vpop.f32.mrb[0].mxu0
    %v1852 = vadd.f32 0.0, %v1851
    %v1853 = vpop.f32.mrb[0].mxu0
    %1854 = vmatprep.mubr.f32.mxu0 0.0
    %1855 = vmatmul.mubr.f32.gmra.mrb[0].mxu0 %v1779
    %v1856 = vpop.f32.mrb[0].mxu0
    %v1857 = vadd.f32 0.0, %v1856
    %v1858 = vpop.f32.mrb[0].mxu0
    %1859 = vdwg.mxu0
    %v1860 = vmul.f32 %v1852, 0.17677669
    %v1861 = vmul.f32 %v1857, 0.17677669
    %v1862 = vadd.f32 %v1860, %v146
    %v1863 = vadd.f32 %v1861, %v147
    %v1864 = vsel %vm369, %v1862, -inf
    %1865 = vmax.xlane.f32.xlu0 %v1864
    %v1866 = vpop.xlane.xlu0 %1865
    %v1867 = vsel %vm369, %v1863, -inf
    %1868 = vmax.xlane.f32.xlu0 %v1867
    %v1869 = vpop.xlane.xlu0 %1868
    %v1870 = vsub.f32 %v1862, %v1866
    %v1871 = vsub.f32 %v1863, %v1869
    %v1872 = vmul.f32 %v1870, 1.442695
    %v1873 = vpow.pop %v1872
    %v1874 = vmul.f32 %v1871, 1.442695
    %v1875 = vpow.pop %v1874
    %v1876 = vsel %vm369, %v1873, 0.0
    %1877 = vadd.xlane.f32.xlu0 %v1876
    %v1878 = vpop.xlane.xlu0 %1877
    %v1879 = vsel %vm369, %v1875, 0.0
    %1880 = vadd.xlane.f32.xlu0 %v1879
    %v1881 = vpop.xlane.xlu0 %1880
    %v1882 = vrcp.pop %v1878
    %v1883 = vrcp.pop %v1881
    %v1884 = vmul.f32 %v1873, %v1882
    %v1885 = vmul.f32 %v1875, %v1883
    %1886 = vrot.lane.b32.xlu0 %v1559, 56
    %v1887 = vpop.permute.xlu0 %1886
    %1888 = vrot.lane.b32.xlu0 %v1564, 56
    %v1889 = vpop.permute.xlu0 %1888
    %v1893 = vsel %vm369, %v1884, 0
    %v1896 = vsel %vm369, %v1885, 0
    %1898 = vmatprep.subr.mxu0 0.0
    %1899 = vmatpush1.msra.mxu0 %v1887
    %1900 = vmatprep.subr.mxu0 0.0
    %1901 = vmatpush1.msra.mxu0 %v1889
    %1902 = vmatprep.subr.mxu0 0.0
    %1903 = vmatpush1.msra.mxu0 0.0
    %1904 = vmatprep.subr.mxu0 0.0
    %1905 = vmatpush1.msra.mxu0 0.0
    %1906 = vmatprep.subr.mxu0 0.0
    %1907 = vmatpush1.msra.mxu0 0.0
    %1908 = vmatprep.subr.mxu0 0.0
    %1909 = vmatpush1.msra.mxu0 0.0
    %1910 = vmatprep.subr.mxu0 0.0
    %1911 = vmatpush1.msra.mxu0 0.0
    %1912 = vmatprep.subr.mxu0 0.0
    %1913 = vmatpush1.msra.mxu0 0.0
    %1914 = vmatprep.subr.mxu0 0.0
    %1915 = vmatpush1.msra.mxu0 0.0
    %1916 = vmatprep.subr.mxu0 0.0
    %1917 = vmatpush1.msra.mxu0 0.0
    %1918 = vmatprep.subr.mxu0 0.0
    %1919 = vmatpush1.msra.mxu0 0.0
    %1920 = vmatprep.subr.mxu0 0.0
    %1921 = vmatpush1.msra.mxu0 0.0
    %1922 = vmatprep.subr.mxu0 0.0
    %1923 = vmatpush1.msra.mxu0 0.0
    %1924 = vmatprep.subr.mxu0 0.0
    %1925 = vmatpush1.msra.mxu0 0.0
    %1926 = vmatprep.subr.mxu0 0.0
    %1927 = vmatpush1.msra.mxu0 0.0
    %1928 = vmatprep.subr.mxu0 0.0
    %1929 = vmatpush1.msra.mxu0 0.0
    %1930 = vmatprep.subr.mxu0 0.0
    %1931 = vmatpush1.msra.mxu0 0.0
    %1932 = vmatprep.subr.mxu0 0.0
    %1933 = vmatpush1.msra.mxu0 0.0
    %1934 = vmatprep.subr.mxu0 0.0
    %1935 = vmatpush1.msra.mxu0 0.0
    %1936 = vmatprep.subr.mxu0 0.0
    %1937 = vmatpush1.msra.mxu0 0.0
    %1938 = vmatprep.subr.mxu0 0.0
    %1939 = vmatpush1.msra.mxu0 0.0
    %1940 = vmatprep.subr.mxu0 0.0
    %1941 = vmatpush1.msra.mxu0 0.0
    %1942 = vmatprep.subr.mxu0 0.0
    %1943 = vmatpush1.msra.mxu0 0.0
    %1944 = vmatprep.subr.mxu0 0.0
    %1945 = vmatpush1.msra.mxu0 0.0
    %1946 = vmatprep.subr.mxu0 0.0
    %1947 = vmatpush1.msra.mxu0 0.0
    %1948 = vmatprep.subr.mxu0 0.0
    %1949 = vmatpush1.msra.mxu0 0.0
    %1950 = vmatprep.subr.mxu0 0.0
    %1951 = vmatpush1.msra.mxu0 0.0
    %1952 = vmatprep.subr.mxu0 0.0
    %1953 = vmatpush1.msra.mxu0 0.0
    %1954 = vmatprep.subr.mxu0 0.0
    %1955 = vmatpush1.msra.mxu0 0.0
    %1956 = vmatprep.subr.mxu0 0.0
    %1957 = vmatpush1.msra.mxu0 0.0
    %1958 = vmatprep.subr.mxu0 0.0
    %1959 = vmatpush1.msra.mxu0 0.0
    %1960 = vmatprep.subr.mxu0 0.0
    %1961 = vmatpush1.msra.mxu0 0.0
    %1962 = vmatprep.mubr.f32.mxu0 0.0
    %1963 = vmatmul.mubr.f32.gmra.mrb[0].mxu0 %v1893
    %v1964 = vpop.f32.mrb[0].mxu0
    %v1965 = vadd.f32 0.0, %v1964
    %v1966 = vpop.f32.mrb[0].mxu0
    %1967 = vmatprep.mubr.f32.mxu0 0.0
    %1968 = vmatmul.mubr.f32.gmra.mrb[0].mxu0 %v1896
    %v1969 = vpop.f32.mrb[0].mxu0
    %v1970 = vadd.f32 0.0, %v1969
    %v1971 = vpop.f32.mrb[0].mxu0
    %1972 = vdwg.mxu0
    %1973 = vrot.lane.b32.xlu0 %v1559, 112
    %v1974 = vpop.permute.xlu0 %1973
    %1975 = vrot.lane.b32.xlu0 %v1564, 112
    %v1976 = vpop.permute.xlu0 %1975
    %1977 = vrot.lane.b32.xlu0 %v1559, 80
    %v1978 = vpop.permute.xlu0 %1977
    %1979 = vrot.lane.b32.xlu0 %v1564, 80
    %v1980 = vpop.permute.xlu0 %1979
    %v1981 = vsel %vm281, %v1974, 0
    %v1983 = vsel %vm281, %v1976, 0
    %v1985 = vsel %vm281, %v1978, 0
    %v1987 = vsel %vm281, %v1980, 0
    %1989 = vmatprep.subr.mxu0 0.0
    %1990 = vmatpush1.xpose.msra.mxu0 %v1985
    %1991 = vmatprep.subr.mxu0 0.0
    %1992 = vmatpush1.xpose.msra.mxu0 %v1987
    %1993 = vmatprep.subr.mxu0 0.0
    %1994 = vmatpush1.xpose.msra.mxu0 0.0
    %1995 = vmatprep.subr.mxu0 0.0
    %1996 = vmatpush1.xpose.msra.mxu0 0.0
    %1997 = vmatprep.subr.mxu0 0.0
    %1998 = vmatpush1.xpose.msra.mxu0 0.0
    %1999 = vmatprep.subr.mxu0 0.0
    %2000 = vmatpush1.xpose.msra.mxu0 0.0
    %2001 = vmatprep.subr.mxu0 0.0
    %2002 = vmatpush1.xpose.msra.mxu0 0.0
    %2003 = vmatprep.subr.mxu0 0.0
    %2004 = vmatpush1.xpose.msra.mxu0 0.0
    %2005 = vmatprep.subr.mxu0 0.0
    %2006 = vmatpush1.xpose.msra.mxu0 0.0
    %2007 = vmatprep.subr.mxu0 0.0
    %2008 = vmatpush1.xpose.msra.mxu0 0.0
    %2009 = vmatprep.subr.mxu0 0.0
    %2010 = vmatpush1.xpose.msra.mxu0 0.0
    %2011 = vmatprep.subr.mxu0 0.0
    %2012 = vmatpush1.xpose.msra.mxu0 0.0
    %2013 = vmatprep.subr.mxu0 0.0
    %2014 = vmatpush1.xpose.msra.mxu0 0.0
    %2015 = vmatprep.subr.mxu0 0.0
    %2016 = vmatpush1.xpose.msra.mxu0 0.0
    %2017 = vmatprep.subr.mxu0 0.0
    %2018 = vmatpush1.xpose.msra.mxu0 0.0
    %2019 = vmatprep.subr.mxu0 0.0
    %2020 = vmatpush1.xpose.msra.mxu0 0.0
    %2021 = vmatprep.subr.mxu0 0.0
    %2022 = vmatpush1.xpose.msra.mxu0 0.0
    %2023 = vmatprep.subr.mxu0 0.0
    %2024 = vmatpush1.xpose.msra.mxu0 0.0
    %2025 = vmatprep.subr.mxu0 0.0
    %2026 = vmatpush1.xpose.msra.mxu0 0.0
    %2027 = vmatprep.subr.mxu0 0.0
    %2028 = vmatpush1.xpose.msra.mxu0 0.0
    %2029 = vmatprep.subr.mxu0 0.0
    %2030 = vmatpush1.xpose.msra.mxu0 0.0
    %2031 = vmatprep.subr.mxu0 0.0
    %2032 = vmatpush1.xpose.msra.mxu0 0.0
    %2033 = vmatprep.subr.mxu0 0.0
    %2034 = vmatpush1.xpose.msra.mxu0 0.0
    %2035 = vmatprep.subr.mxu0 0.0
    %2036 = vmatpush1.xpose.msra.mxu0 0.0
    %2037 = vmatprep.subr.mxu0 0.0
    %2038 = vmatpush1.xpose.msra.mxu0 0.0
    %2039 = vmatprep.subr.mxu0 0.0
    %2040 = vmatpush1.xpose.msra.mxu0 0.0
    %2041 = vmatprep.subr.mxu0 0.0
    %2042 = vmatpush1.xpose.msra.mxu0 0.0
    %2043 = vmatprep.subr.mxu0 0.0
    %2044 = vmatpush1.xpose.msra.mxu0 0.0
    %2045 = vmatprep.subr.mxu0 0.0
    %2046 = vmatpush1.xpose.msra.mxu0 0.0
    %2047 = vmatprep.subr.mxu0 0.0
    %2048 = vmatpush1.xpose.msra.mxu0 0.0
    %2049 = vmatprep.subr.mxu0 0.0
    %2050 = vmatpush1.xpose.msra.mxu0 0.0
    %2051 = vmatprep.subr.mxu0 0.0
    %2052 = vmatpush1.xpose.msra.mxu0 0.0
    %2053 = vmatprep.mubr.f32.mxu0 0.0
    %2054 = vmatmul.mubr.f32.gmra.mrb[0].mxu0 %v1981
    %v2055 = vpop.f32.mrb[0].mxu0
    %v2056 = vadd.f32 0.0, %v2055
    %v2057 = vpop.f32.mrb[0].mxu0
    %2058 = vmatprep.mubr.f32.mxu0 0.0
    %2059 = vmatmul.mubr.f32.gmra.mrb[0].mxu0 %v1983
    %v2060 = vpop.f32.mrb[0].mxu0
    %v2061 = vadd.f32 0.0, %v2060
    %v2062 = vpop.f32.mrb[0].mxu0
    %2063 = vdwg.mxu0
    %v2064 = vmul.f32 %v2056, 0.17677669
    %v2065 = vmul.f32 %v2061, 0.17677669
    %v2066 = vadd.f32 %v2064, %v146
    %v2067 = vadd.f32 %v2065, %v147
    %v2068 = vsel %vm369, %v2066, -inf
    %2069 = vmax.xlane.f32.xlu0 %v2068
    %v2070 = vpop.xlane.xlu0 %2069
    %v2071 = vsel %vm369, %v2067, -inf
    %2072 = vmax.xlane.f32.xlu0 %v2071
    %v2073 = vpop.xlane.xlu0 %2072
    %v2074 = vsub.f32 %v2066, %v2070
    %v2075 = vsub.f32 %v2067, %v2073
    %v2076 = vmul.f32 %v2074, 1.442695
    %v2077 = vpow.pop %v2076
    %v2078 = vmul.f32 %v2075, 1.442695
    %v2079 = vpow.pop %v2078
    %v2080 = vsel %vm369, %v2077, 0.0
    %2081 = vadd.xlane.f32.xlu0 %v2080
    %v2082 = vpop.xlane.xlu0 %2081
    %v2083 = vsel %vm369, %v2079, 0.0
    %2084 = vadd.xlane.f32.xlu0 %v2083
    %v2085 = vpop.xlane.xlu0 %2084
    %v2086 = vrcp.pop %v2082
    %v2087 = vrcp.pop %v2085
    %v2088 = vmul.f32 %v2077, %v2086
    %v2089 = vmul.f32 %v2079, %v2087
    %2090 = vrot.lane.b32.xlu0 %v1559, 48
    %v2091 = vpop.permute.xlu0 %2090
    %2092 = vrot.lane.b32.xlu0 %v1564, 48
    %v2093 = vpop.permute.xlu0 %2092
    %v2097 = vsel %vm369, %v2088, 0
    %v2100 = vsel %vm369, %v2089, 0
    %2102 = vmatprep.subr.mxu0 0.0
    %2103 = vmatpush1.msra.mxu0 %v2091
    %2104 = vmatprep.subr.mxu0 0.0
    %2105 = vmatpush1.msra.mxu0 %v2093
    %2106 = vmatprep.subr.mxu0 0.0
    %2107 = vmatpush1.msra.mxu0 0.0
    %2108 = vmatprep.subr.mxu0 0.0
    %2109 = vmatpush1.msra.mxu0 0.0
    %2110 = vmatprep.subr.mxu0 0.0
    %2111 = vmatpush1.msra.mxu0 0.0
    %2112 = vmatprep.subr.mxu0 0.0
    %2113 = vmatpush1.msra.mxu0 0.0
    %2114 = vmatprep.subr.mxu0 0.0
    %2115 = vmatpush1.msra.mxu0 0.0
    %2116 = vmatprep.subr.mxu0 0.0
    %2117 = vmatpush1.msra.mxu0 0.0
    %2118 = vmatprep.subr.mxu0 0.0
    %2119 = vmatpush1.msra.mxu0 0.0
    %2120 = vmatprep.subr.mxu0 0.0
    %2121 = vmatpush1.msra.mxu0 0.0
    %2122 = vmatprep.subr.mxu0 0.0
    %2123 = vmatpush1.msra.mxu0 0.0
    %2124 = vmatprep.subr.mxu0 0.0
    %2125 = vmatpush1.msra.mxu0 0.0
    %2126 = vmatprep.subr.mxu0 0.0
    %2127 = vmatpush1.msra.mxu0 0.0
    %2128 = vmatprep.subr.mxu0 0.0
    %2129 = vmatpush1.msra.mxu0 0.0
    %2130 = vmatprep.subr.mxu0 0.0
    %2131 = vmatpush1.msra.mxu0 0.0
    %2132 = vmatprep.subr.mxu0 0.0
    %2133 = vmatpush1.msra.mxu0 0.0
    %2134 = vmatprep.subr.mxu0 0.0
    %2135 = vmatpush1.msra.mxu0 0.0
    %2136 = vmatprep.subr.mxu0 0.0
    %2137 = vmatpush1.msra.mxu0 0.0
    %2138 = vmatprep.subr.mxu0 0.0
    %2139 = vmatpush1.msra.mxu0 0.0
    %2140 = vmatprep.subr.mxu0 0.0
    %2141 = vmatpush1.msra.mxu0 0.0
    %2142 = vmatprep.subr.mxu0 0.0
    %2143 = vmatpush1.msra.mxu0 0.0
    %2144 = vmatprep.subr.mxu0 0.0
    %2145 = vmatpush1.msra.mxu0 0.0
    %2146 = vmatprep.subr.mxu0 0.0
    %2147 = vmatpush1.msra.mxu0 0.0
    %2148 = vmatprep.subr.mxu0 0.0
    %2149 = vmatpush1.msra.mxu0 0.0
    %2150 = vmatprep.subr.mxu0 0.0
    %2151 = vmatpush1.msra.mxu0 0.0
    %2152 = vmatprep.subr.mxu0 0.0
    %2153 = vmatpush1.msra.mxu0 0.0
    %2154 = vmatprep.subr.mxu0 0.0
    %2155 = vmatpush1.msra.mxu0 0.0
    %2156 = vmatprep.subr.mxu0 0.0
    %2157 = vmatpush1.msra.mxu0 0.0
    %2158 = vmatprep.subr.mxu0 0.0
    %2159 = vmatpush1.msra.mxu0 0.0
    %2160 = vmatprep.subr.mxu0 0.0
    %2161 = vmatpush1.msra.mxu0 0.0
    %2162 = vmatprep.subr.mxu0 0.0
    %2163 = vmatpush1.msra.mxu0 0.0
    %2164 = vmatprep.subr.mxu0 0.0
    %2165 = vmatpush1.msra.mxu0 0.0
    %2166 = vmatprep.mubr.f32.mxu0 0.0
    %2167 = vmatmul.mubr.f32.gmra.mrb[0].mxu0 %v2097
    %v2168 = vpop.f32.mrb[0].mxu0
    %v2169 = vadd.f32 0.0, %v2168
    %v2170 = vpop.f32.mrb[0].mxu0
    %2171 = vmatprep.mubr.f32.mxu0 0.0
    %2172 = vmatmul.mubr.f32.gmra.mrb[0].mxu0 %v2100
    %v2173 = vpop.f32.mrb[0].mxu0
    %v2174 = vadd.f32 0.0, %v2173
    %v2175 = vpop.f32.mrb[0].mxu0
    %2176 = vdwg.mxu0
    %2177 = vrot.lane.b32.xlu0 %v1559, 104
    %v2178 = vpop.permute.xlu0 %2177
    %2179 = vrot.lane.b32.xlu0 %v1564, 104
    %v2180 = vpop.permute.xlu0 %2179
    %2181 = vrot.lane.b32.xlu0 %v1559, 72
    %v2182 = vpop.permute.xlu0 %2181
    %2183 = vrot.lane.b32.xlu0 %v1564, 72
    %v2184 = vpop.permute.xlu0 %2183
    %v2185 = vsel %vm281, %v2178, 0
    %v2187 = vsel %vm281, %v2180, 0
    %v2189 = vsel %vm281, %v2182, 0
    %v2191 = vsel %vm281, %v2184, 0
    %2193 = vmatprep.subr.mxu0 0.0
    %2194 = vmatpush1.xpose.msra.mxu0 %v2189
    %2195 = vmatprep.subr.mxu0 0.0
    %2196 = vmatpush1.xpose.msra.mxu0 %v2191
    %2197 = vmatprep.subr.mxu0 0.0
    %2198 = vmatpush1.xpose.msra.mxu0 0.0
    %2199 = vmatprep.subr.mxu0 0.0
    %2200 = vmatpush1.xpose.msra.mxu0 0.0
    %2201 = vmatprep.subr.mxu0 0.0
    %2202 = vmatpush1.xpose.msra.mxu0 0.0
    %2203 = vmatprep.subr.mxu0 0.0
    %2204 = vmatpush1.xpose.msra.mxu0 0.0
    %2205 = vmatprep.subr.mxu0 0.0
    %2206 = vmatpush1.xpose.msra.mxu0 0.0
    %2207 = vmatprep.subr.mxu0 0.0
    %2208 = vmatpush1.xpose.msra.mxu0 0.0
    %2209 = vmatprep.subr.mxu0 0.0
    %2210 = vmatpush1.xpose.msra.mxu0 0.0
    %2211 = vmatprep.subr.mxu0 0.0
    %2212 = vmatpush1.xpose.msra.mxu0 0.0
    %2213 = vmatprep.subr.mxu0 0.0
    %2214 = vmatpush1.xpose.msra.mxu0 0.0
    %2215 = vmatprep.subr.mxu0 0.0
    %2216 = vmatpush1.xpose.msra.mxu0 0.0
    %2217 = vmatprep.subr.mxu0 0.0
    %2218 = vmatpush1.xpose.msra.mxu0 0.0
    %2219 = vmatprep.subr.mxu0 0.0
    %2220 = vmatpush1.xpose.msra.mxu0 0.0
    %2221 = vmatprep.subr.mxu0 0.0
    %2222 = vmatpush1.xpose.msra.mxu0 0.0
    %2223 = vmatprep.subr.mxu0 0.0
    %2224 = vmatpush1.xpose.msra.mxu0 0.0
    %2225 = vmatprep.subr.mxu0 0.0
    %2226 = vmatpush1.xpose.msra.mxu0 0.0
    %2227 = vmatprep.subr.mxu0 0.0
    %2228 = vmatpush1.xpose.msra.mxu0 0.0
    %2229 = vmatprep.subr.mxu0 0.0
    %2230 = vmatpush1.xpose.msra.mxu0 0.0
    %2231 = vmatprep.subr.mxu0 0.0
    %2232 = vmatpush1.xpose.msra.mxu0 0.0
    %2233 = vmatprep.subr.mxu0 0.0
    %2234 = vmatpush1.xpose.msra.mxu0 0.0
    %2235 = vmatprep.subr.mxu0 0.0
    %2236 = vmatpush1.xpose.msra.mxu0 0.0
    %2237 = vmatprep.subr.mxu0 0.0
    %2238 = vmatpush1.xpose.msra.mxu0 0.0
    %2239 = vmatprep.subr.mxu0 0.0
    %2240 = vmatpush1.xpose.msra.mxu0 0.0
    %2241 = vmatprep.subr.mxu0 0.0
    %2242 = vmatpush1.xpose.msra.mxu0 0.0
    %2243 = vmatprep.subr.mxu0 0.0
    %2244 = vmatpush1.xpose.msra.mxu0 0.0
    %2245 = vmatprep.subr.mxu0 0.0
    %2246 = vmatpush1.xpose.msra.mxu0 0.0
    %2247 = vmatprep.subr.mxu0 0.0
    %2248 = vmatpush1.xpose.msra.mxu0 0.0
    %2249 = vmatprep.subr.mxu0 0.0
    %2250 = vmatpush1.xpose.msra.mxu0 0.0
    %2251 = vmatprep.subr.mxu0 0.0
    %2252 = vmatpush1.xpose.msra.mxu0 0.0
    %2253 = vmatprep.subr.mxu0 0.0
    %2254 = vmatpush1.xpose.msra.mxu0 0.0
    %2255 = vmatprep.subr.mxu0 0.0
    %2256 = vmatpush1.xpose.msra.mxu0 0.0
    %2257 = vmatprep.mubr.f32.mxu0 0.0
    %2258 = vmatmul.mubr.f32.gmra.mrb[0].mxu0 %v2185
    %v2259 = vpop.f32.mrb[0].mxu0
    %v2260 = vadd.f32 0.0, %v2259
    %v2261 = vpop.f32.mrb[0].mxu0
    %2262 = vmatprep.mubr.f32.mxu0 0.0
    %2263 = vmatmul.mubr.f32.gmra.mrb[0].mxu0 %v2187
    %v2264 = vpop.f32.mrb[0].mxu0
    %v2265 = vadd.f32 0.0, %v2264
    %v2266 = vpop.f32.mrb[0].mxu0
    %2267 = vdwg.mxu0
    %v2268 = vmul.f32 %v2260, 0.17677669
    %v2269 = vmul.f32 %v2265, 0.17677669
    %v2270 = vadd.f32 %v2268, %v146
    %v2271 = vadd.f32 %v2269, %v147
    %v2272 = vsel %vm369, %v2270, -inf
    %2273 = vmax.xlane.f32.xlu0 %v2272
    %v2274 = vpop.xlane.xlu0 %2273
    %v2275 = vsel %vm369, %v2271, -inf
    %2276 = vmax.xlane.f32.xlu0 %v2275
    %v2277 = vpop.xlane.xlu0 %2276
    %v2278 = vsub.f32 %v2270, %v2274
    %v2279 = vsub.f32 %v2271, %v2277
    %v2280 = vmul.f32 %v2278, 1.442695
    %v2281 = vpow.pop %v2280
    %v2282 = vmul.f32 %v2279, 1.442695
    %v2283 = vpow.pop %v2282
    %v2284 = vsel %vm369, %v2281, 0.0
    %2285 = vadd.xlane.f32.xlu0 %v2284
    %v2286 = vpop.xlane.xlu0 %2285
    %v2287 = vsel %vm369, %v2283, 0.0
    %2288 = vadd.xlane.f32.xlu0 %v2287
    %v2289 = vpop.xlane.xlu0 %2288
    %v2290 = vrcp.pop %v2286
    %v2291 = vrcp.pop %v2289
    %v2292 = vmul.f32 %v2281, %v2290
    %v2293 = vmul.f32 %v2283, %v2291
    %2294 = vrot.lane.b32.xlu0 %v1559, 40
    %v2295 = vpop.permute.xlu0 %2294
    %2296 = vrot.lane.b32.xlu0 %v1564, 40
    %v2297 = vpop.permute.xlu0 %2296
    %v2301 = vsel %vm369, %v2292, 0
    %v2304 = vsel %vm369, %v2293, 0
    %2306 = vmatprep.subr.mxu0 0.0
    %2307 = vmatpush1.msra.mxu0 %v2295
    %2308 = vmatprep.subr.mxu0 0.0
    %2309 = vmatpush1.msra.mxu0 %v2297
    %2310 = vmatprep.subr.mxu0 0.0
    %2311 = vmatpush1.msra.mxu0 0.0
    %2312 = vmatprep.subr.mxu0 0.0
    %2313 = vmatpush1.msra.mxu0 0.0
    %2314 = vmatprep.subr.mxu0 0.0
    %2315 = vmatpush1.msra.mxu0 0.0
    %2316 = vmatprep.subr.mxu0 0.0
    %2317 = vmatpush1.msra.mxu0 0.0
    %2318 = vmatprep.subr.mxu0 0.0
    %2319 = vmatpush1.msra.mxu0 0.0
    %2320 = vmatprep.subr.mxu0 0.0
    %2321 = vmatpush1.msra.mxu0 0.0
    %2322 = vmatprep.subr.mxu0 0.0
    %2323 = vmatpush1.msra.mxu0 0.0
    %2324 = vmatprep.subr.mxu0 0.0
    %2325 = vmatpush1.msra.mxu0 0.0
    %2326 = vmatprep.subr.mxu0 0.0
    %2327 = vmatpush1.msra.mxu0 0.0
    %2328 = vmatprep.subr.mxu0 0.0
    %2329 = vmatpush1.msra.mxu0 0.0
    %2330 = vmatprep.subr.mxu0 0.0
    %2331 = vmatpush1.msra.mxu0 0.0
    %2332 = vmatprep.subr.mxu0 0.0
    %2333 = vmatpush1.msra.mxu0 0.0
    %2334 = vmatprep.subr.mxu0 0.0
    %2335 = vmatpush1.msra.mxu0 0.0
    %2336 = vmatprep.subr.mxu0 0.0
    %2337 = vmatpush1.msra.mxu0 0.0
    %2338 = vmatprep.subr.mxu0 0.0
    %2339 = vmatpush1.msra.mxu0 0.0
    %2340 = vmatprep.subr.mxu0 0.0
    %2341 = vmatpush1.msra.mxu0 0.0
    %2342 = vmatprep.subr.mxu0 0.0
    %2343 = vmatpush1.msra.mxu0 0.0
    %2344 = vmatprep.subr.mxu0 0.0
    %2345 = vmatpush1.msra.mxu0 0.0
    %2346 = vmatprep.subr.mxu0 0.0
    %2347 = vmatpush1.msra.mxu0 0.0
    %2348 = vmatprep.subr.mxu0 0.0
    %2349 = vmatpush1.msra.mxu0 0.0
    %2350 = vmatprep.subr.mxu0 0.0
    %2351 = vmatpush1.msra.mxu0 0.0
    %2352 = vmatprep.subr.mxu0 0.0
    %2353 = vmatpush1.msra.mxu0 0.0
    %2354 = vmatprep.subr.mxu0 0.0
    %2355 = vmatpush1.msra.mxu0 0.0
    %2356 = vmatprep.subr.mxu0 0.0
    %2357 = vmatpush1.msra.mxu0 0.0
    %2358 = vmatprep.subr.mxu0 0.0
    %2359 = vmatpush1.msra.mxu0 0.0
    %2360 = vmatprep.subr.mxu0 0.0
    %2361 = vmatpush1.msra.mxu0 0.0
    %2362 = vmatprep.subr.mxu0 0.0
    %2363 = vmatpush1.msra.mxu0 0.0
    %2364 = vmatprep.subr.mxu0 0.0
    %2365 = vmatpush1.msra.mxu0 0.0
    %2366 = vmatprep.subr.mxu0 0.0
    %2367 = vmatpush1.msra.mxu0 0.0
    %2368 = vmatprep.subr.mxu0 0.0
    %2369 = vmatpush1.msra.mxu0 0.0
    %2370 = vmatprep.mubr.f32.mxu0 0.0
    %2371 = vmatmul.mubr.f32.gmra.mrb[0].mxu0 %v2301
    %v2372 = vpop.f32.mrb[0].mxu0
    %v2373 = vadd.f32 0.0, %v2372
    %v2374 = vpop.f32.mrb[0].mxu0
    %2375 = vmatprep.mubr.f32.mxu0 0.0
    %2376 = vmatmul.mubr.f32.gmra.mrb[0].mxu0 %v2304
    %v2377 = vpop.f32.mrb[0].mxu0
    %v2378 = vadd.f32 0.0, %v2377
    %v2379 = vpop.f32.mrb[0].mxu0
    %2380 = vdwg.mxu0
    %2383 = vrot.lane.b32.xlu0 %v1965, 8
    %v2384 = vpop.permute.xlu0 %2383
    %2385 = vrot.lane.b32.xlu0 %v1970, 8
    %v2386 = vpop.permute.xlu0 %2385
    %2391 = vrot.lane.b32.xlu0 %v2169, 16
    %v2392 = vpop.permute.xlu0 %2391
    %2393 = vrot.lane.b32.xlu0 %v2174, 16
    %v2394 = vpop.permute.xlu0 %2393
    %2399 = vrot.lane.b32.xlu0 %v2373, 24
    %v2400 = vpop.permute.xlu0 %2399
    %2401 = vrot.lane.b32.xlu0 %v2378, 24
    %v2402 = vpop.permute.xlu0 %2401
    %v2405 = vsel %vm281, %v1761, %v2384
    %v2406 = vsel %vm281, %v1766, %v2386
    %v2407 = vsel %vm369, %v2405, %v2392
    %v2408 = vsel %vm369, %v2406, %v2394
    %v2409 = vsel %vm1119, %v2407, %v2400
    %v2410 = vsel %vm1119, %v2408, %v2402
    %v2411 = vld [vmem:[#allocation2 + $0x178] sm:$0xff]
    %v2412 = vld [vmem:[#allocation2 + $0x180] sm:$0xff]
    %v2413 = vld [vmem:[#allocation2 + $0x188] sm:$0xff]
    %v2414 = vld [vmem:[#allocation2 + $0x190] sm:$0xff]
    %v2416 = vsel %vm150, %v2409, 0
    %v2419 = vsel %vm150, %v2410, 0
    %2421 = vmatprep.subr.mxu0 0.0
    %2422 = vmatpush1.msra.mxu0 %v2411
    %2423 = vmatprep.subr.mxu0 0.0
    %2424 = vmatpush1.msra.mxu0 %v2412
    %2425 = vmatprep.subr.mxu0 0.0
    %2426 = vmatpush1.msra.mxu0 %v2413
    %2427 = vmatprep.subr.mxu0 0.0
    %2428 = vmatpush1.msra.mxu0 %v2414
    %2429 = vmatprep.subr.mxu0 0.0
    %2430 = vmatpush1.msra.mxu0 0.0
    %2431 = vmatprep.subr.mxu0 0.0
    %2432 = vmatpush1.msra.mxu0 0.0
    %2433 = vmatprep.subr.mxu0 0.0
    %2434 = vmatpush1.msra.mxu0 0.0
    %2435 = vmatprep.subr.mxu0 0.0
    %2436 = vmatpush1.msra.mxu0 0.0
    %2437 = vmatprep.subr.mxu0 0.0
    %2438 = vmatpush1.msra.mxu0 0.0
    %2439 = vmatprep.subr.mxu0 0.0
    %2440 = vmatpush1.msra.mxu0 0.0
    %2441 = vmatprep.subr.mxu0 0.0
    %2442 = vmatpush1.msra.mxu0 0.0
    %2443 = vmatprep.subr.mxu0 0.0
    %2444 = vmatpush1.msra.mxu0 0.0
    %2445 = vmatprep.subr.mxu0 0.0
    %2446 = vmatpush1.msra.mxu0 0.0
    %2447 = vmatprep.subr.mxu0 0.0
    %2448 = vmatpush1.msra.mxu0 0.0
    %2449 = vmatprep.subr.mxu0 0.0
    %2450 = vmatpush1.msra.mxu0 0.0
    %2451 = vmatprep.subr.mxu0 0.0
    %2452 = vmatpush1.msra.mxu0 0.0
    %2453 = vmatprep.subr.mxu0 0.0
    %2454 = vmatpush1.msra.mxu0 0.0
    %2455 = vmatprep.subr.mxu0 0.0
    %2456 = vmatpush1.msra.mxu0 0.0
    %2457 = vmatprep.subr.mxu0 0.0
    %2458 = vmatpush1.msra.mxu0 0.0
    %2459 = vmatprep.subr.mxu0 0.0
    %2460 = vmatpush1.msra.mxu0 0.0
    %2461 = vmatprep.subr.mxu0 0.0
    %2462 = vmatpush1.msra.mxu0 0.0
    %2463 = vmatprep.subr.mxu0 0.0
    %2464 = vmatpush1.msra.mxu0 0.0
    %2465 = vmatprep.subr.mxu0 0.0
    %2466 = vmatpush1.msra.mxu0 0.0
    %2467 = vmatprep.subr.mxu0 0.0
    %2468 = vmatpush1.msra.mxu0 0.0
    %2469 = vmatprep.subr.mxu0 0.0
    %2470 = vmatpush1.msra.mxu0 0.0
    %2471 = vmatprep.subr.mxu0 0.0
    %2472 = vmatpush1.msra.mxu0 0.0
    %2473 = vmatprep.subr.mxu0 0.0
    %2474 = vmatpush1.msra.mxu0 0.0
    %2475 = vmatprep.subr.mxu0 0.0
    %2476 = vmatpush1.msra.mxu0 0.0
    %2477 = vmatprep.subr.mxu0 0.0
    %2478 = vmatpush1.msra.mxu0 0.0
    %2479 = vmatprep.subr.mxu0 0.0
    %2480 = vmatpush1.msra.mxu0 0.0
    %2481 = vmatprep.subr.mxu0 0.0
    %2482 = vmatpush1.msra.mxu0 0.0
    %2483 = vmatprep.subr.mxu0 0.0
    %2484 = vmatpush1.msra.mxu0 0.0
    %2485 = vmatprep.mubr.f32.mxu0 0.0
    %2486 = vmatmul.mubr.f32.gmra.mrb[0].mxu0 %v2416
    %v2487 = vpop.f32.mrb[0].mxu0
    %v2488 = vadd.f32 0.0, %v2487
    %v2489 = vpop.f32.mrb[0].mxu0
    %2490 = vmatprep.mubr.f32.mxu0 0.0
    %2491 = vmatmul.mubr.f32.gmra.mrb[0].mxu0 %v2419
    %v2492 = vpop.f32.mrb[0].mxu0
    %v2493 = vadd.f32 0.0, %v2492
    %v2494 = vpop.f32.mrb[0].mxu0
    %2495 = vdwg.mxu0
    %v2496 = vadd.f32 %v1442, %v2488
    %v2497 = vadd.f32 %v1443, %v2493
    %v2498 = vld [vmem:[#allocation2 + $0x198] sm:$0x1]
    %v2499 = vlaneseq
    %v2500 = vshrl.u32 %v2499, 7
    %v2501 = vsub.s32 0, %v2500
    %v2502 = vrot.slane %v2498, %v2501
    %v2503 = vadd.f32 %v2496, %v2502
    %v2504 = vadd.f32 %v2497, %v2502
    %v2505 = vsel %vm150, %v2503, 0.0
    %2506 = vadd.xlane.f32.xlu0 %v2505
    %v2507 = vpop.xlane.xlu0 %2506
    %v2508 = vsel %vm150, %v2504, 0.0
    %2509 = vadd.xlane.f32.xlu0 %v2508
    %v2510 = vpop.xlane.xlu0 %2509
    %v2511 = vmul.f32 %v2507, %v157
    %v2512 = vmul.f32 %v2510, %v157
    %v2513 = vsub.f32 %v2503, %v2511
    %v2514 = vsub.f32 %v2504, %v2512
    %v2515 = vmul.f32 %v2513, %v2513
    %v2516 = vmul.f32 %v2514, %v2514
    %v2517 = vsel %vm150, %v2515, 0.0
    %2518 = vadd.xlane.f32.xlu0 %v2517
    %v2519 = vpop.xlane.xlu0 %2518
    %v2520 = vsel %vm150, %v2516, 0.0
    %2521 = vadd.xlane.f32.xlu0 %v2520
    %v2522 = vpop.xlane.xlu0 %2521
    %v2523 = vmul.f32 %v2519, %v157
    %v2524 = vmul.f32 %v2522, %v157
    %v2525 = vadd.f32 %v2523, 1e-05
    %v2526 = vadd.f32 %v2524, 1e-05
    %v2527 = vrsqrt.pop %v2525
    %v2528 = vrsqrt.pop %v2526
    %v2529 = vmul.f32 %v2513, %v2527
    %v2530 = vmul.f32 %v2514, %v2528
    %v2531 = vlaneseq
    %v2532 = vshrl.u32 %v2531, 7
    %v2533 = vsub.s32 3, %v2532
    %v2534 = vrot.slane %v148, %v2533
    %v2535 = vmul.f32 %v2529, %v2534
    %v2536 = vmul.f32 %v2530, %v2534
    %v2537 = vlaneseq
    %v2538 = vshrl.u32 %v2537, 7
    %v2539 = vsub.s32 3, %v2538
    %v2540 = vrot.slane %v149, %v2539
    %v2541 = vadd.f32 %v2535, %v2540
    %v2542 = vadd.f32 %v2536, %v2540
    %v2543 = vld [vmem:[#allocation2 + $0x1a0] sm:$0xff]
    %v2544 = vld [vmem:[#allocation2 + $0x1a8] sm:$0xff]
    %v2545 = vld [vmem:[#allocation2 + $0x1b0] sm:$0xff]
    %v2546 = vld [vmem:[#allocation2 + $0x1b8] sm:$0xff]
    %v2547 = vld [vmem:[#allocation2 + $0x1c0] sm:$0x1]
    %v2548 = vlaneseq
    %v2549 = vshrl.u32 %v2548, 7
    %v2550 = vsub.s32 0, %v2549
    %v2551 = vrot.slane %v2547, %v2550
    %v2553 = vsel %vm150, %v2541, 0
    %v2556 = vsel %vm150, %v2542, 0
    %2558 = vmatprep.subr.mxu0 0.0
    %2559 = vmatpush1.msra.mxu0 %v2543
    %2560 = vmatprep.subr.mxu0 0.0
    %2561 = vmatpush1.msra.mxu0 %v2544
    %2562 = vmatprep.subr.mxu0 0.0
    %2563 = vmatpush1.msra.mxu0 %v2545
    %2564 = vmatprep.subr.mxu0 0.0
    %2565 = vmatpush1.msra.mxu0 %v2546
    %2566 = vmatprep.subr.mxu0 0.0
    %2567 = vmatpush1.msra.mxu0 0.0
    %2568 = vmatprep.subr.mxu0 0.0
    %2569 = vmatpush1.msra.mxu0 0.0
    %2570 = vmatprep.subr.mxu0 0.0
    %2571 = vmatpush1.msra.mxu0 0.0
    %2572 = vmatprep.subr.mxu0 0.0
    %2573 = vmatpush1.msra.mxu0 0.0
    %2574 = vmatprep.subr.mxu0 0.0
    %2575 = vmatpush1.msra.mxu0 0.0
    %2576 = vmatprep.subr.mxu0 0.0
    %2577 = vmatpush1.msra.mxu0 0.0
    %2578 = vmatprep.subr.mxu0 0.0
    %2579 = vmatpush1.msra.mxu0 0.0
    %2580 = vmatprep.subr.mxu0 0.0
    %2581 = vmatpush1.msra.mxu0 0.0
    %2582 = vmatprep.subr.mxu0 0.0
    %2583 = vmatpush1.msra.mxu0 0.0
    %2584 = vmatprep.subr.mxu0 0.0
    %2585 = vmatpush1.msra.mxu0 0.0
    %2586 = vmatprep.subr.mxu0 0.0
    %2587 = vmatpush1.msra.mxu0 0.0
    %2588 = vmatprep.subr.mxu0 0.0
    %2589 = vmatpush1.msra.mxu0 0.0
    %2590 = vmatprep.subr.mxu0 0.0
    %2591 = vmatpush1.msra.mxu0 0.0
    %2592 = vmatprep.subr.mxu0 0.0
    %2593 = vmatpush1.msra.mxu0 0.0
    %2594 = vmatprep.subr.mxu0 0.0
    %2595 = vmatpush1.msra.mxu0 0.0
    %2596 = vmatprep.subr.mxu0 0.0
    %2597 = vmatpush1.msra.mxu0 0.0
    %2598 = vmatprep.subr.mxu0 0.0
    %2599 = vmatpush1.msra.mxu0 0.0
    %2600 = vmatprep.subr.mxu0 0.0
    %2601 = vmatpush1.msra.mxu0 0.0
    %2602 = vmatprep.subr.mxu0 0.0
    %2603 = vmatpush1.msra.mxu0 0.0
    %2604 = vmatprep.subr.mxu0 0.0
    %2605 = vmatpush1.msra.mxu0 0.0
    %2606 = vmatprep.subr.mxu0 0.0
    %2607 = vmatpush1.msra.mxu0 0.0
    %2608 = vmatprep.subr.mxu0 0.0
    %2609 = vmatpush1.msra.mxu0 0.0
    %2610 = vmatprep.subr.mxu0 0.0
    %2611 = vmatpush1.msra.mxu0 0.0
    %2612 = vmatprep.subr.mxu0 0.0
    %2613 = vmatpush1.msra.mxu0 0.0
    %2614 = vmatprep.subr.mxu0 0.0
    %2615 = vmatpush1.msra.mxu0 0.0
    %2616 = vmatprep.subr.mxu0 0.0
    %2617 = vmatpush1.msra.mxu0 0.0
    %2618 = vmatprep.subr.mxu0 0.0
    %2619 = vmatpush1.msra.mxu0 0.0
    %2620 = vmatprep.subr.mxu0 0.0
    %2621 = vmatpush1.msra.mxu0 0.0
    %2622 = vmatprep.mubr.f32.mxu0 0.0
    %2623 = vmatmul.mubr.f32.gmra.mrb[0].mxu0 %v2553
    %v2624 = vpop.f32.mrb[0].mxu0
    %v2625 = vadd.f32 %v2551, %v2624
    %v2626 = vpop.f32.mrb[0].mxu0
    %2627 = vmatprep.mubr.f32.mxu0 0.0
    %2628 = vmatmul.mubr.f32.gmra.mrb[0].mxu0 %v2556
    %v2629 = vpop.f32.mrb[0].mxu0
    %v2630 = vadd.f32 %v2551, %v2629
    %v2631 = vpop.f32.mrb[0].mxu0
    %2632 = vdwg.mxu0
    %v2633 = vmax.f32 %v2625, 0.0
    %v2634 = vmax.f32 %v2630, 0.0
    %v2635 = vld [vmem:[#allocation2 + $0x1c8] sm:$0xff]
    %v2636 = vld [vmem:[#allocation2 + $0x1d0] sm:$0xff]
    %v2637 = vld [vmem:[#allocation2 + $0x1d8] sm:$0xff]
    %v2638 = vld [vmem:[#allocation2 + $0x1e0] sm:$0xff]
    %v2639 = vld [vmem:[#allocation2 + $0x1e8] sm:$0xff]
    %v2640 = vld [vmem:[#allocation2 + $0x1f0] sm:$0xff]
    %v2641 = vld [vmem:[#allocation2 + $0x1f8] sm:$0xff]
    %v2642 = vld [vmem:[#allocation2 + $0x200] sm:$0xff]
    %v2643 = vld [vmem:[#allocation2 + $0x208] sm:$0xff]
    %v2644 = vld [vmem:[#allocation2 + $0x210] sm:$0xff]
    %v2645 = vld [vmem:[#allocation2 + $0x218] sm:$0xff]
    %v2646 = vld [vmem:[#allocation2 + $0x220] sm:$0xff]
    %v2647 = vld [vmem:[#allocation2 + $0x228] sm:$0xff]
    %v2648 = vld [vmem:[#allocation2 + $0x230] sm:$0xff]
    %v2649 = vld [vmem:[#allocation2 + $0x238] sm:$0xff]
    %v2650 = vld [vmem:[#allocation2 + $0x240] sm:$0xff]
    %v2651 = vld [vmem:[#allocation2 + $0x248] sm:$0x1]
    %v2652 = vlaneseq
    %v2653 = vshrl.u32 %v2652, 7
    %v2654 = vsub.s32 0, %v2653
    %v2655 = vrot.slane %v2651, %v2654
    %2656 = vmatprep.subr.mxu0 0.0
    %2657 = vmatpush1.msra.mxu0 %v2635
    %2658 = vmatprep.subr.mxu0 0.0
    %2659 = vmatpush1.msra.mxu0 %v2636
    %2660 = vmatprep.subr.mxu0 0.0
    %2661 = vmatpush1.msra.mxu0 %v2637
    %2662 = vmatprep.subr.mxu0 0.0
    %2663 = vmatpush1.msra.mxu0 %v2638
    %2664 = vmatprep.subr.mxu0 0.0
    %2665 = vmatpush1.msra.mxu0 %v2639
    %2666 = vmatprep.subr.mxu0 0.0
    %2667 = vmatpush1.msra.mxu0 %v2640
    %2668 = vmatprep.subr.mxu0 0.0
    %2669 = vmatpush1.msra.mxu0 %v2641
    %2670 = vmatprep.subr.mxu0 0.0
    %2671 = vmatpush1.msra.mxu0 %v2642
    %2672 = vmatprep.subr.mxu0 0.0
    %2673 = vmatpush1.msra.mxu0 %v2643
    %2674 = vmatprep.subr.mxu0 0.0
    %2675 = vmatpush1.msra.mxu0 %v2644
    %2676 = vmatprep.subr.mxu0 0.0
    %2677 = vmatpush1.msra.mxu0 %v2645
    %2678 = vmatprep.subr.mxu0 0.0
    %2679 = vmatpush1.msra.mxu0 %v2646
    %2680 = vmatprep.subr.mxu0 0.0
    %2681 = vmatpush1.msra.mxu0 %v2647
    %2682 = vmatprep.subr.mxu0 0.0
    %2683 = vmatpush1.msra.mxu0 %v2648
    %2684 = vmatprep.subr.mxu0 0.0
    %2685 = vmatpush1.msra.mxu0 %v2649
    %2686 = vmatprep.subr.mxu0 0.0
    %2687 = vmatpush1.msra.mxu0 %v2650
    %2688 = vmatprep.subr.mxu0 0.0
    %2689 = vmatpush1.msra.mxu0 0.0
    %2690 = vmatprep.subr.mxu0 0.0
    %2691 = vmatpush1.msra.mxu0 0.0
    %2692 = vmatprep.subr.mxu0 0.0
    %2693 = vmatpush1.msra.mxu0 0.0
    %2694 = vmatprep.subr.mxu0 0.0
    %2695 = vmatpush1.msra.mxu0 0.0
    %2696 = vmatprep.subr.mxu0 0.0
    %2697 = vmatpush1.msra.mxu0 0.0
    %2698 = vmatprep.subr.mxu0 0.0
    %2699 = vmatpush1.msra.mxu0 0.0
    %2700 = vmatprep.subr.mxu0 0.0
    %2701 = vmatpush1.msra.mxu0 0.0
    %2702 = vmatprep.subr.mxu0 0.0
    %2703 = vmatpush1.msra.mxu0 0.0
    %2704 = vmatprep.subr.mxu0 0.0
    %2705 = vmatpush1.msra.mxu0 0.0
    %2706 = vmatprep.subr.mxu0 0.0
    %2707 = vmatpush1.msra.mxu0 0.0
    %2708 = vmatprep.subr.mxu0 0.0
    %2709 = vmatpush1.msra.mxu0 0.0
    %2710 = vmatprep.subr.mxu0 0.0
    %2711 = vmatpush1.msra.mxu0 0.0
    %2712 = vmatprep.subr.mxu0 0.0
    %2713 = vmatpush1.msra.mxu0 0.0
    %2714 = vmatprep.subr.mxu0 0.0
    %2715 = vmatpush1.msra.mxu0 0.0
    %2716 = vmatprep.subr.mxu0 0.0
    %2717 = vmatpush1.msra.mxu0 0.0
    %2718 = vmatprep.subr.mxu0 0.0
    %2719 = vmatpush1.msra.mxu0 0.0
    %2720 = vmatprep.mubr.f32.mxu0 0.0
    %2721 = vmatmul.mubr.f32.gmra.mrb[0].mxu0 %v2633
    %v2722 = vpop.f32.mrb[0].mxu0
    %v2723 = vadd.f32 %v2655, %v2722
    %v2724 = vpop.f32.mrb[0].mxu0
    %2725 = vmatprep.mubr.f32.mxu0 0.0
    %2726 = vmatmul.mubr.f32.gmra.mrb[0].mxu0 %v2634
    %v2727 = vpop.f32.mrb[0].mxu0
    %v2728 = vadd.f32 %v2655, %v2727
    %v2729 = vpop.f32.mrb[0].mxu0
    %2730 = vdwg.mxu0
    %v2731 = vadd.f32 %v2503, %v2723
    %v2732 = vadd.f32 %v2504, %v2728
    %v2733 = vsel %vm150, %v2731, 0.0
    %2734 = vadd.xlane.f32.xlu0 %v2733
    %v2735 = vpop.xlane.xlu0 %2734
    %v2736 = vsel %vm150, %v2732, 0.0
    %2737 = vadd.xlane.f32.xlu0 %v2736
    %v2738 = vpop.xlane.xlu0 %2737
    %v2739 = vmul.f32 %v2735, %v157
    %v2740 = vmul.f32 %v2738, %v157
    %v2741 = vsub.f32 %v2731, %v2739
    %v2742 = vsub.f32 %v2732, %v2740
    %v2743 = vmul.f32 %v2741, %v2741
    %v2744 = vmul.f32 %v2742, %v2742
    %v2745 = vsel %vm150, %v2743, 0.0
    %2746 = vadd.xlane.f32.xlu0 %v2745
    %v2747 = vpop.xlane.xlu0 %2746
    %v2748 = vsel %vm150, %v2744, 0.0
    %2749 = vadd.xlane.f32.xlu0 %v2748
    %v2750 = vpop.xlane.xlu0 %2749
    %v2751 = vmul.f32 %v2747, %v157
    %v2752 = vmul.f32 %v2750, %v157
    %v2753 = vadd.f32 %v2751, 1e-05
    %v2754 = vadd.f32 %v2752, 1e-05
    %v2755 = vrsqrt.pop %v2753
    %v2756 = vrsqrt.pop %v2754
    %v2757 = vmul.f32 %v2741, %v2755
    %v2758 = vmul.f32 %v2742, %v2756
    %v2759 = vlaneseq
    %v2760 = vshrl.u32 %v2759, 7
    %v2761 = vsub.s32 4, %v2760
    %v2762 = vrot.slane %v148, %v2761
    %v2763 = vmul.f32 %v2757, %v2762
    %v2764 = vmul.f32 %v2758, %v2762
    %v2765 = vlaneseq
    %v2766 = vshrl.u32 %v2765, 7
    %v2767 = vsub.s32 4, %v2766
    %v2768 = vrot.slane %v149, %v2767
    %v2769 = vadd.f32 %v2763, %v2768
    %v2770 = vadd.f32 %v2764, %v2768
    %v2771 = vld [vmem:[#allocation2 + $0x250] sm:$0xff]
    %v2772 = vld [vmem:[#allocation2 + $0x258] sm:$0xff]
    %v2773 = vld [vmem:[#allocation2 + $0x260] sm:$0xff]
    %v2774 = vld [vmem:[#allocation2 + $0x268] sm:$0xff]
    %v2776 = vsel %vm150, %v2769, 0
    %v2779 = vsel %vm150, %v2770, 0
    %2781 = vmatprep.subr.mxu0 0.0
    %2782 = vmatpush1.msra.mxu0 %v2771
    %2783 = vmatprep.subr.mxu0 0.0
    %2784 = vmatpush1.msra.mxu0 %v2772
    %2785 = vmatprep.subr.mxu0 0.0
    %2786 = vmatpush1.msra.mxu0 %v2773
    %2787 = vmatprep.subr.mxu0 0.0
    %2788 = vmatpush1.msra.mxu0 %v2774
    %2789 = vmatprep.subr.mxu0 0.0
    %2790 = vmatpush1.msra.mxu0 0.0
    %2791 = vmatprep.subr.mxu0 0.0
    %2792 = vmatpush1.msra.mxu0 0.0
    %2793 = vmatprep.subr.mxu0 0.0
    %2794 = vmatpush1.msra.mxu0 0.0
    %2795 = vmatprep.subr.mxu0 0.0
    %2796 = vmatpush1.msra.mxu0 0.0
    %2797 = vmatprep.subr.mxu0 0.0
    %2798 = vmatpush1.msra.mxu0 0.0
    %2799 = vmatprep.subr.mxu0 0.0
    %2800 = vmatpush1.msra.mxu0 0.0
    %2801 = vmatprep.subr.mxu0 0.0
    %2802 = vmatpush1.msra.mxu0 0.0
    %2803 = vmatprep.subr.mxu0 0.0
    %2804 = vmatpush1.msra.mxu0 0.0
    %2805 = vmatprep.subr.mxu0 0.0
    %2806 = vmatpush1.msra.mxu0 0.0
    %2807 = vmatprep.subr.mxu0 0.0
    %2808 = vmatpush1.msra.mxu0 0.0
    %2809 = vmatprep.subr.mxu0 0.0
    %2810 = vmatpush1.msra.mxu0 0.0
    %2811 = vmatprep.subr.mxu0 0.0
    %2812 = vmatpush1.msra.mxu0 0.0
    %2813 = vmatprep.subr.mxu0 0.0
    %2814 = vmatpush1.msra.mxu0 0.0
    %2815 = vmatprep.subr.mxu0 0.0
    %2816 = vmatpush1.msra.mxu0 0.0
    %2817 = vmatprep.subr.mxu0 0.0
    %2818 = vmatpush1.msra.mxu0 0.0
    %2819 = vmatprep.subr.mxu0 0.0
    %2820 = vmatpush1.msra.mxu0 0.0
    %2821 = vmatprep.subr.mxu0 0.0
    %2822 = vmatpush1.msra.mxu0 0.0
    %2823 = vmatprep.subr.mxu0 0.0
    %2824 = vmatpush1.msra.mxu0 0.0
    %2825 = vmatprep.subr.mxu0 0.0
    %2826 = vmatpush1.msra.mxu0 0.0
    %2827 = vmatprep.subr.mxu0 0.0
    %2828 = vmatpush1.msra.mxu0 0.0
    %2829 = vmatprep.subr.mxu0 0.0
    %2830 = vmatpush1.msra.mxu0 0.0
    %2831 = vmatprep.subr.mxu0 0.0
    %2832 = vmatpush1.msra.mxu0 0.0
    %2833 = vmatprep.subr.mxu0 0.0
    %2834 = vmatpush1.msra.mxu0 0.0
    %2835 = vmatprep.subr.mxu0 0.0
    %2836 = vmatpush1.msra.mxu0 0.0
    %2837 = vmatprep.subr.mxu0 0.0
    %2838 = vmatpush1.msra.mxu0 0.0
    %2839 = vmatprep.subr.mxu0 0.0
    %2840 = vmatpush1.msra.mxu0 0.0
    %2841 = vmatprep.subr.mxu0 0.0
    %2842 = vmatpush1.msra.mxu0 0.0
    %2843 = vmatprep.subr.mxu0 0.0
    %2844 = vmatpush1.msra.mxu0 0.0
    %2845 = vmatprep.mubr.f32.mxu0 0.0
    %2846 = vmatmul.mubr.f32.gmra.mrb[0].mxu0 %v2776
    %v2847 = vpop.f32.mrb[0].mxu0
    %v2848 = vadd.f32 0.0, %v2847
    %v2849 = vpop.f32.mrb[0].mxu0
    %2850 = vmatprep.mubr.f32.mxu0 0.0
    %2851 = vmatmul.mubr.f32.gmra.mrb[0].mxu0 %v2779
    %v2852 = vpop.f32.mrb[0].mxu0
    %v2853 = vadd.f32 0.0, %v2852
    %v2854 = vpop.f32.mrb[0].mxu0
    %2855 = vdwg.mxu0
    %2858 = vrot.lane.b32.xlu0 %v2848, 96
    %v2859 = vpop.permute.xlu0 %2858
    %2860 = vrot.lane.b32.xlu0 %v2853, 96
    %v2861 = vpop.permute.xlu0 %2860
    %v2862 = vsel %vm281, %v2848, 0
    %v2864 = vsel %vm281, %v2853, 0
    %v2866 = vsel %vm281, %v2859, 0
    %v2868 = vsel %vm281, %v2861, 0
    %2870 = vmatprep.subr.mxu0 0.0
    %2871 = vmatpush1.xpose.msra.mxu0 %v2866
    %2872 = vmatprep.subr.mxu0 0.0
    %2873 = vmatpush1.xpose.msra.mxu0 %v2868
    %2874 = vmatprep.subr.mxu0 0.0
    %2875 = vmatpush1.xpose.msra.mxu0 0.0
    %2876 = vmatprep.subr.mxu0 0.0
    %2877 = vmatpush1.xpose.msra.mxu0 0.0
    %2878 = vmatprep.subr.mxu0 0.0
    %2879 = vmatpush1.xpose.msra.mxu0 0.0
    %2880 = vmatprep.subr.mxu0 0.0
    %2881 = vmatpush1.xpose.msra.mxu0 0.0
    %2882 = vmatprep.subr.mxu0 0.0
    %2883 = vmatpush1.xpose.msra.mxu0 0.0
    %2884 = vmatprep.subr.mxu0 0.0
    %2885 = vmatpush1.xpose.msra.mxu0 0.0
    %2886 = vmatprep.subr.mxu0 0.0
    %2887 = vmatpush1.xpose.msra.mxu0 0.0
    %2888 = vmatprep.subr.mxu0 0.0
    %2889 = vmatpush1.xpose.msra.mxu0 0.0
    %2890 = vmatprep.subr.mxu0 0.0
    %2891 = vmatpush1.xpose.msra.mxu0 0.0
    %2892 = vmatprep.subr.mxu0 0.0
    %2893 = vmatpush1.xpose.msra.mxu0 0.0
    %2894 = vmatprep.subr.mxu0 0.0
    %2895 = vmatpush1.xpose.msra.mxu0 0.0
    %2896 = vmatprep.subr.mxu0 0.0
    %2897 = vmatpush1.xpose.msra.mxu0 0.0
    %2898 = vmatprep.subr.mxu0 0.0
    %2899 = vmatpush1.xpose.msra.mxu0 0.0
    %2900 = vmatprep.subr.mxu0 0.0
    %2901 = vmatpush1.xpose.msra.mxu0 0.0
    %2902 = vmatprep.subr.mxu0 0.0
    %2903 = vmatpush1.xpose.msra.mxu0 0.0
    %2904 = vmatprep.subr.mxu0 0.0
    %2905 = vmatpush1.xpose.msra.mxu0 0.0
    %2906 = vmatprep.subr.mxu0 0.0
    %2907 = vmatpush1.xpose.msra.mxu0 0.0
    %2908 = vmatprep.subr.mxu0 0.0
    %2909 = vmatpush1.xpose.msra.mxu0 0.0
    %2910 = vmatprep.subr.mxu0 0.0
    %2911 = vmatpush1.xpose.msra.mxu0 0.0
    %2912 = vmatprep.subr.mxu0 0.0
    %2913 = vmatpush1.xpose.msra.mxu0 0.0
    %2914 = vmatprep.subr.mxu0 0.0
    %2915 = vmatpush1.xpose.msra.mxu0 0.0
    %2916 = vmatprep.subr.mxu0 0.0
    %2917 = vmatpush1.xpose.msra.mxu0 0.0
    %2918 = vmatprep.subr.mxu0 0.0
    %2919 = vmatpush1.xpose.msra.mxu0 0.0
    %2920 = vmatprep.subr.mxu0 0.0
    %2921 = vmatpush1.xpose.msra.mxu0 0.0
    %2922 = vmatprep.subr.mxu0 0.0
    %2923 = vmatpush1.xpose.msra.mxu0 0.0
    %2924 = vmatprep.subr.mxu0 0.0
    %2925 = vmatpush1.xpose.msra.mxu0 0.0
    %2926 = vmatprep.subr.mxu0 0.0
    %2927 = vmatpush1.xpose.msra.mxu0 0.0
    %2928 = vmatprep.subr.mxu0 0.0
    %2929 = vmatpush1.xpose.msra.mxu0 0.0
    %2930 = vmatprep.subr.mxu0 0.0
    %2931 = vmatpush1.xpose.msra.mxu0 0.0
    %2932 = vmatprep.subr.mxu0 0.0
    %2933 = vmatpush1.xpose.msra.mxu0 0.0
    %2934 = vmatprep.mubr.f32.mxu0 0.0
    %2935 = vmatmul.mubr.f32.gmra.mrb[0].mxu0 %v2862
    %v2936 = vpop.f32.mrb[0].mxu0
    %v2937 = vadd.f32 0.0, %v2936
    %v2938 = vpop.f32.mrb[0].mxu0
    %2939 = vmatprep.mubr.f32.mxu0 0.0
    %2940 = vmatmul.mubr.f32.gmra.mrb[0].mxu0 %v2864
    %v2941 = vpop.f32.mrb[0].mxu0
    %v2942 = vadd.f32 0.0, %v2941
    %v2943 = vpop.f32.mrb[0].mxu0
    %2944 = vdwg.mxu0
    %v2945 = vmul.f32 %v2937, 0.17677669
    %v2946 = vmul.f32 %v2942, 0.17677669
    %v2947 = vadd.f32 %v2945, %v146
    %v2948 = vadd.f32 %v2946, %v147
    %v2949 = vsel %vm369, %v2947, -inf
    %2950 = vmax.xlane.f32.xlu0 %v2949
    %v2951 = vpop.xlane.xlu0 %2950
    %v2952 = vsel %vm369, %v2948, -inf
    %2953 = vmax.xlane.f32.xlu0 %v2952
    %v2954 = vpop.xlane.xlu0 %2953
    %v2955 = vsub.f32 %v2947, %v2951
    %v2956 = vsub.f32 %v2948, %v2954
    %v2957 = vmul.f32 %v2955, 1.442695
    %v2958 = vpow.pop %v2957
    %v2959 = vmul.f32 %v2956, 1.442695
    %v2960 = vpow.pop %v2959
    %v2961 = vsel %vm369, %v2958, 0.0
    %2962 = vadd.xlane.f32.xlu0 %v2961
    %v2963 = vpop.xlane.xlu0 %2962
    %v2964 = vsel %vm369, %v2960, 0.0
    %2965 = vadd.xlane.f32.xlu0 %v2964
    %v2966 = vpop.xlane.xlu0 %2965
    %v2967 = vrcp.pop %v2963
    %v2968 = vrcp.pop %v2966
    %v2969 = vmul.f32 %v2958, %v2967
    %v2970 = vmul.f32 %v2960, %v2968
    %2971 = vrot.lane.b32.xlu0 %v2848, 64
    %v2972 = vpop.permute.xlu0 %2971
    %2973 = vrot.lane.b32.xlu0 %v2853, 64
    %v2974 = vpop.permute.xlu0 %2973
    %v2978 = vsel %vm369, %v2969, 0
    %v2981 = vsel %vm369, %v2970, 0
    %2983 = vmatprep.subr.mxu0 0.0
    %2984 = vmatpush1.msra.mxu0 %v2972
    %2985 = vmatprep.subr.mxu0 0.0
    %2986 = vmatpush1.msra.mxu0 %v2974
    %2987 = vmatprep.subr.mxu0 0.0
    %2988 = vmatpush1.msra.mxu0 0.0
    %2989 = vmatprep.subr.mxu0 0.0
    %2990 = vmatpush1.msra.mxu0 0.0
    %2991 = vmatprep.subr.mxu0 0.0
    %2992 = vmatpush1.msra.mxu0 0.0
    %2993 = vmatprep.subr.mxu0 0.0
    %2994 = vmatpush1.msra.mxu0 0.0
    %2995 = vmatprep.subr.mxu0 0.0
    %2996 = vmatpush1.msra.mxu0 0.0
    %2997 = vmatprep.subr.mxu0 0.0
    %2998 = vmatpush1.msra.mxu0 0.0
    %2999 = vmatprep.subr.mxu0 0.0
    %3000 = vmatpush1.msra.mxu0 0.0
    %3001 = vmatprep.subr.mxu0 0.0
    %3002 = vmatpush1.msra.mxu0 0.0
    %3003 = vmatprep.subr.mxu0 0.0
    %3004 = vmatpush1.msra.mxu0 0.0
    %3005 = vmatprep.subr.mxu0 0.0
    %3006 = vmatpush1.msra.mxu0 0.0
    %3007 = vmatprep.subr.mxu0 0.0
    %3008 = vmatpush1.msra.mxu0 0.0
    %3009 = vmatprep.subr.mxu0 0.0
    %3010 = vmatpush1.msra.mxu0 0.0
    %3011 = vmatprep.subr.mxu0 0.0
    %3012 = vmatpush1.msra.mxu0 0.0
    %3013 = vmatprep.subr.mxu0 0.0
    %3014 = vmatpush1.msra.mxu0 0.0
    %3015 = vmatprep.subr.mxu0 0.0
    %3016 = vmatpush1.msra.mxu0 0.0
    %3017 = vmatprep.subr.mxu0 0.0
    %3018 = vmatpush1.msra.mxu0 0.0
    %3019 = vmatprep.subr.mxu0 0.0
    %3020 = vmatpush1.msra.mxu0 0.0
    %3021 = vmatprep.subr.mxu0 0.0
    %3022 = vmatpush1.msra.mxu0 0.0
    %3023 = vmatprep.subr.mxu0 0.0
    %3024 = vmatpush1.msra.mxu0 0.0
    %3025 = vmatprep.subr.mxu0 0.0
    %3026 = vmatpush1.msra.mxu0 0.0
    %3027 = vmatprep.subr.mxu0 0.0
    %3028 = vmatpush1.msra.mxu0 0.0
    %3029 = vmatprep.subr.mxu0 0.0
    %3030 = vmatpush1.msra.mxu0 0.0
    %3031 = vmatprep.subr.mxu0 0.0
    %3032 = vmatpush1.msra.mxu0 0.0
    %3033 = vmatprep.subr.mxu0 0.0
    %3034 = vmatpush1.msra.mxu0 0.0
    %3035 = vmatprep.subr.mxu0 0.0
    %3036 = vmatpush1.msra.mxu0 0.0
    %3037 = vmatprep.subr.mxu0 0.0
    %3038 = vmatpush1.msra.mxu0 0.0
    %3039 = vmatprep.subr.mxu0 0.0
    %3040 = vmatpush1.msra.mxu0 0.0
    %3041 = vmatprep.subr.mxu0 0.0
    %3042 = vmatpush1.msra.mxu0 0.0
    %3043 = vmatprep.subr.mxu0 0.0
    %3044 = vmatpush1.msra.mxu0 0.0
    %3045 = vmatprep.subr.mxu0 0.0
    %3046 = vmatpush1.msra.mxu0 0.0
    %3047 = vmatprep.mubr.f32.mxu0 0.0
    %3048 = vmatmul.mubr.f32.gmra.mrb[0].mxu0 %v2978
    %v3049 = vpop.f32.mrb[0].mxu0
    %v3050 = vadd.f32 0.0, %v3049
    %v3051 = vpop.f32.mrb[0].mxu0
    %3052 = vmatprep.mubr.f32.mxu0 0.0
    %3053 = vmatmul.mubr.f32.gmra.mrb[0].mxu0 %v2981
    %v3054 = vpop.f32.mrb[0].mxu0
    %v3055 = vadd.f32 0.0, %v3054
    %v3056 = vpop.f32.mrb[0].mxu0
    %3057 = vdwg.mxu0
    %3058 = vrot.lane.b32.xlu0 %v2848, 120
    %v3059 = vpop.permute.xlu0 %3058
    %3060 = vrot.lane.b32.xlu0 %v2853, 120
    %v3061 = vpop.permute.xlu0 %3060
    %3062 = vrot.lane.b32.xlu0 %v2848, 88
    %v3063 = vpop.permute.xlu0 %3062
    %3064 = vrot.lane.b32.xlu0 %v2853, 88
    %v3065 = vpop.permute.xlu0 %3064
    %v3066 = vsel %vm281, %v3059, 0
    %v3068 = vsel %vm281, %v3061, 0
    %v3070 = vsel %vm281, %v3063, 0
    %v3072 = vsel %vm281, %v3065, 0
    %3074 = vmatprep.subr.mxu0 0.0
    %3075 = vmatpush1.xpose.msra.mxu0 %v3070
    %3076 = vmatprep.subr.mxu0 0.0
    %3077 = vmatpush1.xpose.msra.mxu0 %v3072
    %3078 = vmatprep.subr.mxu0 0.0
    %3079 = vmatpush1.xpose.msra.mxu0 0.0
    %3080 = vmatprep.subr.mxu0 0.0
    %3081 = vmatpush1.xpose.msra.mxu0 0.0
    %3082 = vmatprep.subr.mxu0 0.0
    %3083 = vmatpush1.xpose.msra.mxu0 0.0
    %3084 = vmatprep.subr.mxu0 0.0
    %3085 = vmatpush1.xpose.msra.mxu0 0.0
    %3086 = vmatprep.subr.mxu0 0.0
    %3087 = vmatpush1.xpose.msra.mxu0 0.0
    %3088 = vmatprep.subr.mxu0 0.0
    %3089 = vmatpush1.xpose.msra.mxu0 0.0
    %3090 = vmatprep.subr.mxu0 0.0
    %3091 = vmatpush1.xpose.msra.mxu0 0.0
    %3092 = vmatprep.subr.mxu0 0.0
    %3093 = vmatpush1.xpose.msra.mxu0 0.0
    %3094 = vmatprep.subr.mxu0 0.0
    %3095 = vmatpush1.xpose.msra.mxu0 0.0
    %3096 = vmatprep.subr.mxu0 0.0
    %3097 = vmatpush1.xpose.msra.mxu0 0.0
    %3098 = vmatprep.subr.mxu0 0.0
    %3099 = vmatpush1.xpose.msra.mxu0 0.0
    %3100 = vmatprep.subr.mxu0 0.0
    %3101 = vmatpush1.xpose.msra.mxu0 0.0
    %3102 = vmatprep.subr.mxu0 0.0
    %3103 = vmatpush1.xpose.msra.mxu0 0.0
    %3104 = vmatprep.subr.mxu0 0.0
    %3105 = vmatpush1.xpose.msra.mxu0 0.0
    %3106 = vmatprep.subr.mxu0 0.0
    %3107 = vmatpush1.xpose.msra.mxu0 0.0
    %3108 = vmatprep.subr.mxu0 0.0
    %3109 = vmatpush1.xpose.msra.mxu0 0.0
    %3110 = vmatprep.subr.mxu0 0.0
    %3111 = vmatpush1.xpose.msra.mxu0 0.0
    %3112 = vmatprep.subr.mxu0 0.0
    %3113 = vmatpush1.xpose.msra.mxu0 0.0
    %3114 = vmatprep.subr.mxu0 0.0
    %3115 = vmatpush1.xpose.msra.mxu0 0.0
    %3116 = vmatprep.subr.mxu0 0.0
    %3117 = vmatpush1.xpose.msra.mxu0 0.0
    %3118 = vmatprep.subr.mxu0 0.0
    %3119 = vmatpush1.xpose.msra.mxu0 0.0
    %3120 = vmatprep.subr.mxu0 0.0
    %3121 = vmatpush1.xpose.msra.mxu0 0.0
    %3122 = vmatprep.subr.mxu0 0.0
    %3123 = vmatpush1.xpose.msra.mxu0 0.0
    %3124 = vmatprep.subr.mxu0 0.0
    %3125 = vmatpush1.xpose.msra.mxu0 0.0
    %3126 = vmatprep.subr.mxu0 0.0
    %3127 = vmatpush1.xpose.msra.mxu0 0.0
    %3128 = vmatprep.subr.mxu0 0.0
    %3129 = vmatpush1.xpose.msra.mxu0 0.0
    %3130 = vmatprep.subr.mxu0 0.0
    %3131 = vmatpush1.xpose.msra.mxu0 0.0
    %3132 = vmatprep.subr.mxu0 0.0
    %3133 = vmatpush1.xpose.msra.mxu0 0.0
    %3134 = vmatprep.subr.mxu0 0.0
    %3135 = vmatpush1.xpose.msra.mxu0 0.0
    %3136 = vmatprep.subr.mxu0 0.0
    %3137 = vmatpush1.xpose.msra.mxu0 0.0
    %3138 = vmatprep.mubr.f32.mxu0 0.0
    %3139 = vmatmul.mubr.f32.gmra.mrb[0].mxu0 %v3066
    %v3140 = vpop.f32.mrb[0].mxu0
    %v3141 = vadd.f32 0.0, %v3140
    %v3142 = vpop.f32.mrb[0].mxu0
    %3143 = vmatprep.mubr.f32.mxu0 0.0
    %3144 = vmatmul.mubr.f32.gmra.mrb[0].mxu0 %v3068
    %v3145 = vpop.f32.mrb[0].mxu0
    %v3146 = vadd.f32 0.0, %v3145
    %v3147 = vpop.f32.mrb[0].mxu0
    %3148 = vdwg.mxu0
    %v3149 = vmul.f32 %v3141, 0.17677669
    %v3150 = vmul.f32 %v3146, 0.17677669
    %v3151 = vadd.f32 %v3149, %v146
    %v3152 = vadd.f32 %v3150, %v147
    %v3153 = vsel %vm369, %v3151, -inf
    %3154 = vmax.xlane.f32.xlu0 %v3153
    %v3155 = vpop.xlane.xlu0 %3154
    %v3156 = vsel %vm369, %v3152, -inf
    %3157 = vmax.xlane.f32.xlu0 %v3156
    %v3158 = vpop.xlane.xlu0 %3157
    %v3159 = vsub.f32 %v3151, %v3155
    %v3160 = vsub.f32 %v3152, %v3158
    %v3161 = vmul.f32 %v3159, 1.442695
    %v3162 = vpow.pop %v3161
    %v3163 = vmul.f32 %v3160, 1.442695
    %v3164 = vpow.pop %v3163
    %v3165 = vsel %vm369, %v3162, 0.0
    %3166 = vadd.xlane.f32.xlu0 %v3165
    %v3167 = vpop.xlane.xlu0 %3166
    %v3168 = vsel %vm369, %v3164, 0.0
    %3169 = vadd.xlane.f32.xlu0 %v3168
    %v3170 = vpop.xlane.xlu0 %3169
    %v3171 = vrcp.pop %v3167
    %v3172 = vrcp.pop %v3170
    %v3173 = vmul.f32 %v3162, %v3171
    %v3174 = vmul.f32 %v3164, %v3172
    %3175 = vrot.lane.b32.xlu0 %v2848, 56
    %v3176 = vpop.permute.xlu0 %3175
    %3177 = vrot.lane.b32.xlu0 %v2853, 56
    %v3178 = vpop.permute.xlu0 %3177
    %v3182 = vsel %vm369, %v3173, 0
    %v3185 = vsel %vm369, %v3174, 0
    %3187 = vmatprep.subr.mxu0 0.0
    %3188 = vmatpush1.msra.mxu0 %v3176
    %3189 = vmatprep.subr.mxu0 0.0
    %3190 = vmatpush1.msra.mxu0 %v3178
    %3191 = vmatprep.subr.mxu0 0.0
    %3192 = vmatpush1.msra.mxu0 0.0
    %3193 = vmatprep.subr.mxu0 0.0
    %3194 = vmatpush1.msra.mxu0 0.0
    %3195 = vmatprep.subr.mxu0 0.0
    %3196 = vmatpush1.msra.mxu0 0.0
    %3197 = vmatprep.subr.mxu0 0.0
    %3198 = vmatpush1.msra.mxu0 0.0
    %3199 = vmatprep.subr.mxu0 0.0
    %3200 = vmatpush1.msra.mxu0 0.0
    %3201 = vmatprep.subr.mxu0 0.0
    %3202 = vmatpush1.msra.mxu0 0.0
    %3203 = vmatprep.subr.mxu0 0.0
    %3204 = vmatpush1.msra.mxu0 0.0
    %3205 = vmatprep.subr.mxu0 0.0
    %3206 = vmatpush1.msra.mxu0 0.0
    %3207 = vmatprep.subr.mxu0 0.0
    %3208 = vmatpush1.msra.mxu0 0.0
    %3209 = vmatprep.subr.mxu0 0.0
    %3210 = vmatpush1.msra.mxu0 0.0
    %3211 = vmatprep.subr.mxu0 0.0
    %3212 = vmatpush1.msra.mxu0 0.0
    %3213 = vmatprep.subr.mxu0 0.0
    %3214 = vmatpush1.msra.mxu0 0.0
    %3215 = vmatprep.subr.mxu0 0.0
    %3216 = vmatpush1.msra.mxu0 0.0
    %3217 = vmatprep.subr.mxu0 0.0
    %3218 = vmatpush1.msra.mxu0 0.0
    %3219 = vmatprep.subr.mxu0 0.0
    %3220 = vmatpush1.msra.mxu0 0.0
    %3221 = vmatprep.subr.mxu0 0.0
    %3222 = vmatpush1.msra.mxu0 0.0
    %3223 = vmatprep.subr.mxu0 0.0
    %3224 = vmatpush1.msra.mxu0 0.0
    %3225 = vmatprep.subr.mxu0 0.0
    %3226 = vmatpush1.msra.mxu0 0.0
    %3227 = vmatprep.subr.mxu0 0.0
    %3228 = vmatpush1.msra.mxu0 0.0
    %3229 = vmatprep.subr.mxu0 0.0
    %3230 = vmatpush1.msra.mxu0 0.0
    %3231 = vmatprep.subr.mxu0 0.0
    %3232 = vmatpush1.msra.mxu0 0.0
    %3233 = vmatprep.subr.mxu0 0.0
    %3234 = vmatpush1.msra.mxu0 0.0
    %3235 = vmatprep.subr.mxu0 0.0
    %3236 = vmatpush1.msra.mxu0 0.0
    %3237 = vmatprep.subr.mxu0 0.0
    %3238 = vmatpush1.msra.mxu0 0.0
    %3239 = vmatprep.subr.mxu0 0.0
    %3240 = vmatpush1.msra.mxu0 0.0
    %3241 = vmatprep.subr.mxu0 0.0
    %3242 = vmatpush1.msra.mxu0 0.0
    %3243 = vmatprep.subr.mxu0 0.0
    %3244 = vmatpush1.msra.mxu0 0.0
    %3245 = vmatprep.subr.mxu0 0.0
    %3246 = vmatpush1.msra.mxu0 0.0
    %3247 = vmatprep.subr.mxu0 0.0
    %3248 = vmatpush1.msra.mxu0 0.0
    %3249 = vmatprep.subr.mxu0 0.0
    %3250 = vmatpush1.msra.mxu0 0.0
    %3251 = vmatprep.mubr.f32.mxu0 0.0
    %3252 = vmatmul.mubr.f32.gmra.mrb[0].mxu0 %v3182
    %v3253 = vpop.f32.mrb[0].mxu0
    %v3254 = vadd.f32 0.0, %v3253
    %v3255 = vpop.f32.mrb[0].mxu0
    %3256 = vmatprep.mubr.f32.mxu0 0.0
    %3257 = vmatmul.mubr.f32.gmra.mrb[0].mxu0 %v3185
    %v3258 = vpop.f32.mrb[0].mxu0
    %v3259 = vadd.f32 0.0, %v3258
    %v3260 = vpop.f32.mrb[0].mxu0
    %3261 = vdwg.mxu0
    %3262 = vrot.lane.b32.xlu0 %v2848, 112
    %v3263 = vpop.permute.xlu0 %3262
    %3264 = vrot.lane.b32.xlu0 %v2853, 112
    %v3265 = vpop.permute.xlu0 %3264
    %3266 = vrot.lane.b32.xlu0 %v2848, 80
    %v3267 = vpop.permute.xlu0 %3266
    %3268 = vrot.lane.b32.xlu0 %v2853, 80
    %v3269 = vpop.permute.xlu0 %3268
    %v3270 = vsel %vm281, %v3263, 0
    %v3272 = vsel %vm281, %v3265, 0
    %v3274 = vsel %vm281, %v3267, 0
    %v3276 = vsel %vm281, %v3269, 0
    %3278 = vmatprep.subr.mxu0 0.0
    %3279 = vmatpush1.xpose.msra.mxu0 %v3274
    %3280 = vmatprep.subr.mxu0 0.0
    %3281 = vmatpush1.xpose.msra.mxu0 %v3276
    %3282 = vmatprep.subr.mxu0 0.0
    %3283 = vmatpush1.xpose.msra.mxu0 0.0
    %3284 = vmatprep.subr.mxu0 0.0
    %3285 = vmatpush1.xpose.msra.mxu0 0.0
    %3286 = vmatprep.subr.mxu0 0.0
    %3287 = vmatpush1.xpose.msra.mxu0 0.0
    %3288 = vmatprep.subr.mxu0 0.0
    %3289 = vmatpush1.xpose.msra.mxu0 0.0
    %3290 = vmatprep.subr.mxu0 0.0
    %3291 = vmatpush1.xpose.msra.mxu0 0.0
    %3292 = vmatprep.subr.mxu0 0.0
    %3293 = vmatpush1.xpose.msra.mxu0 0.0
    %3294 = vmatprep.subr.mxu0 0.0
    %3295 = vmatpush1.xpose.msra.mxu0 0.0
    %3296 = vmatprep.subr.mxu0 0.0
    %3297 = vmatpush1.xpose.msra.mxu0 0.0
    %3298 = vmatprep.subr.mxu0 0.0
    %3299 = vmatpush1.xpose.msra.mxu0 0.0
    %3300 = vmatprep.subr.mxu0 0.0
    %3301 = vmatpush1.xpose.msra.mxu0 0.0
    %3302 = vmatprep.subr.mxu0 0.0
    %3303 = vmatpush1.xpose.msra.mxu0 0.0
    %3304 = vmatprep.subr.mxu0 0.0
    %3305 = vmatpush1.xpose.msra.mxu0 0.0
    %3306 = vmatprep.subr.mxu0 0.0
    %3307 = vmatpush1.xpose.msra.mxu0 0.0
    %3308 = vmatprep.subr.mxu0 0.0
    %3309 = vmatpush1.xpose.msra.mxu0 0.0
    %3310 = vmatprep.subr.mxu0 0.0
    %3311 = vmatpush1.xpose.msra.mxu0 0.0
    %3312 = vmatprep.subr.mxu0 0.0
    %3313 = vmatpush1.xpose.msra.mxu0 0.0
    %3314 = vmatprep.subr.mxu0 0.0
    %3315 = vmatpush1.xpose.msra.mxu0 0.0
    %3316 = vmatprep.subr.mxu0 0.0
    %3317 = vmatpush1.xpose.msra.mxu0 0.0
    %3318 = vmatprep.subr.mxu0 0.0
    %3319 = vmatpush1.xpose.msra.mxu0 0.0
    %3320 = vmatprep.subr.mxu0 0.0
    %3321 = vmatpush1.xpose.msra.mxu0 0.0
    %3322 = vmatprep.subr.mxu0 0.0
    %3323 = vmatpush1.xpose.msra.mxu0 0.0
    %3324 = vmatprep.subr.mxu0 0.0
    %3325 = vmatpush1.xpose.msra.mxu0 0.0
    %3326 = vmatprep.subr.mxu0 0.0
    %3327 = vmatpush1.xpose.msra.mxu0 0.0
    %3328 = vmatprep.subr.mxu0 0.0
    %3329 = vmatpush1.xpose.msra.mxu0 0.0
    %3330 = vmatprep.subr.mxu0 0.0
    %3331 = vmatpush1.xpose.msra.mxu0 0.0
    %3332 = vmatprep.subr.mxu0 0.0
    %3333 = vmatpush1.xpose.msra.mxu0 0.0
    %3334 = vmatprep.subr.mxu0 0.0
    %3335 = vmatpush1.xpose.msra.mxu0 0.0
    %3336 = vmatprep.subr.mxu0 0.0
    %3337 = vmatpush1.xpose.msra.mxu0 0.0
    %3338 = vmatprep.subr.mxu0 0.0
    %3339 = vmatpush1.xpose.msra.mxu0 0.0
    %3340 = vmatprep.subr.mxu0 0.0
    %3341 = vmatpush1.xpose.msra.mxu0 0.0
    %3342 = vmatprep.mubr.f32.mxu0 0.0
    %3343 = vmatmul.mubr.f32.gmra.mrb[0].mxu0 %v3270
    %v3344 = vpop.f32.mrb[0].mxu0
    %v3345 = vadd.f32 0.0, %v3344
    %v3346 = vpop.f32.mrb[0].mxu0
    %3347 = vmatprep.mubr.f32.mxu0 0.0
    %3348 = vmatmul.mubr.f32.gmra.mrb[0].mxu0 %v3272
    %v3349 = vpop.f32.mrb[0].mxu0
    %v3350 = vadd.f32 0.0, %v3349
    %v3351 = vpop.f32.mrb[0].mxu0
    %3352 = vdwg.mxu0
    %v3353 = vmul.f32 %v3345, 0.17677669
    %v3354 = vmul.f32 %v3350, 0.17677669
    %v3355 = vadd.f32 %v3353, %v146
    %v3356 = vadd.f32 %v3354, %v147
    %v3357 = vsel %vm369, %v3355, -inf
    %3358 = vmax.xlane.f32.xlu0 %v3357
    %v3359 = vpop.xlane.xlu0 %3358
    %v3360 = vsel %vm369, %v3356, -inf
    %3361 = vmax.xlane.f32.xlu0 %v3360
    %v3362 = vpop.xlane.xlu0 %3361
    %v3363 = vsub.f32 %v3355, %v3359
    %v3364 = vsub.f32 %v3356, %v3362
    %v3365 = vmul.f32 %v3363, 1.442695
    %v3366 = vpow.pop %v3365
    %v3367 = vmul.f32 %v3364, 1.442695
    %v3368 = vpow.pop %v3367
    %v3369 = vsel %vm369, %v3366, 0.0
    %3370 = vadd.xlane.f32.xlu0 %v3369
    %v3371 = vpop.xlane.xlu0 %3370
    %v3372 = vsel %vm369, %v3368, 0.0
    %3373 = vadd.xlane.f32.xlu0 %v3372
    %v3374 = vpop.xlane.xlu0 %3373
    %v3375 = vrcp.pop %v3371
    %v3376 = vrcp.pop %v3374
    %v3377 = vmul.f32 %v3366, %v3375
    %v3378 = vmul.f32 %v3368, %v3376
    %3379 = vrot.lane.b32.xlu0 %v2848, 48
    %v3380 = vpop.permute.xlu0 %3379
    %3381 = vrot.lane.b32.xlu0 %v2853, 48
    %v3382 = vpop.permute.xlu0 %3381
    %v3386 = vsel %vm369, %v3377, 0
    %v3389 = vsel %vm369, %v3378, 0
    %3391 = vmatprep.subr.mxu0 0.0
    %3392 = vmatpush1.msra.mxu0 %v3380
    %3393 = vmatprep.subr.mxu0 0.0
    %3394 = vmatpush1.msra.mxu0 %v3382
    %3395 = vmatprep.subr.mxu0 0.0
    %3396 = vmatpush1.msra.mxu0 0.0
    %3397 = vmatprep.subr.mxu0 0.0
    %3398 = vmatpush1.msra.mxu0 0.0
    %3399 = vmatprep.subr.mxu0 0.0
    %3400 = vmatpush1.msra.mxu0 0.0
    %3401 = vmatprep.subr.mxu0 0.0
    %3402 = vmatpush1.msra.mxu0 0.0
    %3403 = vmatprep.subr.mxu0 0.0
    %3404 = vmatpush1.msra.mxu0 0.0
    %3405 = vmatprep.subr.mxu0 0.0
    %3406 = vmatpush1.msra.mxu0 0.0
    %3407 = vmatprep.subr.mxu0 0.0
    %3408 = vmatpush1.msra.mxu0 0.0
    %3409 = vmatprep.subr.mxu0 0.0
    %3410 = vmatpush1.msra.mxu0 0.0
    %3411 = vmatprep.subr.mxu0 0.0
    %3412 = vmatpush1.msra.mxu0 0.0
    %3413 = vmatprep.subr.mxu0 0.0
    %3414 = vmatpush1.msra.mxu0 0.0
    %3415 = vmatprep.subr.mxu0 0.0
    %3416 = vmatpush1.msra.mxu0 0.0
    %3417 = vmatprep.subr.mxu0 0.0
    %3418 = vmatpush1.msra.mxu0 0.0
    %3419 = vmatprep.subr.mxu0 0.0
    %3420 = vmatpush1.msra.mxu0 0.0
    %3421 = vmatprep.subr.mxu0 0.0
    %3422 = vmatpush1.msra.mxu0 0.0
    %3423 = vmatprep.subr.mxu0 0.0
    %3424 = vmatpush1.msra.mxu0 0.0
    %3425 = vmatprep.subr.mxu0 0.0
    %3426 = vmatpush1.msra.mxu0 0.0
    %3427 = vmatprep.subr.mxu0 0.0
    %3428 = vmatpush1.msra.mxu0 0.0
    %3429 = vmatprep.subr.mxu0 0.0
    %3430 = vmatpush1.msra.mxu0 0.0
    %3431 = vmatprep.subr.mxu0 0.0
    %3432 = vmatpush1.msra.mxu0 0.0
    %3433 = vmatprep.subr.mxu0 0.0
    %3434 = vmatpush1.msra.mxu0 0.0
    %3435 = vmatprep.subr.mxu0 0.0
    %3436 = vmatpush1.msra.mxu0 0.0
    %3437 = vmatprep.subr.mxu0 0.0
    %3438 = vmatpush1.msra.mxu0 0.0
    %3439 = vmatprep.subr.mxu0 0.0
    %3440 = vmatpush1.msra.mxu0 0.0
    %3441 = vmatprep.subr.mxu0 0.0
    %3442 = vmatpush1.msra.mxu0 0.0
    %3443 = vmatprep.subr.mxu0 0.0
    %3444 = vmatpush1.msra.mxu0 0.0
    %3445 = vmatprep.subr.mxu0 0.0
    %3446 = vmatpush1.msra.mxu0 0.0
    %3447 = vmatprep.subr.mxu0 0.0
    %3448 = vmatpush1.msra.mxu0 0.0
    %3449 = vmatprep.subr.mxu0 0.0
    %3450 = vmatpush1.msra.mxu0 0.0
    %3451 = vmatprep.subr.mxu0 0.0
    %3452 = vmatpush1.msra.mxu0 0.0
    %3453 = vmatprep.subr.mxu0 0.0
    %3454 = vmatpush1.msra.mxu0 0.0
    %3455 = vmatprep.mubr.f32.mxu0 0.0
    %3456 = vmatmul.mubr.f32.gmra.mrb[0].mxu0 %v3386
    %v3457 = vpop.f32.mrb[0].mxu0
    %v3458 = vadd.f32 0.0, %v3457
    %v3459 = vpop.f32.mrb[0].mxu0
    %3460 = vmatprep.mubr.f32.mxu0 0.0
    %3461 = vmatmul.mubr.f32.gmra.mrb[0].mxu0 %v3389
    %v3462 = vpop.f32.mrb[0].mxu0
    %v3463 = vadd.f32 0.0, %v3462
    %v3464 = vpop.f32.mrb[0].mxu0
    %3465 = vdwg.mxu0
    %3466 = vrot.lane.b32.xlu0 %v2848, 104
    %v3467 = vpop.permute.xlu0 %3466
    %3468 = vrot.lane.b32.xlu0 %v2853, 104
    %v3469 = vpop.permute.xlu0 %3468
    %3470 = vrot.lane.b32.xlu0 %v2848, 72
    %v3471 = vpop.permute.xlu0 %3470
    %3472 = vrot.lane.b32.xlu0 %v2853, 72
    %v3473 = vpop.permute.xlu0 %3472
    %v3474 = vsel %vm281, %v3467, 0
    %v3476 = vsel %vm281, %v3469, 0
    %v3478 = vsel %vm281, %v3471, 0
    %v3480 = vsel %vm281, %v3473, 0
    %3482 = vmatprep.subr.mxu0 0.0
    %3483 = vmatpush1.xpose.msra.mxu0 %v3478
    %3484 = vmatprep.subr.mxu0 0.0
    %3485 = vmatpush1.xpose.msra.mxu0 %v3480
    %3486 = vmatprep.subr.mxu0 0.0
    %3487 = vmatpush1.xpose.msra.mxu0 0.0
    %3488 = vmatprep.subr.mxu0 0.0
    %3489 = vmatpush1.xpose.msra.mxu0 0.0
    %3490 = vmatprep.subr.mxu0 0.0
    %3491 = vmatpush1.xpose.msra.mxu0 0.0
    %3492 = vmatprep.subr.mxu0 0.0
    %3493 = vmatpush1.xpose.msra.mxu0 0.0
    %3494 = vmatprep.subr.mxu0 0.0
    %3495 = vmatpush1.xpose.msra.mxu0 0.0
    %3496 = vmatprep.subr.mxu0 0.0
    %3497 = vmatpush1.xpose.msra.mxu0 0.0
    %3498 = vmatprep.subr.mxu0 0.0
    %3499 = vmatpush1.xpose.msra.mxu0 0.0
    %3500 = vmatprep.subr.mxu0 0.0
    %3501 = vmatpush1.xpose.msra.mxu0 0.0
    %3502 = vmatprep.subr.mxu0 0.0
    %3503 = vmatpush1.xpose.msra.mxu0 0.0
    %3504 = vmatprep.subr.mxu0 0.0
    %3505 = vmatpush1.xpose.msra.mxu0 0.0
    %3506 = vmatprep.subr.mxu0 0.0
    %3507 = vmatpush1.xpose.msra.mxu0 0.0
    %3508 = vmatprep.subr.mxu0 0.0
    %3509 = vmatpush1.xpose.msra.mxu0 0.0
    %3510 = vmatprep.subr.mxu0 0.0
    %3511 = vmatpush1.xpose.msra.mxu0 0.0
    %3512 = vmatprep.subr.mxu0 0.0
    %3513 = vmatpush1.xpose.msra.mxu0 0.0
    %3514 = vmatprep.subr.mxu0 0.0
    %3515 = vmatpush1.xpose.msra.mxu0 0.0
    %3516 = vmatprep.subr.mxu0 0.0
    %3517 = vmatpush1.xpose.msra.mxu0 0.0
    %3518 = vmatprep.subr.mxu0 0.0
    %3519 = vmatpush1.xpose.msra.mxu0 0.0
    %3520 = vmatprep.subr.mxu0 0.0
    %3521 = vmatpush1.xpose.msra.mxu0 0.0
    %3522 = vmatprep.subr.mxu0 0.0
    %3523 = vmatpush1.xpose.msra.mxu0 0.0
    %3524 = vmatprep.subr.mxu0 0.0
    %3525 = vmatpush1.xpose.msra.mxu0 0.0
    %3526 = vmatprep.subr.mxu0 0.0
    %3527 = vmatpush1.xpose.msra.mxu0 0.0
    %3528 = vmatprep.subr.mxu0 0.0
    %3529 = vmatpush1.xpose.msra.mxu0 0.0
    %3530 = vmatprep.subr.mxu0 0.0
    %3531 = vmatpush1.xpose.msra.mxu0 0.0
    %3532 = vmatprep.subr.mxu0 0.0
    %3533 = vmatpush1.xpose.msra.mxu0 0.0
    %3534 = vmatprep.subr.mxu0 0.0
    %3535 = vmatpush1.xpose.msra.mxu0 0.0
    %3536 = vmatprep.subr.mxu0 0.0
    %3537 = vmatpush1.xpose.msra.mxu0 0.0
    %3538 = vmatprep.subr.mxu0 0.0
    %3539 = vmatpush1.xpose.msra.mxu0 0.0
    %3540 = vmatprep.subr.mxu0 0.0
    %3541 = vmatpush1.xpose.msra.mxu0 0.0
    %3542 = vmatprep.subr.mxu0 0.0
    %3543 = vmatpush1.xpose.msra.mxu0 0.0
    %3544 = vmatprep.subr.mxu0 0.0
    %3545 = vmatpush1.xpose.msra.mxu0 0.0
    %3546 = vmatprep.mubr.f32.mxu0 0.0
    %3547 = vmatmul.mubr.f32.gmra.mrb[0].mxu0 %v3474
    %v3548 = vpop.f32.mrb[0].mxu0
    %v3549 = vadd.f32 0.0, %v3548
    %v3550 = vpop.f32.mrb[0].mxu0
    %3551 = vmatprep.mubr.f32.mxu0 0.0
    %3552 = vmatmul.mubr.f32.gmra.mrb[0].mxu0 %v3476
    %v3553 = vpop.f32.mrb[0].mxu0
    %v3554 = vadd.f32 0.0, %v3553
    %v3555 = vpop.f32.mrb[0].mxu0
    %3556 = vdwg.mxu0
    %v3557 = vmul.f32 %v3549, 0.17677669
    %v3558 = vmul.f32 %v3554, 0.17677669
    %v3559 = vadd.f32 %v3557, %v146
    %v3560 = vadd.f32 %v3558, %v147
    %v3561 = vsel %vm369, %v3559, -inf
    %3562 = vmax.xlane.f32.xlu0 %v3561
    %v3563 = vpop.xlane.xlu0 %3562
    %v3564 = vsel %vm369, %v3560, -inf
    %3565 = vmax.xlane.f32.xlu0 %v3564
    %v3566 = vpop.xlane.xlu0 %3565
    %v3567 = vsub.f32 %v3559, %v3563
    %v3568 = vsub.f32 %v3560, %v3566
    %v3569 = vmul.f32 %v3567, 1.442695
    %v3570 = vpow.pop %v3569
    %v3571 = vmul.f32 %v3568, 1.442695
    %v3572 = vpow.pop %v3571
    %v3573 = vsel %vm369, %v3570, 0.0
    %3574 = vadd.xlane.f32.xlu0 %v3573
    %v3575 = vpop.xlane.xlu0 %3574
    %v3576 = vsel %vm369, %v3572, 0.0
    %3577 = vadd.xlane.f32.xlu0 %v3576
    %v3578 = vpop.xlane.xlu0 %3577
    %v3579 = vrcp.pop %v3575
    %v3580 = vrcp.pop %v3578
    %v3581 = vmul.f32 %v3570, %v3579
    %v3582 = vmul.f32 %v3572, %v3580
    %3583 = vrot.lane.b32.xlu0 %v2848, 40
    %v3584 = vpop.permute.xlu0 %3583
    %3585 = vrot.lane.b32.xlu0 %v2853, 40
    %v3586 = vpop.permute.xlu0 %3585
    %v3590 = vsel %vm369, %v3581, 0
    %v3593 = vsel %vm369, %v3582, 0
    %3595 = vmatprep.subr.mxu0 0.0
    %3596 = vmatpush1.msra.mxu0 %v3584
    %3597 = vmatprep.subr.mxu0 0.0
    %3598 = vmatpush1.msra.mxu0 %v3586
    %3599 = vmatprep.subr.mxu0 0.0
    %3600 = vmatpush1.msra.mxu0 0.0
    %3601 = vmatprep.subr.mxu0 0.0
    %3602 = vmatpush1.msra.mxu0 0.0
    %3603 = vmatprep.subr.mxu0 0.0
    %3604 = vmatpush1.msra.mxu0 0.0
    %3605 = vmatprep.subr.mxu0 0.0
    %3606 = vmatpush1.msra.mxu0 0.0
    %3607 = vmatprep.subr.mxu0 0.0
    %3608 = vmatpush1.msra.mxu0 0.0
    %3609 = vmatprep.subr.mxu0 0.0
    %3610 = vmatpush1.msra.mxu0 0.0
    %3611 = vmatprep.subr.mxu0 0.0
    %3612 = vmatpush1.msra.mxu0 0.0
    %3613 = vmatprep.subr.mxu0 0.0
    %3614 = vmatpush1.msra.mxu0 0.0
    %3615 = vmatprep.subr.mxu0 0.0
    %3616 = vmatpush1.msra.mxu0 0.0
    %3617 = vmatprep.subr.mxu0 0.0
    %3618 = vmatpush1.msra.mxu0 0.0
    %3619 = vmatprep.subr.mxu0 0.0
    %3620 = vmatpush1.msra.mxu0 0.0
    %3621 = vmatprep.subr.mxu0 0.0
    %3622 = vmatpush1.msra.mxu0 0.0
    %3623 = vmatprep.subr.mxu0 0.0
    %3624 = vmatpush1.msra.mxu0 0.0
    %3625 = vmatprep.subr.mxu0 0.0
    %3626 = vmatpush1.msra.mxu0 0.0
    %3627 = vmatprep.subr.mxu0 0.0
    %3628 = vmatpush1.msra.mxu0 0.0
    %3629 = vmatprep.subr.mxu0 0.0
    %3630 = vmatpush1.msra.mxu0 0.0
    %3631 = vmatprep.subr.mxu0 0.0
    %3632 = vmatpush1.msra.mxu0 0.0
    %3633 = vmatprep.subr.mxu0 0.0
    %3634 = vmatpush1.msra.mxu0 0.0
    %3635 = vmatprep.subr.mxu0 0.0
    %3636 = vmatpush1.msra.mxu0 0.0
    %3637 = vmatprep.subr.mxu0 0.0
    %3638 = vmatpush1.msra.mxu0 0.0
    %3639 = vmatprep.subr.mxu0 0.0
    %3640 = vmatpush1.msra.mxu0 0.0
    %3641 = vmatprep.subr.mxu0 0.0
    %3642 = vmatpush1.msra.mxu0 0.0
    %3643 = vmatprep.subr.mxu0 0.0
    %3644 = vmatpush1.msra.mxu0 0.0
    %3645 = vmatprep.subr.mxu0 0.0
    %3646 = vmatpush1.msra.mxu0 0.0
    %3647 = vmatprep.subr.mxu0 0.0
    %3648 = vmatpush1.msra.mxu0 0.0
    %3649 = vmatprep.subr.mxu0 0.0
    %3650 = vmatpush1.msra.mxu0 0.0
    %3651 = vmatprep.subr.mxu0 0.0
    %3652 = vmatpush1.msra.mxu0 0.0
    %3653 = vmatprep.subr.mxu0 0.0
    %3654 = vmatpush1.msra.mxu0 0.0
    %3655 = vmatprep.subr.mxu0 0.0
    %3656 = vmatpush1.msra.mxu0 0.0
    %3657 = vmatprep.subr.mxu0 0.0
    %3658 = vmatpush1.msra.mxu0 0.0
    %3659 = vmatprep.mubr.f32.mxu0 0.0
    %3660 = vmatmul.mubr.f32.gmra.mrb[0].mxu0 %v3590
    %v3661 = vpop.f32.mrb[0].mxu0
    %v3662 = vadd.f32 0.0, %v3661
    %v3663 = vpop.f32.mrb[0].mxu0
    %3664 = vmatprep.mubr.f32.mxu0 0.0
    %3665 = vmatmul.mubr.f32.gmra.mrb[0].mxu0 %v3593
    %v3666 = vpop.f32.mrb[0].mxu0
    %v3667 = vadd.f32 0.0, %v3666
    %v3668 = vpop.f32.mrb[0].mxu0
    %3669 = vdwg.mxu0
    %3672 = vrot.lane.b32.xlu0 %v3254, 8
    %v3673 = vpop.permute.xlu0 %3672
    %3674 = vrot.lane.b32.xlu0 %v3259, 8
    %v3675 = vpop.permute.xlu0 %3674
    %3680 = vrot.lane.b32.xlu0 %v3458, 16
    %v3681 = vpop.permute.xlu0 %3680
    %3682 = vrot.lane.b32.xlu0 %v3463, 16
    %v3683 = vpop.permute.xlu0 %3682
    %3688 = vrot.lane.b32.xlu0 %v3662, 24
    %v3689 = vpop.permute.xlu0 %3688
    %3690 = vrot.lane.b32.xlu0 %v3667, 24
    %v3691 = vpop.permute.xlu0 %3690
    %v3694 = vsel %vm281, %v3050, %v3673
    %v3695 = vsel %vm281, %v3055, %v3675
    %v3696 = vsel %vm369, %v3694, %v3681
    %v3697 = vsel %vm369, %v3695, %v3683
    %v3698 = vsel %vm1119, %v3696, %v3689
    %v3699 = vsel %vm1119, %v3697, %v3691
    %v3700 = vld [vmem:[#allocation2 + $0x270] sm:$0xff]
    %v3701 = vld [vmem:[#allocation2 + $0x278] sm:$0xff]
    %v3702 = vld [vmem:[#allocation2 + $0x280] sm:$0xff]
    %v3703 = vld [vmem:[#allocation2 + $0x288] sm:$0xff]
    %v3705 = vsel %vm150, %v3698, 0
    %v3708 = vsel %vm150, %v3699, 0
    %3710 = vmatprep.subr.mxu0 0.0
    %3711 = vmatpush1.msra.mxu0 %v3700
    %3712 = vmatprep.subr.mxu0 0.0
    %3713 = vmatpush1.msra.mxu0 %v3701
    %3714 = vmatprep.subr.mxu0 0.0
    %3715 = vmatpush1.msra.mxu0 %v3702
    %3716 = vmatprep.subr.mxu0 0.0
    %3717 = vmatpush1.msra.mxu0 %v3703
    %3718 = vmatprep.subr.mxu0 0.0
    %3719 = vmatpush1.msra.mxu0 0.0
    %3720 = vmatprep.subr.mxu0 0.0
    %3721 = vmatpush1.msra.mxu0 0.0
    %3722 = vmatprep.subr.mxu0 0.0
    %3723 = vmatpush1.msra.mxu0 0.0
    %3724 = vmatprep.subr.mxu0 0.0
    %3725 = vmatpush1.msra.mxu0 0.0
    %3726 = vmatprep.subr.mxu0 0.0
    %3727 = vmatpush1.msra.mxu0 0.0
    %3728 = vmatprep.subr.mxu0 0.0
    %3729 = vmatpush1.msra.mxu0 0.0
    %3730 = vmatprep.subr.mxu0 0.0
    %3731 = vmatpush1.msra.mxu0 0.0
    %3732 = vmatprep.subr.mxu0 0.0
    %3733 = vmatpush1.msra.mxu0 0.0
    %3734 = vmatprep.subr.mxu0 0.0
    %3735 = vmatpush1.msra.mxu0 0.0
    %3736 = vmatprep.subr.mxu0 0.0
    %3737 = vmatpush1.msra.mxu0 0.0
    %3738 = vmatprep.subr.mxu0 0.0
    %3739 = vmatpush1.msra.mxu0 0.0
    %3740 = vmatprep.subr.mxu0 0.0
    %3741 = vmatpush1.msra.mxu0 0.0
    %3742 = vmatprep.subr.mxu0 0.0
    %3743 = vmatpush1.msra.mxu0 0.0
    %3744 = vmatprep.subr.mxu0 0.0
    %3745 = vmatpush1.msra.mxu0 0.0
    %3746 = vmatprep.subr.mxu0 0.0
    %3747 = vmatpush1.msra.mxu0 0.0
    %3748 = vmatprep.subr.mxu0 0.0
    %3749 = vmatpush1.msra.mxu0 0.0
    %3750 = vmatprep.subr.mxu0 0.0
    %3751 = vmatpush1.msra.mxu0 0.0
    %3752 = vmatprep.subr.mxu0 0.0
    %3753 = vmatpush1.msra.mxu0 0.0
    %3754 = vmatprep.subr.mxu0 0.0
    %3755 = vmatpush1.msra.mxu0 0.0
    %3756 = vmatprep.subr.mxu0 0.0
    %3757 = vmatpush1.msra.mxu0 0.0
    %3758 = vmatprep.subr.mxu0 0.0
    %3759 = vmatpush1.msra.mxu0 0.0
    %3760 = vmatprep.subr.mxu0 0.0
    %3761 = vmatpush1.msra.mxu0 0.0
    %3762 = vmatprep.subr.mxu0 0.0
    %3763 = vmatpush1.msra.mxu0 0.0
    %3764 = vmatprep.subr.mxu0 0.0
    %3765 = vmatpush1.msra.mxu0 0.0
    %3766 = vmatprep.subr.mxu0 0.0
    %3767 = vmatpush1.msra.mxu0 0.0
    %3768 = vmatprep.subr.mxu0 0.0
    %3769 = vmatpush1.msra.mxu0 0.0
    %3770 = vmatprep.subr.mxu0 0.0
    %3771 = vmatpush1.msra.mxu0 0.0
    %3772 = vmatprep.subr.mxu0 0.0
    %3773 = vmatpush1.msra.mxu0 0.0
    %3774 = vmatprep.mubr.f32.mxu0 0.0
    %3775 = vmatmul.mubr.f32.gmra.mrb[0].mxu0 %v3705
    %v3776 = vpop.f32.mrb[0].mxu0
    %v3777 = vadd.f32 0.0, %v3776
    %v3778 = vpop.f32.mrb[0].mxu0
    %3779 = vmatprep.mubr.f32.mxu0 0.0
    %3780 = vmatmul.mubr.f32.gmra.mrb[0].mxu0 %v3708
    %v3781 = vpop.f32.mrb[0].mxu0
    %v3782 = vadd.f32 0.0, %v3781
    %v3783 = vpop.f32.mrb[0].mxu0
    %3784 = vdwg.mxu0
    %v3785 = vadd.f32 %v2731, %v3777
    %v3786 = vadd.f32 %v2732, %v3782
    %v3787 = vld [vmem:[#allocation2 + $0x290] sm:$0x1]
    %v3788 = vlaneseq
    %v3789 = vshrl.u32 %v3788, 7
    %v3790 = vsub.s32 0, %v3789
    %v3791 = vrot.slane %v3787, %v3790
    %v3792 = vadd.f32 %v3785, %v3791
    %v3793 = vadd.f32 %v3786, %v3791
    %v3794 = vsel %vm150, %v3792, 0.0
    %3795 = vadd.xlane.f32.xlu0 %v3794
    %v3796 = vpop.xlane.xlu0 %3795
    %v3797 = vsel %vm150, %v3793, 0.0
    %3798 = vadd.xlane.f32.xlu0 %v3797
    %v3799 = vpop.xlane.xlu0 %3798
    %v3800 = vmul.f32 %v3796, %v157
    %v3801 = vmul.f32 %v3799, %v157
    %v3802 = vsub.f32 %v3792, %v3800
    %v3803 = vsub.f32 %v3793, %v3801
    %v3804 = vmul.f32 %v3802, %v3802
    %v3805 = vmul.f32 %v3803, %v3803
    %v3806 = vsel %vm150, %v3804, 0.0
    %3807 = vadd.xlane.f32.xlu0 %v3806
    %v3808 = vpop.xlane.xlu0 %3807
    %v3809 = vsel %vm150, %v3805, 0.0
    %3810 = vadd.xlane.f32.xlu0 %v3809
    %v3811 = vpop.xlane.xlu0 %3810
    %v3812 = vmul.f32 %v3808, %v157
    %v3813 = vmul.f32 %v3811, %v157
    %v3814 = vadd.f32 %v3812, 1e-05
    %v3815 = vadd.f32 %v3813, 1e-05
    %v3816 = vrsqrt.pop %v3814
    %v3817 = vrsqrt.pop %v3815
    %v3818 = vmul.f32 %v3802, %v3816
    %v3819 = vmul.f32 %v3803, %v3817
    %v3820 = vlaneseq
    %v3821 = vshrl.u32 %v3820, 7
    %v3822 = vsub.s32 5, %v3821
    %v3823 = vrot.slane %v148, %v3822
    %v3824 = vmul.f32 %v3818, %v3823
    %v3825 = vmul.f32 %v3819, %v3823
    %v3826 = vlaneseq
    %v3827 = vshrl.u32 %v3826, 7
    %v3828 = vsub.s32 5, %v3827
    %v3829 = vrot.slane %v149, %v3828
    %v3830 = vadd.f32 %v3824, %v3829
    %v3831 = vadd.f32 %v3825, %v3829
    %v3832 = vld [vmem:[#allocation2 + $0x298] sm:$0xff]
    %v3833 = vld [vmem:[#allocation2 + $0x2a0] sm:$0xff]
    %v3834 = vld [vmem:[#allocation2 + $0x2a8] sm:$0xff]
    %v3835 = vld [vmem:[#allocation2 + $0x2b0] sm:$0xff]
    %v3836 = vld [vmem:[#allocation2 + $0x2b8] sm:$0x1]
    %v3837 = vlaneseq
    %v3838 = vshrl.u32 %v3837, 7
    %v3839 = vsub.s32 0, %v3838
    %v3840 = vrot.slane %v3836, %v3839
    %v3842 = vsel %vm150, %v3830, 0
    %v3845 = vsel %vm150, %v3831, 0
    %3847 = vmatprep.subr.mxu0 0.0
    %3848 = vmatpush1.msra.mxu0 %v3832
    %3849 = vmatprep.subr.mxu0 0.0
    %3850 = vmatpush1.msra.mxu0 %v3833
    %3851 = vmatprep.subr.mxu0 0.0
    %3852 = vmatpush1.msra.mxu0 %v3834
    %3853 = vmatprep.subr.mxu0 0.0
    %3854 = vmatpush1.msra.mxu0 %v3835
    %3855 = vmatprep.subr.mxu0 0.0
    %3856 = vmatpush1.msra.mxu0 0.0
    %3857 = vmatprep.subr.mxu0 0.0
    %3858 = vmatpush1.msra.mxu0 0.0
    %3859 = vmatprep.subr.mxu0 0.0
    %3860 = vmatpush1.msra.mxu0 0.0
    %3861 = vmatprep.subr.mxu0 0.0
    %3862 = vmatpush1.msra.mxu0 0.0
    %3863 = vmatprep.subr.mxu0 0.0
    %3864 = vmatpush1.msra.mxu0 0.0
    %3865 = vmatprep.subr.mxu0 0.0
    %3866 = vmatpush1.msra.mxu0 0.0
    %3867 = vmatprep.subr.mxu0 0.0
    %3868 = vmatpush1.msra.mxu0 0.0
    %3869 = vmatprep.subr.mxu0 0.0
    %3870 = vmatpush1.msra.mxu0 0.0
    %3871 = vmatprep.subr.mxu0 0.0
    %3872 = vmatpush1.msra.mxu0 0.0
    %3873 = vmatprep.subr.mxu0 0.0
    %3874 = vmatpush1.msra.mxu0 0.0
    %3875 = vmatprep.subr.mxu0 0.0
    %3876 = vmatpush1.msra.mxu0 0.0
    %3877 = vmatprep.subr.mxu0 0.0
    %3878 = vmatpush1.msra.mxu0 0.0
    %3879 = vmatprep.subr.mxu0 0.0
    %3880 = vmatpush1.msra.mxu0 0.0
    %3881 = vmatprep.subr.mxu0 0.0
    %3882 = vmatpush1.msra.mxu0 0.0
    %3883 = vmatprep.subr.mxu0 0.0
    %3884 = vmatpush1.msra.mxu0 0.0
    %3885 = vmatprep.subr.mxu0 0.0
    %3886 = vmatpush1.msra.mxu0 0.0
    %3887 = vmatprep.subr.mxu0 0.0
    %3888 = vmatpush1.msra.mxu0 0.0
    %3889 = vmatprep.subr.mxu0 0.0
    %3890 = vmatpush1.msra.mxu0 0.0
    %3891 = vmatprep.subr.mxu0 0.0
    %3892 = vmatpush1.msra.mxu0 0.0
    %3893 = vmatprep.subr.mxu0 0.0
    %3894 = vmatpush1.msra.mxu0 0.0
    %3895 = vmatprep.subr.mxu0 0.0
    %3896 = vmatpush1.msra.mxu0 0.0
    %3897 = vmatprep.subr.mxu0 0.0
    %3898 = vmatpush1.msra.mxu0 0.0
    %3899 = vmatprep.subr.mxu0 0.0
    %3900 = vmatpush1.msra.mxu0 0.0
    %3901 = vmatprep.subr.mxu0 0.0
    %3902 = vmatpush1.msra.mxu0 0.0
    %3903 = vmatprep.subr.mxu0 0.0
    %3904 = vmatpush1.msra.mxu0 0.0
    %3905 = vmatprep.subr.mxu0 0.0
    %3906 = vmatpush1.msra.mxu0 0.0
    %3907 = vmatprep.subr.mxu0 0.0
    %3908 = vmatpush1.msra.mxu0 0.0
    %3909 = vmatprep.subr.mxu0 0.0
    %3910 = vmatpush1.msra.mxu0 0.0
    %3911 = vmatprep.mubr.f32.mxu0 0.0
    %3912 = vmatmul.mubr.f32.gmra.mrb[0].mxu0 %v3842
    %v3913 = vpop.f32.mrb[0].mxu0
    %v3914 = vadd.f32 %v3840, %v3913
    %v3915 = vpop.f32.mrb[0].mxu0
    %3916 = vmatprep.mubr.f32.mxu0 0.0
    %3917 = vmatmul.mubr.f32.gmra.mrb[0].mxu0 %v3845
    %v3918 = vpop.f32.mrb[0].mxu0
    %v3919 = vadd.f32 %v3840, %v3918
    %v3920 = vpop.f32.mrb[0].mxu0
    %3921 = vdwg.mxu0
    %v3922 = vmax.f32 %v3914, 0.0
    %v3923 = vmax.f32 %v3919, 0.0
    %v3924 = vld [vmem:[#allocation2 + $0x2c0] sm:$0xff]
    %v3925 = vld [vmem:[#allocation2 + $0x2c8] sm:$0xff]
    %v3926 = vld [vmem:[#allocation2 + $0x2d0] sm:$0xff]
    %v3927 = vld [vmem:[#allocation2 + $0x2d8] sm:$0xff]
    %v3928 = vld [vmem:[#allocation2 + $0x2e0] sm:$0xff]
    %v3929 = vld [vmem:[#allocation2 + $0x2e8] sm:$0xff]
    %v3930 = vld [vmem:[#allocation2 + $0x2f0] sm:$0xff]
    %v3931 = vld [vmem:[#allocation2 + $0x2f8] sm:$0xff]
    %v3932 = vld [vmem:[#allocation2 + $0x300] sm:$0xff]
    %v3933 = vld [vmem:[#allocation2 + $0x308] sm:$0xff]
    %v3934 = vld [vmem:[#allocation2 + $0x310] sm:$0xff]
    %v3935 = vld [vmem:[#allocation2 + $0x318] sm:$0xff]
    %v3936 = vld [vmem:[#allocation2 + $0x320] sm:$0xff]
    %v3937 = vld [vmem:[#allocation2 + $0x328] sm:$0xff]
    %v3938 = vld [vmem:[#allocation2 + $0x330] sm:$0xff]
    %v3939 = vld [vmem:[#allocation2 + $0x338] sm:$0xff]
    %v3940 = vld [vmem:[#allocation2 + $0x340] sm:$0x1]
    %v3941 = vlaneseq
    %v3942 = vshrl.u32 %v3941, 7
    %v3943 = vsub.s32 0, %v3942
    %v3944 = vrot.slane %v3940, %v3943
    %3945 = vmatprep.subr.mxu0 0.0
    %3946 = vmatpush1.msra.mxu0 %v3924
    %3947 = vmatprep.subr.mxu0 0.0
    %3948 = vmatpush1.msra.mxu0 %v3925
    %3949 = vmatprep.subr.mxu0 0.0
    %3950 = vmatpush1.msra.mxu0 %v3926
    %3951 = vmatprep.subr.mxu0 0.0
    %3952 = vmatpush1.msra.mxu0 %v3927
    %3953 = vmatprep.subr.mxu0 0.0
    %3954 = vmatpush1.msra.mxu0 %v3928
    %3955 = vmatprep.subr.mxu0 0.0
    %3956 = vmatpush1.msra.mxu0 %v3929
    %3957 = vmatprep.subr.mxu0 0.0
    %3958 = vmatpush1.msra.mxu0 %v3930
    %3959 = vmatprep.subr.mxu0 0.0
    %3960 = vmatpush1.msra.mxu0 %v3931
    %3961 = vmatprep.subr.mxu0 0.0
    %3962 = vmatpush1.msra.mxu0 %v3932
    %3963 = vmatprep.subr.mxu0 0.0
    %3964 = vmatpush1.msra.mxu0 %v3933
    %3965 = vmatprep.subr.mxu0 0.0
    %3966 = vmatpush1.msra.mxu0 %v3934
    %3967 = vmatprep.subr.mxu0 0.0
    %3968 = vmatpush1.msra.mxu0 %v3935
    %3969 = vmatprep.subr.mxu0 0.0
    %3970 = vmatpush1.msra.mxu0 %v3936
    %3971 = vmatprep.subr.mxu0 0.0
    %3972 = vmatpush1.msra.mxu0 %v3937
    %3973 = vmatprep.subr.mxu0 0.0
    %3974 = vmatpush1.msra.mxu0 %v3938
    %3975 = vmatprep.subr.mxu0 0.0
    %3976 = vmatpush1.msra.mxu0 %v3939
    %3977 = vmatprep.subr.mxu0 0.0
    %3978 = vmatpush1.msra.mxu0 0.0
    %3979 = vmatprep.subr.mxu0 0.0
    %3980 = vmatpush1.msra.mxu0 0.0
    %3981 = vmatprep.subr.mxu0 0.0
    %3982 = vmatpush1.msra.mxu0 0.0
    %3983 = vmatprep.subr.mxu0 0.0
    %3984 = vmatpush1.msra.mxu0 0.0
    %3985 = vmatprep.subr.mxu0 0.0
    %3986 = vmatpush1.msra.mxu0 0.0
    %3987 = vmatprep.subr.mxu0 0.0
    %3988 = vmatpush1.msra.mxu0 0.0
    %3989 = vmatprep.subr.mxu0 0.0
    %3990 = vmatpush1.msra.mxu0 0.0
    %3991 = vmatprep.subr.mxu0 0.0
    %3992 = vmatpush1.msra.mxu0 0.0
    %3993 = vmatprep.subr.mxu0 0.0
    %3994 = vmatpush1.msra.mxu0 0.0
    %3995 = vmatprep.subr.mxu0 0.0
    %3996 = vmatpush1.msra.mxu0 0.0
    %3997 = vmatprep.subr.mxu0 0.0
    %3998 = vmatpush1.msra.mxu0 0.0
    %3999 = vmatprep.subr.mxu0 0.0
    %4000 = vmatpush1.msra.mxu0 0.0
    %4001 = vmatprep.subr.mxu0 0.0
    %4002 = vmatpush1.msra.mxu0 0.0
    %4003 = vmatprep.subr.mxu0 0.0
    %4004 = vmatpush1.msra.mxu0 0.0
    %4005 = vmatprep.subr.mxu0 0.0
    %4006 = vmatpush1.msra.mxu0 0.0
    %4007 = vmatprep.subr.mxu0 0.0
    %4008 = vmatpush1.msra.mxu0 0.0
    %4009 = vmatprep.mubr.f32.mxu0 0.0
    %4010 = vmatmul.mubr.f32.gmra.mrb[0].mxu0 %v3922
    %v4011 = vpop.f32.mrb[0].mxu0
    %v4012 = vadd.f32 %v3944, %v4011
    %v4013 = vpop.f32.mrb[0].mxu0
    %4014 = vmatprep.mubr.f32.mxu0 0.0
    %4015 = vmatmul.mubr.f32.gmra.mrb[0].mxu0 %v3923
    %v4016 = vpop.f32.mrb[0].mxu0
    %v4017 = vadd.f32 %v3944, %v4016
    %v4018 = vpop.f32.mrb[0].mxu0
    %4019 = vdwg.mxu0
    %v4020 = vadd.f32 %v3792, %v4012
    %v4021 = vadd.f32 %v3793, %v4017
    %v4022 = vsel %vm150, %v4020, 0.0
    %4023 = vadd.xlane.f32.xlu0 %v4022
    %v4024 = vpop.xlane.xlu0 %4023
    %v4025 = vsel %vm150, %v4021, 0.0
    %4026 = vadd.xlane.f32.xlu0 %v4025
    %v4027 = vpop.xlane.xlu0 %4026
    %v4028 = vmul.f32 %v4024, %v157
    %v4029 = vmul.f32 %v4027, %v157
    %v4030 = vsub.f32 %v4020, %v4028
    %v4031 = vsub.f32 %v4021, %v4029
    %v4032 = vmul.f32 %v4030, %v4030
    %v4033 = vmul.f32 %v4031, %v4031
    %v4034 = vsel %vm150, %v4032, 0.0
    %4035 = vadd.xlane.f32.xlu0 %v4034
    %v4036 = vpop.xlane.xlu0 %4035
    %v4037 = vsel %vm150, %v4033, 0.0
    %4038 = vadd.xlane.f32.xlu0 %v4037
    %v4039 = vpop.xlane.xlu0 %4038
    %v4040 = vmul.f32 %v4036, %v157
    %v4041 = vmul.f32 %v4039, %v157
    %v4042 = vadd.f32 %v4040, 1e-05
    %v4043 = vadd.f32 %v4041, 1e-05
    %v4044 = vrsqrt.pop %v4042
    %v4045 = vrsqrt.pop %v4043
    %v4046 = vmul.f32 %v4030, %v4044
    %v4047 = vmul.f32 %v4031, %v4045
    %v4048 = vlaneseq
    %v4049 = vshrl.u32 %v4048, 7
    %v4050 = vsub.s32 6, %v4049
    %v4051 = vrot.slane %v148, %v4050
    %v4052 = vmul.f32 %v4046, %v4051
    %v4053 = vmul.f32 %v4047, %v4051
    %v4054 = vlaneseq
    %v4055 = vshrl.u32 %v4054, 7
    %v4056 = vsub.s32 6, %v4055
    %v4057 = vrot.slane %v149, %v4056
    %v4058 = vadd.f32 %v4052, %v4057
    %v4059 = vadd.f32 %v4053, %v4057
    %v4060 = vld [vmem:[#allocation2 + $0x348] sm:$0xff]
    %v4061 = vld [vmem:[#allocation2 + $0x350] sm:$0xff]
    %v4062 = vld [vmem:[#allocation2 + $0x358] sm:$0xff]
    %v4063 = vld [vmem:[#allocation2 + $0x360] sm:$0xff]
    %v4064 = vld [vmem:[#allocation2 + $0x368] sm:$0x1]
    %v4065 = vlaneseq
    %v4066 = vshrl.u32 %v4065, 7
    %v4067 = vsub.s32 0, %v4066
    %v4068 = vrot.slane %v4064, %v4067
    %v4070 = vsel %vm150, %v4058, 0
    %v4073 = vsel %vm150, %v4059, 0
    %4075 = vmatprep.subr.mxu0 0.0
    %4076 = vmatpush1.msra.mxu0 %v4060
    %4077 = vmatprep.subr.mxu0 0.0
    %4078 = vmatpush1.msra.mxu0 %v4061
    %4079 = vmatprep.subr.mxu0 0.0
    %4080 = vmatpush1.msra.mxu0 %v4062
    %4081 = vmatprep.subr.mxu0 0.0
    %4082 = vmatpush1.msra.mxu0 %v4063
    %4083 = vmatprep.subr.mxu0 0.0
    %4084 = vmatpush1.msra.mxu0 0.0
    %4085 = vmatprep.subr.mxu0 0.0
    %4086 = vmatpush1.msra.mxu0 0.0
    %4087 = vmatprep.subr.mxu0 0.0
    %4088 = vmatpush1.msra.mxu0 0.0
    %4089 = vmatprep.subr.mxu0 0.0
    %4090 = vmatpush1.msra.mxu0 0.0
    %4091 = vmatprep.subr.mxu0 0.0
    %4092 = vmatpush1.msra.mxu0 0.0
    %4093 = vmatprep.subr.mxu0 0.0
    %4094 = vmatpush1.msra.mxu0 0.0
    %4095 = vmatprep.subr.mxu0 0.0
    %4096 = vmatpush1.msra.mxu0 0.0
    %4097 = vmatprep.subr.mxu0 0.0
    %4098 = vmatpush1.msra.mxu0 0.0
    %4099 = vmatprep.subr.mxu0 0.0
    %4100 = vmatpush1.msra.mxu0 0.0
    %4101 = vmatprep.subr.mxu0 0.0
    %4102 = vmatpush1.msra.mxu0 0.0
    %4103 = vmatprep.subr.mxu0 0.0
    %4104 = vmatpush1.msra.mxu0 0.0
    %4105 = vmatprep.subr.mxu0 0.0
    %4106 = vmatpush1.msra.mxu0 0.0
    %4107 = vmatprep.subr.mxu0 0.0
    %4108 = vmatpush1.msra.mxu0 0.0
    %4109 = vmatprep.subr.mxu0 0.0
    %4110 = vmatpush1.msra.mxu0 0.0
    %4111 = vmatprep.subr.mxu0 0.0
    %4112 = vmatpush1.msra.mxu0 0.0
    %4113 = vmatprep.subr.mxu0 0.0
    %4114 = vmatpush1.msra.mxu0 0.0
    %4115 = vmatprep.subr.mxu0 0.0
    %4116 = vmatpush1.msra.mxu0 0.0
    %4117 = vmatprep.subr.mxu0 0.0
    %4118 = vmatpush1.msra.mxu0 0.0
    %4119 = vmatprep.subr.mxu0 0.0
    %4120 = vmatpush1.msra.mxu0 0.0
    %4121 = vmatprep.subr.mxu0 0.0
    %4122 = vmatpush1.msra.mxu0 0.0
    %4123 = vmatprep.subr.mxu0 0.0
    %4124 = vmatpush1.msra.mxu0 0.0
    %4125 = vmatprep.subr.mxu0 0.0
    %4126 = vmatpush1.msra.mxu0 0.0
    %4127 = vmatprep.subr.mxu0 0.0
    %4128 = vmatpush1.msra.mxu0 0.0
    %4129 = vmatprep.subr.mxu0 0.0
    %4130 = vmatpush1.msra.mxu0 0.0
    %4131 = vmatprep.subr.mxu0 0.0
    %4132 = vmatpush1.msra.mxu0 0.0
    %4133 = vmatprep.subr.mxu0 0.0
    %4134 = vmatpush1.msra.mxu0 0.0
    %4135 = vmatprep.subr.mxu0 0.0
    %4136 = vmatpush1.msra.mxu0 0.0
    %4137 = vmatprep.subr.mxu0 0.0
    %4138 = vmatpush1.msra.mxu0 0.0
    %4139 = vmatprep.mubr.f32.mxu0 0.0
    %4140 = vmatmul.mubr.f32.gmra.mrb[0].mxu0 %v4070
    %v4141 = vpop.f32.mrb[0].mxu0
    %v4142 = vadd.f32 %v4068, %v4141
    %v4143 = vpop.f32.mrb[0].mxu0
    %4144 = vmatprep.mubr.f32.mxu0 0.0
    %4145 = vmatmul.mubr.f32.gmra.mrb[0].mxu0 %v4073
    %v4146 = vpop.f32.mrb[0].mxu0
    %v4147 = vadd.f32 %v4068, %v4146
    %v4148 = vpop.f32.mrb[0].mxu0
    %4149 = vdwg.mxu0
    %4150 = vst [vmem:[%s2] sm:$0xff] %v4142
    %4151 = vst [vmem:[%s2 + $0x8] sm:$0xff] %v4147
    // Predicated region
    $region14: #{_forward_impl.1} parent=1 // pred_check
      _
    $region15: #{_forward_impl.1} parent=1 // pred_check_branch
      %4153 = sbr.rel (0) target = $region17
    $region16: #{_forward_impl.1} parent=1 // pred_region
      _
    $region17: #{_forward_impl.1} parent=1 // pred_fallthru
      _
    // Predicated region
    $region18: #{_forward_impl.1} parent=1 // pred_check
      _
    $region19: #{_forward_impl.1} parent=1 // pred_check_branch
      %4155 = sbr.rel (0) target = $region21
    $region20: #{_forward_impl.1} parent=1 // pred_region
      _
    $region21: #{_forward_impl.1} parent=1 // pred_fallthru
      _
    %4156 = vsyncpa [#allocation3], 1

</llo_original>
